<compile_context>
chip_gen: v7x
topology: tpu7x:2x2x1
jax: 0.10.0
libtpu: 0.0.40
codegen_flags: <defaults>
</compile_context>

<pallas_src>
import jax
import jax.numpy as jnp
from jax import lax
from jax.experimental import pallas as pl
from jax.experimental.pallas import tpu as pltpu


# ----------------------------------------------------------------------------
# Pallas kernel: full Attention.forward for one (batch, n-tile) block
# ----------------------------------------------------------------------------
def _attention_kernel(key_ref, val_ref, pos_ref,
                      wq_ref, bq_ref, wk_ref, bk_ref, wv_ref, bv_ref,
                      wp1_ref, s1_ref, t1_ref, wp2_ref, bp2_ref,
                      wa1_ref, s2_ref, t2_ref, wa2_ref, ba2_ref,
                      we_ref, be_ref, o_ref):
    _, TNK, C = key_ref.shape          # key/value arrive pre-flattened (TN*K, C)
    _, TN, _ = pos_ref.shape
    K = TNK // TN
    D = wk_ref.shape[1]

    def mm(x, w_ref):
        # bf16 operands on the MXU, f32 accumulation.
        return jnp.dot(x.astype(jnp.bfloat16), w_ref[...],
                       preferred_element_type=jnp.float32)

    k_in = key_ref[0]                                    # (TN*K, C) — no reshape
    v_in = val_ref[0]                                    # (TN*K, C)
    pos = pos_ref[0]                                     # (TN, 3)

    # conv_query: contraction dim is only 3 -> degenerate on the MXU; do it as
    # three VPU broadcast-multiply-adds instead.
    wq = wq_ref[...]                                     # (3, D), f32
    q = (pos[:, 0:1] * wq[0:1, :] + pos[:, 1:2] * wq[1:2, :]
         + pos[:, 2:3] * wq[2:3, :] + bq_ref[...])       # (TN, D)

    # conv_key / conv_value (1x1 convs == channel matmuls)
    keyf = (mm(k_in, wk_ref) + bk_ref[...]).reshape(TN, K, D)
    valf = (mm(v_in, wv_ref) + bv_ref[...]).reshape(TN, K, D)

    # pos_mlp(query): query is constant across k, so evaluate once per point.
    # BN folded in eval mode; conv bias folded into the shift.
    ph = jnp.maximum(mm(q, wp1_ref) * s1_ref[...] + t1_ref[...], 0.0)   # (TN, Hp)
    pos_emb = mm(ph, wp2_ref) + bp2_ref[...]                            # (TN, D)

    pe3 = pos_emb[:, None, :]                            # (TN, 1, D)
    # attn_mlp(qk_rel * pe + pe) == attn_mlp(((q + 1) - key) * pe)
    qp1 = (q + 1.0)[:, None, :]                          # (TN, 1, D)
    attn_in = (qp1 - keyf) * pe3                         # (TN, K, D)
    h = jnp.maximum(
        mm(attn_in.reshape(TNK, D), wa1_ref) * s2_ref[...] + t2_ref[...],
        0.0)                                             # (TN*K, 4D)
    attn = (mm(h, wa2_ref) + ba2_ref[...]).reshape(TN, K, D)

    # softmax over the neighbor axis k (PyTorch softmax dim=-1 on (B, D, n, k))
    m = jnp.max(attn, axis=1, keepdims=True)
    e = jnp.exp(attn - m)
    attn = e * pl.reciprocal(jnp.sum(e, axis=1, keepdims=True), approx=True)

    # value = value + pos_embedding; agg = einsum('b c i j, b c i j -> b c i')
    agg = jnp.sum(attn * (valf + pe3), axis=1)           # (TN, D)

    # linear_end: Conv1d(D, D, 1); lane-dense (TN, D) store
    o_ref[0] = (mm(agg, we_ref) + be_ref[...]).astype(o_ref.dtype)


# ----------------------------------------------------------------------------
# Wrapper
# ----------------------------------------------------------------------------
_PARAM_ORDER = ("wq", "bq", "wk", "bk", "wv", "bv",
                "wp1", "s1", "t1", "wp2", "bp2",
                "wa1", "s2", "t2", "wa2", "ba2",
                "we", "be")
_BF16_WEIGHTS = ("wk", "wv", "wp1", "wp2", "wa1", "wa2", "we")


def attention_forward(key, values, pos, params, *, tn=32):
    """key, values: (B, C, n, k); pos: (B, 3, n)  ->  y: (B, D, n)."""
    B, C, N, K = key.shape
    # channels-last and (n, k) flattened so kernel-side loads are plain 2D slabs
    key_cl = jnp.transpose(key, (0, 2, 3, 1)).reshape(B, N * K, C)
    val_cl = jnp.transpose(values, (0, 2, 3, 1)).reshape(B, N * K, C)
    pos_cl = jnp.transpose(pos, (0, 2, 1))                # (B, n, 3)
    D = params["wk"].shape[1]
    tn = min(tn, N)
    assert N % tn == 0, (N, tn)
    assert tn % 8 == 0, tn
    grid = (B, N // tn)

    # MXU weights go in as bf16 (halves weight DMA and in-kernel converts);
    # biases / BN scale-shift / the tiny 3->D weight stay f32.
    plist = [params[name].astype(jnp.bfloat16) if name in _BF16_WEIGHTS
             else params[name] for name in _PARAM_ORDER]

    in_specs = [
        pl.BlockSpec((1, tn * K, C), lambda b, i: (b, i, 0)),
        pl.BlockSpec((1, tn * K, C), lambda b, i: (b, i, 0)),
        pl.BlockSpec((1, tn, 3), lambda b, i: (b, i, 0)),
    ]
    in_specs += [pl.BlockSpec(p.shape, lambda b, i: (0, 0)) for p in plist]

    out_cl = pl.pallas_call(
        _attention_kernel,
        out_shape=jax.ShapeDtypeStruct((B, N, D), jnp.float32),
        grid_spec=pltpu.PrefetchScalarGridSpec(
            num_scalar_prefetch=0,
            grid=grid,
            in_specs=in_specs,
            out_specs=pl.BlockSpec((1, tn, D), lambda b, i: (b, i, 0))),
        compiler_params=pltpu.CompilerParams(
            dimension_semantics=("parallel", "parallel"),
            vmem_limit_bytes=32 * 1024 * 1024),
    )(key_cl, val_cl, pos_cl, *plist)

    return jnp.transpose(out_cl, (0, 2, 1))               # (B, D, n)


# ----------------------------------------------------------------------------
# Deterministic synthetic parameters (channels-last / transposed weights)
# ----------------------------------------------------------------------------
def init_params(key, in_channel, dim, pos_hidden_dim, attn_hidden_multiplier):
    C, D, Hp = in_channel, dim, pos_hidden_dim
    H4 = D * attn_hidden_multiplier
    keys = iter(jax.random.split(key, 32))

    def w(shape, scale=0.1):
        return scale * jax.random.normal(next(keys), shape, jnp.float32)

    eps = 1e-5

    # TODO(synk): BatchNorm2d is folded in eval mode (running_mean=0,
    # running_var=1); training-mode batch statistics would need a cross-batch
    # reduction pass.
    def bn_fold(c, conv_bias):
        gamma = 1.0 + w((1, c))
        beta = w((1, c))
        mean = jnp.zeros((1, c), jnp.float32)
        var = jnp.ones((1, c), jnp.float32)
        scale = gamma / jnp.sqrt(var + eps)
        shift = beta + (conv_bias - mean) * scale
        return scale, shift

    bp1 = w((1, Hp))
    ba1 = w((1, H4))
    s1, t1 = bn_fold(Hp, bp1)
    s2, t2 = bn_fold(H4, ba1)

    return {
        "wq": w((3, D)), "bq": w((1, D)),
        "wk": w((C, D)), "bk": w((1, D)),
        "wv": w((C, D)), "bv": w((1, D)),
        "wp1": w((D, Hp)), "s1": s1, "t1": t1,
        "wp2": w((Hp, D)), "bp2": w((1, D)),
        "wa1": w((D, H4)), "s2": s2, "t2": t2,
        "wa2": w((H4, D)), "ba2": w((1, D)),
        "we": w((D, D)), "be": w((1, D)),
    }


# ----------------------------------------------------------------------------
# Pure-JAX reference (HIGHEST precision) for a sanity check
# ----------------------------------------------------------------------------
def reference_forward(key, values, pos, params):
    P = lax.Precision.HIGHEST
    key_cl = jnp.transpose(key, (0, 2, 3, 1))             # (B, n, k, C)
    val_cl = jnp.transpose(values, (0, 2, 3, 1))
    pos_cl = jnp.transpose(pos, (0, 2, 1))                 # (B, n, 3)

    def pw(x, w, b):
        return jnp.einsum("...c,cd->...d", x, w, precision=P) + b

    q = pw(pos_cl, params["wq"], params["bq"])             # (B, n, D)
    keyf = pw(key_cl, params["wk"], params["bk"])          # (B, n, k, D)
    valf = pw(val_cl, params["wv"], params["bv"])

    ph = jnp.maximum(pw(q, params["wp1"], 0.0) * params["s1"] + params["t1"], 0.0)
    pos_emb = pw(ph, params["wp2"], params["bp2"])         # (B, n, D)

    pe = pos_emb[:, :, None, :]
    attn_in = (q[:, :, None, :] - keyf) * pe + pe          # (B, n, k, D)
    h = jnp.maximum(pw(attn_in, params["wa1"], 0.0) * params["s2"] + params["t2"], 0.0)
    attn = pw(h, params["wa2"], params["ba2"])             # (B, n, k, D)
    attn = jax.nn.softmax(attn, axis=2)                    # softmax over k
    agg = jnp.sum(attn * (valf + pe), axis=2)              # (B, n, D)
    y = pw(agg, params["we"], params["be"])                # (B, n, D)
    return jnp.transpose(y, (0, 2, 1))                     # (B, D, n)


# ----------------------------------------------------------------------------
if __name__ == "__main__":
    B, C, N, K = 2, 16, 128, 8          # batch, in_channel, n points, n_knn
    D, Hp, mult = 128, 32, 4            # dim, pos_hidden_dim, attn_hidden_multiplier

    root = jax.random.PRNGKey(0)
    kp, kd = jax.random.split(root)
    params = init_params(kp, C, D, Hp, mult)

    k1, k2, k3 = jax.random.split(kd, 3)
    key_feat = jax.random.normal(k1, (B, C, N, K), jnp.float32)
    val_feat = jax.random.normal(k2, (B, C, N, K), jnp.float32)
    pos = jax.random.normal(k3, (B, 3, N), jnp.float32)

    out = jax.block_until_ready(
        attention_forward(key_feat, val_feat, pos, params, tn=32))
    assert out.shape == (B, D, N), out.shape

    ref = jax.block_until_ready(reference_forward(key_feat, val_feat, pos, params))
    max_err = float(jnp.max(jnp.abs(out - ref)))
    assert jnp.allclose(out, ref, rtol=3e-2, atol=3e-2), max_err

    print("KERNEL_OK")
</pallas_src>

<mosaic_0001>
module attributes {stable_mosaic.version = 11 : i64} {
  func.func @_attention_kernel(%arg0: i32, %arg1: i32, %arg2: memref<1x256x16xf32, #tpu.memory_space<vmem>>, %arg3: memref<1x256x16xf32, #tpu.memory_space<vmem>>, %arg4: memref<1x32x3xf32, #tpu.memory_space<vmem>>, %arg5: memref<3x128xf32, #tpu.memory_space<vmem>>, %arg6: memref<1x128xf32, #tpu.memory_space<vmem>>, %arg7: memref<16x128xbf16, #tpu.memory_space<vmem>>, %arg8: memref<1x128xf32, #tpu.memory_space<vmem>>, %arg9: memref<16x128xbf16, #tpu.memory_space<vmem>>, %arg10: memref<1x128xf32, #tpu.memory_space<vmem>>, %arg11: memref<128x32xbf16, #tpu.memory_space<vmem>>, %arg12: memref<1x32xf32, #tpu.memory_space<vmem>>, %arg13: memref<1x32xf32, #tpu.memory_space<vmem>>, %arg14: memref<32x128xbf16, #tpu.memory_space<vmem>>, %arg15: memref<1x128xf32, #tpu.memory_space<vmem>>, %arg16: memref<128x512xbf16, #tpu.memory_space<vmem>>, %arg17: memref<1x512xf32, #tpu.memory_space<vmem>>, %arg18: memref<1x512xf32, #tpu.memory_space<vmem>>, %arg19: memref<512x128xbf16, #tpu.memory_space<vmem>>, %arg20: memref<1x128xf32, #tpu.memory_space<vmem>>, %arg21: memref<128x128xbf16, #tpu.memory_space<vmem>>, %arg22: memref<1x128xf32, #tpu.memory_space<vmem>>, %arg23: memref<1x32x128xf32, #tpu.memory_space<vmem>>) attributes {dimension_semantics = [#tpu.dimension_semantics<parallel>, #tpu.dimension_semantics<parallel>], iteration_bounds = array<i64: 2, 4>, scalar_prefetch = 0 : i64, scratch_operands = 0 : i64, tpu.core_type = #tpu.core_type<tc>, window_params = [{transform_indices = @transform_0, window_bounds = array<i64: 1, 256, 16>}, {transform_indices = @transform_1, window_bounds = array<i64: 1, 256, 16>}, {transform_indices = @transform_2, window_bounds = array<i64: 1, 32, 3>}, {pipeline_mode = #tpu.pipeline_mode<synchronous>, transform_indices = @transform_3, window_bounds = array<i64: 3, 128>}, {pipeline_mode = #tpu.pipeline_mode<synchronous>, transform_indices = @transform_4, window_bounds = array<i64: 1, 128>}, {pipeline_mode = #tpu.pipeline_mode<synchronous>, transform_indices = @transform_5, window_bounds = array<i64: 16, 128>}, {pipeline_mode = #tpu.pipeline_mode<synchronous>, transform_indices = @transform_6, window_bounds = array<i64: 1, 128>}, {pipeline_mode = #tpu.pipeline_mode<synchronous>, transform_indices = @transform_7, window_bounds = array<i64: 16, 128>}, {pipeline_mode = #tpu.pipeline_mode<synchronous>, transform_indices = @transform_8, window_bounds = array<i64: 1, 128>}, {pipeline_mode = #tpu.pipeline_mode<synchronous>, transform_indices = @transform_9, window_bounds = array<i64: 128, 32>}, {pipeline_mode = #tpu.pipeline_mode<synchronous>, transform_indices = @transform_10, window_bounds = array<i64: 1, 32>}, {pipeline_mode = #tpu.pipeline_mode<synchronous>, transform_indices = @transform_11, window_bounds = array<i64: 1, 32>}, {pipeline_mode = #tpu.pipeline_mode<synchronous>, transform_indices = @transform_12, window_bounds = array<i64: 32, 128>}, {pipeline_mode = #tpu.pipeline_mode<synchronous>, transform_indices = @transform_13, window_bounds = array<i64: 1, 128>}, {pipeline_mode = #tpu.pipeline_mode<synchronous>, transform_indices = @transform_14, window_bounds = array<i64: 128, 512>}, {pipeline_mode = #tpu.pipeline_mode<synchronous>, transform_indices = @transform_15, window_bounds = array<i64: 1, 512>}, {pipeline_mode = #tpu.pipeline_mode<synchronous>, transform_indices = @transform_16, window_bounds = array<i64: 1, 512>}, {pipeline_mode = #tpu.pipeline_mode<synchronous>, transform_indices = @transform_17, window_bounds = array<i64: 512, 128>}, {pipeline_mode = #tpu.pipeline_mode<synchronous>, transform_indices = @transform_18, window_bounds = array<i64: 1, 128>}, {pipeline_mode = #tpu.pipeline_mode<synchronous>, transform_indices = @transform_19, window_bounds = array<i64: 128, 128>}, {pipeline_mode = #tpu.pipeline_mode<synchronous>, transform_indices = @transform_20, window_bounds = array<i64: 1, 128>}, {transform_indices = @transform_21, window_bounds = array<i64: 1, 32, 128>}]} {
    %c0 = arith.constant 0 : index
    %c0_0 = arith.constant 0 : index
    %c0_1 = arith.constant 0 : index
    %0 = vector.load %arg2[%c0, %c0_0, %c0_1] : memref<1x256x16xf32, #tpu.memory_space<vmem>>, vector<1x256x16xf32>
    %1 = vector.shape_cast %0 : vector<1x256x16xf32> to vector<256x16xf32>
    %c0_2 = arith.constant 0 : index
    %c0_3 = arith.constant 0 : index
    %c0_4 = arith.constant 0 : index
    %2 = vector.load %arg3[%c0_2, %c0_3, %c0_4] : memref<1x256x16xf32, #tpu.memory_space<vmem>>, vector<1x256x16xf32>
    %3 = vector.shape_cast %2 : vector<1x256x16xf32> to vector<256x16xf32>
    %c0_5 = arith.constant 0 : index
    %c0_6 = arith.constant 0 : index
    %c0_7 = arith.constant 0 : index
    %4 = vector.load %arg4[%c0_5, %c0_6, %c0_7] : memref<1x32x3xf32, #tpu.memory_space<vmem>>, vector<1x32x3xf32>
    %5 = vector.shape_cast %4 : vector<1x32x3xf32> to vector<32x3xf32>
    %c0_8 = arith.constant 0 : index
    %c0_9 = arith.constant 0 : index
    %6 = vector.load %arg5[%c0_8, %c0_9] : memref<3x128xf32, #tpu.memory_space<vmem>>, vector<3x128xf32>
    %7 = vector.extract_strided_slice %5 {offsets = [0, 0], sizes = [32, 1], strides = [1, 1]} : vector<32x3xf32> to vector<32x1xf32>
    %8 = vector.extract_strided_slice %6 {offsets = [0, 0], sizes = [1, 128], strides = [1, 1]} : vector<3x128xf32> to vector<1x128xf32>
    %9 = vector.broadcast %7 : vector<32x1xf32> to vector<32x128xf32>
    %10 = vector.broadcast %8 : vector<1x128xf32> to vector<32x128xf32>
    %11 = arith.mulf %9, %10 : vector<32x128xf32>
    %12 = vector.extract_strided_slice %5 {offsets = [0, 1], sizes = [32, 1], strides = [1, 1]} : vector<32x3xf32> to vector<32x1xf32>
    %13 = vector.extract_strided_slice %6 {offsets = [1, 0], sizes = [1, 128], strides = [1, 1]} : vector<3x128xf32> to vector<1x128xf32>
    %14 = vector.broadcast %12 : vector<32x1xf32> to vector<32x128xf32>
    %15 = vector.broadcast %13 : vector<1x128xf32> to vector<32x128xf32>
    %16 = arith.mulf %14, %15 : vector<32x128xf32>
    %17 = arith.addf %11, %16 : vector<32x128xf32>
    %18 = vector.extract_strided_slice %5 {offsets = [0, 2], sizes = [32, 1], strides = [1, 1]} : vector<32x3xf32> to vector<32x1xf32>
    %19 = vector.extract_strided_slice %6 {offsets = [2, 0], sizes = [1, 128], strides = [1, 1]} : vector<3x128xf32> to vector<1x128xf32>
    %20 = vector.broadcast %18 : vector<32x1xf32> to vector<32x128xf32>
    %21 = vector.broadcast %19 : vector<1x128xf32> to vector<32x128xf32>
    %22 = arith.mulf %20, %21 : vector<32x128xf32>
    %23 = arith.addf %17, %22 : vector<32x128xf32>
    %c0_10 = arith.constant 0 : index
    %c0_11 = arith.constant 0 : index
    %24 = vector.load %arg6[%c0_10, %c0_11] : memref<1x128xf32, #tpu.memory_space<vmem>>, vector<1x128xf32>
    %25 = vector.broadcast %24 : vector<1x128xf32> to vector<32x128xf32>
    %26 = arith.addf %23, %25 : vector<32x128xf32>
    %27 = arith.truncf %1 : vector<256x16xf32> to vector<256x16xbf16>
    %c0_12 = arith.constant 0 : index
    %c0_13 = arith.constant 0 : index
    %28 = vector.load %arg7[%c0_12, %c0_13] : memref<16x128xbf16, #tpu.memory_space<vmem>>, vector<16x128xbf16>
    %cst = arith.constant dense<0.000000e+00> : vector<256x128xf32>
    %29 = tpu.matmul %27, %28, %cst {dimension_numbers = #tpu.dot_dimension_numbers<[1], [0], [0], [1], [0, 0, 1, 1], [], []>} : vector<256x16xbf16>, vector<16x128xbf16>, vector<256x128xf32> -> vector<256x128xf32>
    %c0_14 = arith.constant 0 : index
    %c0_15 = arith.constant 0 : index
    %30 = vector.load %arg8[%c0_14, %c0_15] : memref<1x128xf32, #tpu.memory_space<vmem>>, vector<1x128xf32>
    %31 = vector.broadcast %30 : vector<1x128xf32> to vector<256x128xf32>
    %32 = arith.addf %29, %31 : vector<256x128xf32>
    %33 = vector.shape_cast %32 : vector<256x128xf32> to vector<32x8x128xf32>
    %34 = arith.truncf %3 : vector<256x16xf32> to vector<256x16xbf16>
    %c0_16 = arith.constant 0 : index
    %c0_17 = arith.constant 0 : index
    %35 = vector.load %arg9[%c0_16, %c0_17] : memref<16x128xbf16, #tpu.memory_space<vmem>>, vector<16x128xbf16>
    %cst_18 = arith.constant dense<0.000000e+00> : vector<256x128xf32>
    %36 = tpu.matmul %34, %35, %cst_18 {dimension_numbers = #tpu.dot_dimension_numbers<[1], [0], [0], [1], [0, 0, 1, 1], [], []>} : vector<256x16xbf16>, vector<16x128xbf16>, vector<256x128xf32> -> vector<256x128xf32>
    %c0_19 = arith.constant 0 : index
    %c0_20 = arith.constant 0 : index
    %37 = vector.load %arg10[%c0_19, %c0_20] : memref<1x128xf32, #tpu.memory_space<vmem>>, vector<1x128xf32>
    %38 = vector.broadcast %37 : vector<1x128xf32> to vector<256x128xf32>
    %39 = arith.addf %36, %38 : vector<256x128xf32>
    %40 = vector.shape_cast %39 : vector<256x128xf32> to vector<32x8x128xf32>
    %41 = arith.truncf %26 : vector<32x128xf32> to vector<32x128xbf16>
    %c0_21 = arith.constant 0 : index
    %c0_22 = arith.constant 0 : index
    %42 = vector.load %arg11[%c0_21, %c0_22] : memref<128x32xbf16, #tpu.memory_space<vmem>>, vector<128x32xbf16>
    %cst_23 = arith.constant dense<0.000000e+00> : vector<32x32xf32>
    %43 = tpu.matmul %41, %42, %cst_23 {dimension_numbers = #tpu.dot_dimension_numbers<[1], [0], [0], [1], [0, 0, 1, 1], [], []>} : vector<32x128xbf16>, vector<128x32xbf16>, vector<32x32xf32> -> vector<32x32xf32>
    %c0_24 = arith.constant 0 : index
    %c0_25 = arith.constant 0 : index
    %44 = vector.load %arg12[%c0_24, %c0_25] : memref<1x32xf32, #tpu.memory_space<vmem>>, vector<1x32xf32>
    %45 = vector.broadcast %44 : vector<1x32xf32> to vector<32x32xf32>
    %46 = arith.mulf %43, %45 : vector<32x32xf32>
    %c0_26 = arith.constant 0 : index
    %c0_27 = arith.constant 0 : index
    %47 = vector.load %arg13[%c0_26, %c0_27] : memref<1x32xf32, #tpu.memory_space<vmem>>, vector<1x32xf32>
    %48 = vector.broadcast %47 : vector<1x32xf32> to vector<32x32xf32>
    %49 = arith.addf %46, %48 : vector<32x32xf32>
    %cst_28 = arith.constant 0.000000e+00 : f32
    %50 = vector.broadcast %cst_28 : f32 to vector<32x32xf32>
    %51 = arith.maximumf %49, %50 : vector<32x32xf32>
    %52 = arith.truncf %51 : vector<32x32xf32> to vector<32x32xbf16>
    %c0_29 = arith.constant 0 : index
    %c0_30 = arith.constant 0 : index
    %53 = vector.load %arg14[%c0_29, %c0_30] : memref<32x128xbf16, #tpu.memory_space<vmem>>, vector<32x128xbf16>
    %cst_31 = arith.constant dense<0.000000e+00> : vector<32x128xf32>
    %54 = tpu.matmul %52, %53, %cst_31 {dimension_numbers = #tpu.dot_dimension_numbers<[1], [0], [0], [1], [0, 0, 1, 1], [], []>} : vector<32x32xbf16>, vector<32x128xbf16>, vector<32x128xf32> -> vector<32x128xf32>
    %c0_32 = arith.constant 0 : index
    %c0_33 = arith.constant 0 : index
    %55 = vector.load %arg15[%c0_32, %c0_33] : memref<1x128xf32, #tpu.memory_space<vmem>>, vector<1x128xf32>
    %56 = vector.broadcast %55 : vector<1x128xf32> to vector<32x128xf32>
    %57 = arith.addf %54, %56 : vector<32x128xf32>
    %58 = vector.shape_cast %57 : vector<32x128xf32> to vector<32x1x128xf32>
    %cst_34 = arith.constant 1.000000e+00 : f32
    %59 = vector.broadcast %cst_34 : f32 to vector<32x128xf32>
    %60 = arith.addf %26, %59 : vector<32x128xf32>
    %61 = vector.shape_cast %60 : vector<32x128xf32> to vector<32x1x128xf32>
    %62 = vector.broadcast %61 : vector<32x1x128xf32> to vector<32x8x128xf32>
    %63 = arith.subf %62, %33 : vector<32x8x128xf32>
    %64 = vector.broadcast %58 : vector<32x1x128xf32> to vector<32x8x128xf32>
    %65 = arith.mulf %63, %64 : vector<32x8x128xf32>
    %66 = vector.shape_cast %65 : vector<32x8x128xf32> to vector<256x128xf32>
    %67 = arith.truncf %66 : vector<256x128xf32> to vector<256x128xbf16>
    %c0_35 = arith.constant 0 : index
    %c0_36 = arith.constant 0 : index
    %68 = vector.load %arg16[%c0_35, %c0_36] : memref<128x512xbf16, #tpu.memory_space<vmem>>, vector<128x512xbf16>
    %cst_37 = arith.constant dense<0.000000e+00> : vector<256x512xf32>
    %69 = tpu.matmul %67, %68, %cst_37 {dimension_numbers = #tpu.dot_dimension_numbers<[1], [0], [0], [1], [0, 0, 1, 1], [], []>} : vector<256x128xbf16>, vector<128x512xbf16>, vector<256x512xf32> -> vector<256x512xf32>
    %c0_38 = arith.constant 0 : index
    %c0_39 = arith.constant 0 : index
    %70 = vector.load %arg17[%c0_38, %c0_39] : memref<1x512xf32, #tpu.memory_space<vmem>>, vector<1x512xf32>
    %71 = vector.broadcast %70 : vector<1x512xf32> to vector<256x512xf32>
    %72 = arith.mulf %69, %71 : vector<256x512xf32>
    %c0_40 = arith.constant 0 : index
    %c0_41 = arith.constant 0 : index
    %73 = vector.load %arg18[%c0_40, %c0_41] : memref<1x512xf32, #tpu.memory_space<vmem>>, vector<1x512xf32>
    %74 = vector.broadcast %73 : vector<1x512xf32> to vector<256x512xf32>
    %75 = arith.addf %72, %74 : vector<256x512xf32>
    %cst_42 = arith.constant 0.000000e+00 : f32
    %76 = vector.broadcast %cst_42 : f32 to vector<256x512xf32>
    %77 = arith.maximumf %75, %76 : vector<256x512xf32>
    %78 = arith.truncf %77 : vector<256x512xf32> to vector<256x512xbf16>
    %c0_43 = arith.constant 0 : index
    %c0_44 = arith.constant 0 : index
    %79 = vector.load %arg19[%c0_43, %c0_44] : memref<512x128xbf16, #tpu.memory_space<vmem>>, vector<512x128xbf16>
    %cst_45 = arith.constant dense<0.000000e+00> : vector<256x128xf32>
    %80 = tpu.matmul %78, %79, %cst_45 {dimension_numbers = #tpu.dot_dimension_numbers<[1], [0], [0], [1], [0, 0, 1, 1], [], []>} : vector<256x512xbf16>, vector<512x128xbf16>, vector<256x128xf32> -> vector<256x128xf32>
    %c0_46 = arith.constant 0 : index
    %c0_47 = arith.constant 0 : index
    %81 = vector.load %arg20[%c0_46, %c0_47] : memref<1x128xf32, #tpu.memory_space<vmem>>, vector<1x128xf32>
    %82 = vector.broadcast %81 : vector<1x128xf32> to vector<256x128xf32>
    %83 = arith.addf %80, %82 : vector<256x128xf32>
    %84 = vector.shape_cast %83 : vector<256x128xf32> to vector<32x8x128xf32>
    %cst_48 = arith.constant dense<0xFF800000> : vector<32x128xf32>
    %85 = vector.multi_reduction <maximumf>, %84, %cst_48 [1] : vector<32x8x128xf32> to vector<32x128xf32>
    %86 = vector.shape_cast %85 : vector<32x128xf32> to vector<32x1x128xf32>
    %87 = vector.broadcast %86 : vector<32x1x128xf32> to vector<32x8x128xf32>
    %88 = arith.subf %84, %87 : vector<32x8x128xf32>
    %89 = math.exp %88 : vector<32x8x128xf32>
    %cst_49 = arith.constant dense<0.000000e+00> : vector<32x128xf32>
    %90 = vector.multi_reduction <add>, %89, %cst_49 [1] : vector<32x8x128xf32> to vector<32x128xf32>
    %91 = vector.shape_cast %90 : vector<32x128xf32> to vector<32x1x128xf32>
    %92 = tpu.reciprocal %91 {approx = true} : vector<32x1x128xf32> -> vector<32x1x128xf32>
    %93 = vector.broadcast %92 : vector<32x1x128xf32> to vector<32x8x128xf32>
    %94 = arith.mulf %89, %93 : vector<32x8x128xf32>
    %95 = vector.broadcast %58 : vector<32x1x128xf32> to vector<32x8x128xf32>
    %96 = arith.addf %40, %95 : vector<32x8x128xf32>
    %97 = arith.mulf %94, %96 : vector<32x8x128xf32>
    %cst_50 = arith.constant dense<0.000000e+00> : vector<32x128xf32>
    %98 = vector.multi_reduction <add>, %97, %cst_50 [1] : vector<32x8x128xf32> to vector<32x128xf32>
    %99 = arith.truncf %98 : vector<32x128xf32> to vector<32x128xbf16>
    %c0_51 = arith.constant 0 : index
    %c0_52 = arith.constant 0 : index
    %100 = vector.load %arg21[%c0_51, %c0_52] : memref<128x128xbf16, #tpu.memory_space<vmem>>, vector<128x128xbf16>
    %cst_53 = arith.constant dense<0.000000e+00> : vector<32x128xf32>
    %101 = tpu.matmul %99, %100, %cst_53 {dimension_numbers = #tpu.dot_dimension_numbers<[1], [0], [0], [1], [0, 0, 1, 1], [], []>} : vector<32x128xbf16>, vector<128x128xbf16>, vector<32x128xf32> -> vector<32x128xf32>
    %c0_54 = arith.constant 0 : index
    %c0_55 = arith.constant 0 : index
    %102 = vector.load %arg22[%c0_54, %c0_55] : memref<1x128xf32, #tpu.memory_space<vmem>>, vector<1x128xf32>
    %103 = vector.broadcast %102 : vector<1x128xf32> to vector<32x128xf32>
    %104 = arith.addf %101, %103 : vector<32x128xf32>
    %c0_56 = arith.constant 0 : index
    %c0_57 = arith.constant 0 : index
    %c0_58 = arith.constant 0 : index
    %105 = vector.load %arg23[%c0_56, %c0_57, %c0_58] : memref<1x32x128xf32, #tpu.memory_space<vmem>>, vector<1x32x128xf32>
    %106 = vector.shape_cast %105 : vector<1x32x128xf32> to vector<32x128xf32>
    %107 = vector.shape_cast %104 : vector<32x128xf32> to vector<1x32x128xf32>
    tpu.vector_store %arg23[%c0_56, %c0_57, %c0_58], %107 {strides = array<i32>} : memref<1x32x128xf32, #tpu.memory_space<vmem>>, vector<1x32x128xf32>,
    return
  }
  func.func @transform_0(%arg0: i32, %arg1: i32) -> (i32, i32, i32) {
    %c0_i32 = arith.constant 0 : i32
    %c0_i32_0 = arith.constant 0 : i32
    return %arg0, %arg1, %c0_i32 : i32, i32, i32
  }
  func.func @transform_1(%arg0: i32, %arg1: i32) -> (i32, i32, i32) {
    %c0_i32 = arith.constant 0 : i32
    %c0_i32_0 = arith.constant 0 : i32
    return %arg0, %arg1, %c0_i32 : i32, i32, i32
  }
  func.func @transform_2(%arg0: i32, %arg1: i32) -> (i32, i32, i32) {
    %c0_i32 = arith.constant 0 : i32
    %c0_i32_0 = arith.constant 0 : i32
    return %arg0, %arg1, %c0_i32 : i32, i32, i32
  }
  func.func @transform_3(%arg0: i32, %arg1: i32) -> (i32, i32) {
    %c0_i32 = arith.constant 0 : i32
    %c0_i32_0 = arith.constant 0 : i32
    %c0_i32_1 = arith.constant 0 : i32
    return %c0_i32, %c0_i32_0 : i32, i32
  }
  func.func @transform_4(%arg0: i32, %arg1: i32) -> (i32, i32) {
    %c0_i32 = arith.constant 0 : i32
    %c0_i32_0 = arith.constant 0 : i32
    %c0_i32_1 = arith.constant 0 : i32
    return %c0_i32, %c0_i32_0 : i32, i32
  }
  func.func @transform_5(%arg0: i32, %arg1: i32) -> (i32, i32) {
    %c0_i32 = arith.constant 0 : i32
    %c0_i32_0 = arith.constant 0 : i32
    %c0_i32_1 = arith.constant 0 : i32
    return %c0_i32, %c0_i32_0 : i32, i32
  }
  func.func @transform_6(%arg0: i32, %arg1: i32) -> (i32, i32) {
    %c0_i32 = arith.constant 0 : i32
    %c0_i32_0 = arith.constant 0 : i32
    %c0_i32_1 = arith.constant 0 : i32
    return %c0_i32, %c0_i32_0 : i32, i32
  }
  func.func @transform_7(%arg0: i32, %arg1: i32) -> (i32, i32) {
    %c0_i32 = arith.constant 0 : i32
    %c0_i32_0 = arith.constant 0 : i32
    %c0_i32_1 = arith.constant 0 : i32
    return %c0_i32, %c0_i32_0 : i32, i32
  }
  func.func @transform_8(%arg0: i32, %arg1: i32) -> (i32, i32) {
    %c0_i32 = arith.constant 0 : i32
    %c0_i32_0 = arith.constant 0 : i32
    %c0_i32_1 = arith.constant 0 : i32
    return %c0_i32, %c0_i32_0 : i32, i32
  }
  func.func @transform_9(%arg0: i32, %arg1: i32) -> (i32, i32) {
    %c0_i32 = arith.constant 0 : i32
    %c0_i32_0 = arith.constant 0 : i32
    %c0_i32_1 = arith.constant 0 : i32
    return %c0_i32, %c0_i32_0 : i32, i32
  }
  func.func @transform_10(%arg0: i32, %arg1: i32) -> (i32, i32) {
    %c0_i32 = arith.constant 0 : i32
    %c0_i32_0 = arith.constant 0 : i32
    %c0_i32_1 = arith.constant 0 : i32
    return %c0_i32, %c0_i32_0 : i32, i32
  }
  func.func @transform_11(%arg0: i32, %arg1: i32) -> (i32, i32) {
    %c0_i32 = arith.constant 0 : i32
    %c0_i32_0 = arith.constant 0 : i32
    %c0_i32_1 = arith.constant 0 : i32
    return %c0_i32, %c0_i32_0 : i32, i32
  }
  func.func @transform_12(%arg0: i32, %arg1: i32) -> (i32, i32) {
    %c0_i32 = arith.constant 0 : i32
    %c0_i32_0 = arith.constant 0 : i32
    %c0_i32_1 = arith.constant 0 : i32
    return %c0_i32, %c0_i32_0 : i32, i32
  }
  func.func @transform_13(%arg0: i32, %arg1: i32) -> (i32, i32) {
    %c0_i32 = arith.constant 0 : i32
    %c0_i32_0 = arith.constant 0 : i32
    %c0_i32_1 = arith.constant 0 : i32
    return %c0_i32, %c0_i32_0 : i32, i32
  }
  func.func @transform_14(%arg0: i32, %arg1: i32) -> (i32, i32) {
    %c0_i32 = arith.constant 0 : i32
    %c0_i32_0 = arith.constant 0 : i32
    %c0_i32_1 = arith.constant 0 : i32
    return %c0_i32, %c0_i32_0 : i32, i32
  }
  func.func @transform_15(%arg0: i32, %arg1: i32) -> (i32, i32) {
    %c0_i32 = arith.constant 0 : i32
    %c0_i32_0 = arith.constant 0 : i32
    %c0_i32_1 = arith.constant 0 : i32
    return %c0_i32, %c0_i32_0 : i32, i32
  }
  func.func @transform_16(%arg0: i32, %arg1: i32) -> (i32, i32) {
    %c0_i32 = arith.constant 0 : i32
    %c0_i32_0 = arith.constant 0 : i32
    %c0_i32_1 = arith.constant 0 : i32
    return %c0_i32, %c0_i32_0 : i32, i32
  }
  func.func @transform_17(%arg0: i32, %arg1: i32) -> (i32, i32) {
    %c0_i32 = arith.constant 0 : i32
    %c0_i32_0 = arith.constant 0 : i32
    %c0_i32_1 = arith.constant 0 : i32
    return %c0_i32, %c0_i32_0 : i32, i32
  }
  func.func @transform_18(%arg0: i32, %arg1: i32) -> (i32, i32) {
    %c0_i32 = arith.constant 0 : i32
    %c0_i32_0 = arith.constant 0 : i32
    %c0_i32_1 = arith.constant 0 : i32
    return %c0_i32, %c0_i32_0 : i32, i32
  }
  func.func @transform_19(%arg0: i32, %arg1: i32) -> (i32, i32) {
    %c0_i32 = arith.constant 0 : i32
    %c0_i32_0 = arith.constant 0 : i32
    %c0_i32_1 = arith.constant 0 : i32
    return %c0_i32, %c0_i32_0 : i32, i32
  }
  func.func @transform_20(%arg0: i32, %arg1: i32) -> (i32, i32) {
    %c0_i32 = arith.constant 0 : i32
    %c0_i32_0 = arith.constant 0 : i32
    %c0_i32_1 = arith.constant 0 : i32
    return %c0_i32, %c0_i32_0 : i32, i32
  }
  func.func @transform_21(%arg0: i32, %arg1: i32) -> (i32, i32, i32) {
    %c0_i32 = arith.constant 0 : i32
    %c0_i32_0 = arith.constant 0 : i32
    return %arg0, %arg1, %c0_i32 : i32, i32, i32
  }
}

</mosaic_0001>

<llo_original>
// kernel: tpu_custom_call.1
$region0: #{tpu_custom_call.1}
  #allocation0 [shape = 'u32[]', space=smem, size = 0x4, offset = 0x4, fixed_abs, tag = 'smem constant byte address 0x4 - core index']
  #allocation1 [shape = 'u32[144,128]{1,0:T(1,128)}', space=vmem, size = 0x12000, scoped, tag = 'internal scratch']
  %s0 = inlined_call_operand.vmem [shape: f32[2,1024,16], index: 0, kind: input, shape index: {}]
  %s1 = inlined_call_operand.vmem [shape: f32[2,1024,16], index: 1, kind: input, shape index: {}]
  %s2 = inlined_call_operand.vmem [shape: f32[2,128,3], index: 2, kind: input, shape index: {}]
  %s3 = inlined_call_operand.vmem [shape: f32[3,128], index: 3, kind: input, shape index: {}]
  %s4 = inlined_call_operand.vmem [shape: f32[1,128], index: 4, kind: input, shape index: {}]
  %s5 = inlined_call_operand.vmem [shape: bf16[16,128], index: 5, kind: input, shape index: {}]
  %s6 = inlined_call_operand.vmem [shape: f32[1,128], index: 6, kind: input, shape index: {}]
  %s7 = inlined_call_operand.vmem [shape: bf16[16,128], index: 7, kind: input, shape index: {}]
  %s8 = inlined_call_operand.vmem [shape: f32[1,128], index: 8, kind: input, shape index: {}]
  %s9 = inlined_call_operand.vmem [shape: bf16[128,32], index: 9, kind: input, shape index: {}]
  %s10 = inlined_call_operand.vmem [shape: f32[1,32], index: 10, kind: input, shape index: {}]
  %s11 = inlined_call_operand.vmem [shape: f32[1,32], index: 11, kind: input, shape index: {}]
  %s12 = inlined_call_operand.vmem [shape: bf16[32,128], index: 12, kind: input, shape index: {}]
  %s13 = inlined_call_operand.vmem [shape: f32[1,128], index: 13, kind: input, shape index: {}]
  %s14 = inlined_call_operand.vmem [shape: bf16[128,512], index: 14, kind: input, shape index: {}]
  %s15 = inlined_call_operand.vmem [shape: f32[1,512], index: 15, kind: input, shape index: {}]
  %s16 = inlined_call_operand.vmem [shape: f32[1,512], index: 16, kind: input, shape index: {}]
  %s17 = inlined_call_operand.vmem [shape: bf16[512,128], index: 17, kind: input, shape index: {}]
  %s18 = inlined_call_operand.vmem [shape: f32[1,128], index: 18, kind: input, shape index: {}]
  %s19 = inlined_call_operand.vmem [shape: bf16[128,128], index: 19, kind: input, shape index: {}]
  %s20 = inlined_call_operand.vmem [shape: f32[1,128], index: 20, kind: input, shape index: {}]
  %s21 = inlined_call_operand.hbm [shape: f32[2,128,128], index: 21, kind: output, shape index: {}]
  %s22 = sld [smem:[#allocation0]]
  $region117: #{tpu_custom_call.1} parent=0
    _
  %s24 = ssub.s32 1, %s22
  %s25 = scalar_select 0, %s24, %s22
  $region1: #{tpu_custom_call.1} parent=0
    #allocation2 [shape = 'u8[32768]{0}', space=vmem, size = 0x8000, scoped, tag = 'output window, operand 0']
    #allocation3 [shape = 's32[2]{0}', space=sflag, size = 0x8, scoped, tag = 'scoped memory for tpu_custom_call.1']
    %26 = vsyncpa [#allocation3], 0
    %s27 = scalar_lea.sflag [#allocation3], 1
    %28 = vsyncpa %s27, 0
    loop: start=0, step=1, limit=10
    $region2: #{tpu_custom_call.1} parent=1 // loop_pre_header
      _
    $region3: #{tpu_custom_call.1} parent=1 // loop_header
      %s30 = sphi 0, %s34
      %p31 = scmp.ge.s32.totalorder %s30, 10
      %s37 = sphi 0, %s49
      %s38 = sphi 0, %s45
      %s39 = sphi 0, %s37
      %s40 = sphi 0, %s38
      %s41 = sphi 0, %s39
      %s42 = sphi 0, %s40
      %s54 = sphi 0, %s56
      %s57 = sphi 0, %s54
      %s58 = sphi 0, %s57
      %s74 = sphi 0, %s58
      %s82 = sphi 0, %s84
      %s85 = sphi 0, %s82
      %s86 = sphi 0, %s85
      %s102 = sphi 0, %s86
      %s110 = sphi 0, %s112
      %s113 = sphi 0, %s110
      %s114 = sphi 0, %s113
      %s130 = sphi 0, %s114
      %s134 = sphi 0, %s134
      %s136 = sphi 0, %s134
      %s137 = sphi 0, %s136
      %s151 = sphi 0, %s137
      %s155 = sphi 0, %s155
      %s157 = sphi 0, %s155
      %s158 = sphi 0, %s157
      %s172 = sphi 0, %s158
      %s176 = sphi 0, %s176
      %s178 = sphi 0, %s176
      %s179 = sphi 0, %s178
      %s193 = sphi 0, %s179
      %s197 = sphi 0, %s197
      %s199 = sphi 0, %s197
      %s200 = sphi 0, %s199
      %s214 = sphi 0, %s200
      %s218 = sphi 0, %s218
      %s220 = sphi 0, %s218
      %s221 = sphi 0, %s220
      %s235 = sphi 0, %s221
      %s239 = sphi 0, %s239
      %s241 = sphi 0, %s239
      %s242 = sphi 0, %s241
      %s256 = sphi 0, %s242
      %s260 = sphi 0, %s260
      %s262 = sphi 0, %s260
      %s263 = sphi 0, %s262
      %s277 = sphi 0, %s263
      %s281 = sphi 0, %s281
      %s283 = sphi 0, %s281
      %s284 = sphi 0, %s283
      %s298 = sphi 0, %s284
      %s302 = sphi 0, %s302
      %s304 = sphi 0, %s302
      %s305 = sphi 0, %s304
      %s319 = sphi 0, %s305
      %s323 = sphi 0, %s323
      %s325 = sphi 0, %s323
      %s326 = sphi 0, %s325
      %s340 = sphi 0, %s326
      %s344 = sphi 0, %s344
      %s346 = sphi 0, %s344
      %s347 = sphi 0, %s346
      %s361 = sphi 0, %s347
      %s365 = sphi 0, %s365
      %s367 = sphi 0, %s365
      %s368 = sphi 0, %s367
      %s382 = sphi 0, %s368
      %s386 = sphi 0, %s386
      %s388 = sphi 0, %s386
      %s389 = sphi 0, %s388
      %s403 = sphi 0, %s389
      %s407 = sphi 0, %s407
      %s409 = sphi 0, %s407
      %s410 = sphi 0, %s409
      %s424 = sphi 0, %s410
      %s428 = sphi 0, %s428
      %s430 = sphi 0, %s428
      %s431 = sphi 0, %s430
      %s445 = sphi 0, %s431
      %s449 = sphi 0, %s449
      %s451 = sphi 0, %s449
      %s452 = sphi 0, %s451
      %s466 = sphi 0, %s452
      %s470 = sphi 0, %s470
      %s472 = sphi 0, %s470
      %s473 = sphi 0, %s472
      %s487 = sphi 0, %s473
      %s491 = sphi 0, %s491
      %s493 = sphi 0, %s491
      %s494 = sphi 0, %s493
      %s508 = sphi 0, %s494
      %s516 = sphi 0, %s518
      %s519 = sphi 0, %s516
      %s520 = sphi 0, %s519
      %s536 = sphi 0, %s520
    $region4: #{tpu_custom_call.1} parent=1 // loop_header_branch
      %33 = sbr.rel (%p31) target = $region8
    $region5: #{tpu_custom_call.1} parent=1 // loop_body
      %s35 = ssub.s32 %s30, 1
      %s36 = ssub.s32 %s30, 2
      %s43 = sadd.s32 1, %s38
      %p44 = scmp.ge.s32.totalorder %s43, 4
      %s45 = scalar_select %p44, 0, %s43
      %s46 = sadd.s32 1, %s37
      %s47 = scalar_select %p44, %s46, %s37
      %p48 = scmp.ge.s32.totalorder %s47, 2
      %s49 = scalar_select %p48, 0, %s47
      %s50 = ssub.s32 %s37, %s49
      %s51 = ssub.s32 %s38, %s45
      %s52 = sor.u32 %s50, %s51
      %p53 = scmp.eq.s32.totalorder %s52, 0
      %s55 = sadd.s32 %s54, 1
      %s56 = scalar_select %p53, %s54, %s55
      %p59 = pneg %p53
      %p60 = scmp.eq.s32.totalorder %s30, 7
      %p61 = por %p59, %p60
      %p62 = scmp.ne.s32.totalorder %s54, %s57
      %p63 = scmp.eq.s32.totalorder %s30, 0
      %p64 = por %p62, %p63
      %p65 = scmp.ne.s32.totalorder %s54, %s57
      %p66 = scmp.eq.s32.totalorder %s35, 7
      %p67 = por %p65, %p66
      %p68 = scmp.ne.s32.totalorder %s57, %s58
      %p69 = scmp.eq.s32.totalorder %s35, 0
      %p70 = por %p68, %p69
      %p71 = scmp.ne.s32.totalorder %s57, %s58
      %p72 = scmp.eq.s32.totalorder %s36, 7
      %p73 = por %p71, %p72
      %p75 = scmp.ne.s32.totalorder %s58, %s74
      %p76 = scmp.eq.s32.totalorder %s36, 0
      %p77 = por %p75, %p76
      %s78 = ssub.s32 %s37, %s49
      %s79 = ssub.s32 %s38, %s45
      %s80 = sor.u32 %s78, %s79
      %p81 = scmp.eq.s32.totalorder %s80, 0
      %s83 = sadd.s32 %s82, 1
      %s84 = scalar_select %p81, %s82, %s83
      %p87 = pneg %p81
      %p88 = scmp.eq.s32.totalorder %s30, 7
      %p89 = por %p87, %p88
      %p90 = scmp.ne.s32.totalorder %s82, %s85
      %p91 = scmp.eq.s32.totalorder %s30, 0
      %p92 = por %p90, %p91
      %p93 = scmp.ne.s32.totalorder %s82, %s85
      %p94 = scmp.eq.s32.totalorder %s35, 7
      %p95 = por %p93, %p94
      %p96 = scmp.ne.s32.totalorder %s85, %s86
      %p97 = scmp.eq.s32.totalorder %s35, 0
      %p98 = por %p96, %p97
      %p99 = scmp.ne.s32.totalorder %s85, %s86
      %p100 = scmp.eq.s32.totalorder %s36, 7
      %p101 = por %p99, %p100
      %p103 = scmp.ne.s32.totalorder %s86, %s102
      %p104 = scmp.eq.s32.totalorder %s36, 0
      %p105 = por %p103, %p104
      %s106 = ssub.s32 %s37, %s49
      %s107 = ssub.s32 %s38, %s45
      %s108 = sor.u32 %s106, %s107
      %p109 = scmp.eq.s32.totalorder %s108, 0
      %s111 = sadd.s32 %s110, 1
      %s112 = scalar_select %p109, %s110, %s111
      %p115 = pneg %p109
      %p116 = scmp.eq.s32.totalorder %s30, 7
      %p117 = por %p115, %p116
      %p118 = scmp.ne.s32.totalorder %s110, %s113
      %p119 = scmp.eq.s32.totalorder %s30, 0
      %p120 = por %p118, %p119
      %p121 = scmp.ne.s32.totalorder %s110, %s113
      %p122 = scmp.eq.s32.totalorder %s35, 7
      %p123 = por %p121, %p122
      %p124 = scmp.ne.s32.totalorder %s113, %s114
      %p125 = scmp.eq.s32.totalorder %s35, 0
      %p126 = por %p124, %p125
      %p127 = scmp.ne.s32.totalorder %s113, %s114
      %p128 = scmp.eq.s32.totalorder %s36, 7
      %p129 = por %p127, %p128
      %p131 = scmp.ne.s32.totalorder %s114, %s130
      %p132 = scmp.eq.s32.totalorder %s36, 0
      %p133 = por %p131, %p132
      %s135 = sadd.s32 %s134, 1
      %p138 = scmp.eq.s32.totalorder %s30, 7
      %p139 = scmp.ne.s32.totalorder %s134, %s136
      %p140 = scmp.eq.s32.totalorder %s30, 0
      %p141 = por %p139, %p140
      %p142 = scmp.ne.s32.totalorder %s134, %s136
      %p143 = scmp.eq.s32.totalorder %s35, 7
      %p144 = por %p142, %p143
      %p145 = scmp.ne.s32.totalorder %s136, %s137
      %p146 = scmp.eq.s32.totalorder %s35, 0
      %p147 = por %p145, %p146
      %p148 = scmp.ne.s32.totalorder %s136, %s137
      %p149 = scmp.eq.s32.totalorder %s36, 7
      %p150 = por %p148, %p149
      %p152 = scmp.ne.s32.totalorder %s137, %s151
      %p153 = scmp.eq.s32.totalorder %s36, 0
      %p154 = por %p152, %p153
      %s156 = sadd.s32 %s155, 1
      %p159 = scmp.eq.s32.totalorder %s30, 7
      %p160 = scmp.ne.s32.totalorder %s155, %s157
      %p161 = scmp.eq.s32.totalorder %s30, 0
      %p162 = por %p160, %p161
      %p163 = scmp.ne.s32.totalorder %s155, %s157
      %p164 = scmp.eq.s32.totalorder %s35, 7
      %p165 = por %p163, %p164
      %p166 = scmp.ne.s32.totalorder %s157, %s158
      %p167 = scmp.eq.s32.totalorder %s35, 0
      %p168 = por %p166, %p167
      %p169 = scmp.ne.s32.totalorder %s157, %s158
      %p170 = scmp.eq.s32.totalorder %s36, 7
      %p171 = por %p169, %p170
      %p173 = scmp.ne.s32.totalorder %s158, %s172
      %p174 = scmp.eq.s32.totalorder %s36, 0
      %p175 = por %p173, %p174
      %s177 = sadd.s32 %s176, 1
      %p180 = scmp.eq.s32.totalorder %s30, 7
      %p181 = scmp.ne.s32.totalorder %s176, %s178
      %p182 = scmp.eq.s32.totalorder %s30, 0
      %p183 = por %p181, %p182
      %p184 = scmp.ne.s32.totalorder %s176, %s178
      %p185 = scmp.eq.s32.totalorder %s35, 7
      %p186 = por %p184, %p185
      %p187 = scmp.ne.s32.totalorder %s178, %s179
      %p188 = scmp.eq.s32.totalorder %s35, 0
      %p189 = por %p187, %p188
      %p190 = scmp.ne.s32.totalorder %s178, %s179
      %p191 = scmp.eq.s32.totalorder %s36, 7
      %p192 = por %p190, %p191
      %p194 = scmp.ne.s32.totalorder %s179, %s193
      %p195 = scmp.eq.s32.totalorder %s36, 0
      %p196 = por %p194, %p195
      %s198 = sadd.s32 %s197, 1
      %p201 = scmp.eq.s32.totalorder %s30, 7
      %p202 = scmp.ne.s32.totalorder %s197, %s199
      %p203 = scmp.eq.s32.totalorder %s30, 0
      %p204 = por %p202, %p203
      %p205 = scmp.ne.s32.totalorder %s197, %s199
      %p206 = scmp.eq.s32.totalorder %s35, 7
      %p207 = por %p205, %p206
      %p208 = scmp.ne.s32.totalorder %s199, %s200
      %p209 = scmp.eq.s32.totalorder %s35, 0
      %p210 = por %p208, %p209
      %p211 = scmp.ne.s32.totalorder %s199, %s200
      %p212 = scmp.eq.s32.totalorder %s36, 7
      %p213 = por %p211, %p212
      %p215 = scmp.ne.s32.totalorder %s200, %s214
      %p216 = scmp.eq.s32.totalorder %s36, 0
      %p217 = por %p215, %p216
      %s219 = sadd.s32 %s218, 1
      %p222 = scmp.eq.s32.totalorder %s30, 7
      %p223 = scmp.ne.s32.totalorder %s218, %s220
      %p224 = scmp.eq.s32.totalorder %s30, 0
      %p225 = por %p223, %p224
      %p226 = scmp.ne.s32.totalorder %s218, %s220
      %p227 = scmp.eq.s32.totalorder %s35, 7
      %p228 = por %p226, %p227
      %p229 = scmp.ne.s32.totalorder %s220, %s221
      %p230 = scmp.eq.s32.totalorder %s35, 0
      %p231 = por %p229, %p230
      %p232 = scmp.ne.s32.totalorder %s220, %s221
      %p233 = scmp.eq.s32.totalorder %s36, 7
      %p234 = por %p232, %p233
      %p236 = scmp.ne.s32.totalorder %s221, %s235
      %p237 = scmp.eq.s32.totalorder %s36, 0
      %p238 = por %p236, %p237
      %s240 = sadd.s32 %s239, 1
      %p243 = scmp.eq.s32.totalorder %s30, 7
      %p244 = scmp.ne.s32.totalorder %s239, %s241
      %p245 = scmp.eq.s32.totalorder %s30, 0
      %p246 = por %p244, %p245
      %p247 = scmp.ne.s32.totalorder %s239, %s241
      %p248 = scmp.eq.s32.totalorder %s35, 7
      %p249 = por %p247, %p248
      %p250 = scmp.ne.s32.totalorder %s241, %s242
      %p251 = scmp.eq.s32.totalorder %s35, 0
      %p252 = por %p250, %p251
      %p253 = scmp.ne.s32.totalorder %s241, %s242
      %p254 = scmp.eq.s32.totalorder %s36, 7
      %p255 = por %p253, %p254
      %p257 = scmp.ne.s32.totalorder %s242, %s256
      %p258 = scmp.eq.s32.totalorder %s36, 0
      %p259 = por %p257, %p258
      %s261 = sadd.s32 %s260, 1
      %p264 = scmp.eq.s32.totalorder %s30, 7
      %p265 = scmp.ne.s32.totalorder %s260, %s262
      %p266 = scmp.eq.s32.totalorder %s30, 0
      %p267 = por %p265, %p266
      %p268 = scmp.ne.s32.totalorder %s260, %s262
      %p269 = scmp.eq.s32.totalorder %s35, 7
      %p270 = por %p268, %p269
      %p271 = scmp.ne.s32.totalorder %s262, %s263
      %p272 = scmp.eq.s32.totalorder %s35, 0
      %p273 = por %p271, %p272
      %p274 = scmp.ne.s32.totalorder %s262, %s263
      %p275 = scmp.eq.s32.totalorder %s36, 7
      %p276 = por %p274, %p275
      %p278 = scmp.ne.s32.totalorder %s263, %s277
      %p279 = scmp.eq.s32.totalorder %s36, 0
      %p280 = por %p278, %p279
      %s282 = sadd.s32 %s281, 1
      %p285 = scmp.eq.s32.totalorder %s30, 7
      %p286 = scmp.ne.s32.totalorder %s281, %s283
      %p287 = scmp.eq.s32.totalorder %s30, 0
      %p288 = por %p286, %p287
      %p289 = scmp.ne.s32.totalorder %s281, %s283
      %p290 = scmp.eq.s32.totalorder %s35, 7
      %p291 = por %p289, %p290
      %p292 = scmp.ne.s32.totalorder %s283, %s284
      %p293 = scmp.eq.s32.totalorder %s35, 0
      %p294 = por %p292, %p293
      %p295 = scmp.ne.s32.totalorder %s283, %s284
      %p296 = scmp.eq.s32.totalorder %s36, 7
      %p297 = por %p295, %p296
      %p299 = scmp.ne.s32.totalorder %s284, %s298
      %p300 = scmp.eq.s32.totalorder %s36, 0
      %p301 = por %p299, %p300
      %s303 = sadd.s32 %s302, 1
      %p306 = scmp.eq.s32.totalorder %s30, 7
      %p307 = scmp.ne.s32.totalorder %s302, %s304
      %p308 = scmp.eq.s32.totalorder %s30, 0
      %p309 = por %p307, %p308
      %p310 = scmp.ne.s32.totalorder %s302, %s304
      %p311 = scmp.eq.s32.totalorder %s35, 7
      %p312 = por %p310, %p311
      %p313 = scmp.ne.s32.totalorder %s304, %s305
      %p314 = scmp.eq.s32.totalorder %s35, 0
      %p315 = por %p313, %p314
      %p316 = scmp.ne.s32.totalorder %s304, %s305
      %p317 = scmp.eq.s32.totalorder %s36, 7
      %p318 = por %p316, %p317
      %p320 = scmp.ne.s32.totalorder %s305, %s319
      %p321 = scmp.eq.s32.totalorder %s36, 0
      %p322 = por %p320, %p321
      %s324 = sadd.s32 %s323, 1
      %p327 = scmp.eq.s32.totalorder %s30, 7
      %p328 = scmp.ne.s32.totalorder %s323, %s325
      %p329 = scmp.eq.s32.totalorder %s30, 0
      %p330 = por %p328, %p329
      %p331 = scmp.ne.s32.totalorder %s323, %s325
      %p332 = scmp.eq.s32.totalorder %s35, 7
      %p333 = por %p331, %p332
      %p334 = scmp.ne.s32.totalorder %s325, %s326
      %p335 = scmp.eq.s32.totalorder %s35, 0
      %p336 = por %p334, %p335
      %p337 = scmp.ne.s32.totalorder %s325, %s326
      %p338 = scmp.eq.s32.totalorder %s36, 7
      %p339 = por %p337, %p338
      %p341 = scmp.ne.s32.totalorder %s326, %s340
      %p342 = scmp.eq.s32.totalorder %s36, 0
      %p343 = por %p341, %p342
      %s345 = sadd.s32 %s344, 1
      %p348 = scmp.eq.s32.totalorder %s30, 7
      %p349 = scmp.ne.s32.totalorder %s344, %s346
      %p350 = scmp.eq.s32.totalorder %s30, 0
      %p351 = por %p349, %p350
      %p352 = scmp.ne.s32.totalorder %s344, %s346
      %p353 = scmp.eq.s32.totalorder %s35, 7
      %p354 = por %p352, %p353
      %p355 = scmp.ne.s32.totalorder %s346, %s347
      %p356 = scmp.eq.s32.totalorder %s35, 0
      %p357 = por %p355, %p356
      %p358 = scmp.ne.s32.totalorder %s346, %s347
      %p359 = scmp.eq.s32.totalorder %s36, 7
      %p360 = por %p358, %p359
      %p362 = scmp.ne.s32.totalorder %s347, %s361
      %p363 = scmp.eq.s32.totalorder %s36, 0
      %p364 = por %p362, %p363
      %s366 = sadd.s32 %s365, 1
      %p369 = scmp.eq.s32.totalorder %s30, 7
      %p370 = scmp.ne.s32.totalorder %s365, %s367
      %p371 = scmp.eq.s32.totalorder %s30, 0
      %p372 = por %p370, %p371
      %p373 = scmp.ne.s32.totalorder %s365, %s367
      %p374 = scmp.eq.s32.totalorder %s35, 7
      %p375 = por %p373, %p374
      %p376 = scmp.ne.s32.totalorder %s367, %s368
      %p377 = scmp.eq.s32.totalorder %s35, 0
      %p378 = por %p376, %p377
      %p379 = scmp.ne.s32.totalorder %s367, %s368
      %p380 = scmp.eq.s32.totalorder %s36, 7
      %p381 = por %p379, %p380
      %p383 = scmp.ne.s32.totalorder %s368, %s382
      %p384 = scmp.eq.s32.totalorder %s36, 0
      %p385 = por %p383, %p384
      %s387 = sadd.s32 %s386, 1
      %p390 = scmp.eq.s32.totalorder %s30, 7
      %p391 = scmp.ne.s32.totalorder %s386, %s388
      %p392 = scmp.eq.s32.totalorder %s30, 0
      %p393 = por %p391, %p392
      %p394 = scmp.ne.s32.totalorder %s386, %s388
      %p395 = scmp.eq.s32.totalorder %s35, 7
      %p396 = por %p394, %p395
      %p397 = scmp.ne.s32.totalorder %s388, %s389
      %p398 = scmp.eq.s32.totalorder %s35, 0
      %p399 = por %p397, %p398
      %p400 = scmp.ne.s32.totalorder %s388, %s389
      %p401 = scmp.eq.s32.totalorder %s36, 7
      %p402 = por %p400, %p401
      %p404 = scmp.ne.s32.totalorder %s389, %s403
      %p405 = scmp.eq.s32.totalorder %s36, 0
      %p406 = por %p404, %p405
      %s408 = sadd.s32 %s407, 1
      %p411 = scmp.eq.s32.totalorder %s30, 7
      %p412 = scmp.ne.s32.totalorder %s407, %s409
      %p413 = scmp.eq.s32.totalorder %s30, 0
      %p414 = por %p412, %p413
      %p415 = scmp.ne.s32.totalorder %s407, %s409
      %p416 = scmp.eq.s32.totalorder %s35, 7
      %p417 = por %p415, %p416
      %p418 = scmp.ne.s32.totalorder %s409, %s410
      %p419 = scmp.eq.s32.totalorder %s35, 0
      %p420 = por %p418, %p419
      %p421 = scmp.ne.s32.totalorder %s409, %s410
      %p422 = scmp.eq.s32.totalorder %s36, 7
      %p423 = por %p421, %p422
      %p425 = scmp.ne.s32.totalorder %s410, %s424
      %p426 = scmp.eq.s32.totalorder %s36, 0
      %p427 = por %p425, %p426
      %s429 = sadd.s32 %s428, 1
      %p432 = scmp.eq.s32.totalorder %s30, 7
      %p433 = scmp.ne.s32.totalorder %s428, %s430
      %p434 = scmp.eq.s32.totalorder %s30, 0
      %p435 = por %p433, %p434
      %p436 = scmp.ne.s32.totalorder %s428, %s430
      %p437 = scmp.eq.s32.totalorder %s35, 7
      %p438 = por %p436, %p437
      %p439 = scmp.ne.s32.totalorder %s430, %s431
      %p440 = scmp.eq.s32.totalorder %s35, 0
      %p441 = por %p439, %p440
      %p442 = scmp.ne.s32.totalorder %s430, %s431
      %p443 = scmp.eq.s32.totalorder %s36, 7
      %p444 = por %p442, %p443
      %p446 = scmp.ne.s32.totalorder %s431, %s445
      %p447 = scmp.eq.s32.totalorder %s36, 0
      %p448 = por %p446, %p447
      %s450 = sadd.s32 %s449, 1
      %p453 = scmp.eq.s32.totalorder %s30, 7
      %p454 = scmp.ne.s32.totalorder %s449, %s451
      %p455 = scmp.eq.s32.totalorder %s30, 0
      %p456 = por %p454, %p455
      %p457 = scmp.ne.s32.totalorder %s449, %s451
      %p458 = scmp.eq.s32.totalorder %s35, 7
      %p459 = por %p457, %p458
      %p460 = scmp.ne.s32.totalorder %s451, %s452
      %p461 = scmp.eq.s32.totalorder %s35, 0
      %p462 = por %p460, %p461
      %p463 = scmp.ne.s32.totalorder %s451, %s452
      %p464 = scmp.eq.s32.totalorder %s36, 7
      %p465 = por %p463, %p464
      %p467 = scmp.ne.s32.totalorder %s452, %s466
      %p468 = scmp.eq.s32.totalorder %s36, 0
      %p469 = por %p467, %p468
      %s471 = sadd.s32 %s470, 1
      %p474 = scmp.eq.s32.totalorder %s30, 7
      %p475 = scmp.ne.s32.totalorder %s470, %s472
      %p476 = scmp.eq.s32.totalorder %s30, 0
      %p477 = por %p475, %p476
      %p478 = scmp.ne.s32.totalorder %s470, %s472
      %p479 = scmp.eq.s32.totalorder %s35, 7
      %p480 = por %p478, %p479
      %p481 = scmp.ne.s32.totalorder %s472, %s473
      %p482 = scmp.eq.s32.totalorder %s35, 0
      %p483 = por %p481, %p482
      %p484 = scmp.ne.s32.totalorder %s472, %s473
      %p485 = scmp.eq.s32.totalorder %s36, 7
      %p486 = por %p484, %p485
      %p488 = scmp.ne.s32.totalorder %s473, %s487
      %p489 = scmp.eq.s32.totalorder %s36, 0
      %p490 = por %p488, %p489
      %s492 = sadd.s32 %s491, 1
      %p495 = scmp.eq.s32.totalorder %s30, 7
      %p496 = scmp.ne.s32.totalorder %s491, %s493
      %p497 = scmp.eq.s32.totalorder %s30, 0
      %p498 = por %p496, %p497
      %p499 = scmp.ne.s32.totalorder %s491, %s493
      %p500 = scmp.eq.s32.totalorder %s35, 7
      %p501 = por %p499, %p500
      %p502 = scmp.ne.s32.totalorder %s493, %s494
      %p503 = scmp.eq.s32.totalorder %s35, 0
      %p504 = por %p502, %p503
      %p505 = scmp.ne.s32.totalorder %s493, %s494
      %p506 = scmp.eq.s32.totalorder %s36, 7
      %p507 = por %p505, %p506
      %p509 = scmp.ne.s32.totalorder %s494, %s508
      %p510 = scmp.eq.s32.totalorder %s36, 0
      %p511 = por %p509, %p510
      %s512 = ssub.s32 %s37, %s49
      %s513 = ssub.s32 %s38, %s45
      %s514 = sor.u32 %s512, %s513
      %p515 = scmp.eq.s32.totalorder %s514, 0
      %s517 = sadd.s32 %s516, 1
      %s518 = scalar_select %p515, %s516, %s517
      %p521 = pneg %p515
      %p522 = scmp.eq.s32.totalorder %s30, 7
      %p523 = por %p521, %p522
      %p524 = scmp.ne.s32.totalorder %s516, %s519
      %p525 = scmp.eq.s32.totalorder %s30, 0
      %p526 = por %p524, %p525
      %p527 = scmp.ne.s32.totalorder %s516, %s519
      %p528 = scmp.eq.s32.totalorder %s35, 7
      %p529 = por %p527, %p528
      %p530 = scmp.ne.s32.totalorder %s519, %s520
      %p531 = scmp.eq.s32.totalorder %s35, 0
      %p532 = por %p530, %p531
      %p533 = scmp.ne.s32.totalorder %s519, %s520
      %p534 = scmp.eq.s32.totalorder %s36, 7
      %p535 = por %p533, %p534
      %p537 = scmp.ne.s32.totalorder %s520, %s536
      %p538 = scmp.eq.s32.totalorder %s36, 0
      %p539 = por %p537, %p538
      %p540 = scmp.le.s32.totalorder 1, %s30
      %p541 = scmp.lt.s32.totalorder %s30, 9
      %p542 = pnand %p540, %p541
      %p543 = pneg %p542
      // Predicated region
      $region9: #{tpu_custom_call.1} parent=5 // pred_check
        _
      $region10: #{tpu_custom_call.1} parent=5 // pred_check_branch
        %545 = sbr.rel (%p542) target = $region12
      $region11: #{tpu_custom_call.1} parent=5 // pred_region
        %s546 = ssub.s32 %s30, 1
        // Predicated region
        $region13: #{tpu_custom_call.1} parent=11 // pred_check
          %p547 = pneg %p147
        $region14: #{tpu_custom_call.1} parent=11 // pred_check_branch
          %549 = sbr.rel (%p547) target = $region16
        $region15: #{tpu_custom_call.1} parent=11 // pred_region
          _
        $region16: #{tpu_custom_call.1} parent=11 // pred_fallthru
          _
        // Predicated region
        $region17: #{tpu_custom_call.1} parent=11 // pred_check
          %p550 = pneg %p168
        $region18: #{tpu_custom_call.1} parent=11 // pred_check_branch
          %552 = sbr.rel (%p550) target = $region20
        $region19: #{tpu_custom_call.1} parent=11 // pred_region
          _
        $region20: #{tpu_custom_call.1} parent=11 // pred_fallthru
          _
        // Predicated region
        $region21: #{tpu_custom_call.1} parent=11 // pred_check
          %p553 = pneg %p189
        $region22: #{tpu_custom_call.1} parent=11 // pred_check_branch
          %555 = sbr.rel (%p553) target = $region24
        $region23: #{tpu_custom_call.1} parent=11 // pred_region
          _
        $region24: #{tpu_custom_call.1} parent=11 // pred_fallthru
          _
        // Predicated region
        $region25: #{tpu_custom_call.1} parent=11 // pred_check
          %p556 = pneg %p210
        $region26: #{tpu_custom_call.1} parent=11 // pred_check_branch
          %558 = sbr.rel (%p556) target = $region28
        $region27: #{tpu_custom_call.1} parent=11 // pred_region
          _
        $region28: #{tpu_custom_call.1} parent=11 // pred_fallthru
          _
        // Predicated region
        $region29: #{tpu_custom_call.1} parent=11 // pred_check
          %p559 = pneg %p231
        $region30: #{tpu_custom_call.1} parent=11 // pred_check_branch
          %561 = sbr.rel (%p559) target = $region32
        $region31: #{tpu_custom_call.1} parent=11 // pred_region
          _
        $region32: #{tpu_custom_call.1} parent=11 // pred_fallthru
          _
        // Predicated region
        $region33: #{tpu_custom_call.1} parent=11 // pred_check
          %p562 = pneg %p252
        $region34: #{tpu_custom_call.1} parent=11 // pred_check_branch
          %564 = sbr.rel (%p562) target = $region36
        $region35: #{tpu_custom_call.1} parent=11 // pred_region
          _
        $region36: #{tpu_custom_call.1} parent=11 // pred_fallthru
          _
        // Predicated region
        $region37: #{tpu_custom_call.1} parent=11 // pred_check
          %p565 = pneg %p273
        $region38: #{tpu_custom_call.1} parent=11 // pred_check_branch
          %567 = sbr.rel (%p565) target = $region40
        $region39: #{tpu_custom_call.1} parent=11 // pred_region
          _
        $region40: #{tpu_custom_call.1} parent=11 // pred_fallthru
          _
        // Predicated region
        $region41: #{tpu_custom_call.1} parent=11 // pred_check
          %p568 = pneg %p294
        $region42: #{tpu_custom_call.1} parent=11 // pred_check_branch
          %570 = sbr.rel (%p568) target = $region44
        $region43: #{tpu_custom_call.1} parent=11 // pred_region
          _
        $region44: #{tpu_custom_call.1} parent=11 // pred_fallthru
          _
        // Predicated region
        $region45: #{tpu_custom_call.1} parent=11 // pred_check
          %p571 = pneg %p315
        $region46: #{tpu_custom_call.1} parent=11 // pred_check_branch
          %573 = sbr.rel (%p571) target = $region48
        $region47: #{tpu_custom_call.1} parent=11 // pred_region
          _
        $region48: #{tpu_custom_call.1} parent=11 // pred_fallthru
          _
        // Predicated region
        $region49: #{tpu_custom_call.1} parent=11 // pred_check
          %p574 = pneg %p336
        $region50: #{tpu_custom_call.1} parent=11 // pred_check_branch
          %576 = sbr.rel (%p574) target = $region52
        $region51: #{tpu_custom_call.1} parent=11 // pred_region
          _
        $region52: #{tpu_custom_call.1} parent=11 // pred_fallthru
          _
        // Predicated region
        $region53: #{tpu_custom_call.1} parent=11 // pred_check
          %p577 = pneg %p357
        $region54: #{tpu_custom_call.1} parent=11 // pred_check_branch
          %579 = sbr.rel (%p577) target = $region56
        $region55: #{tpu_custom_call.1} parent=11 // pred_region
          _
        $region56: #{tpu_custom_call.1} parent=11 // pred_fallthru
          _
        // Predicated region
        $region57: #{tpu_custom_call.1} parent=11 // pred_check
          %p580 = pneg %p378
        $region58: #{tpu_custom_call.1} parent=11 // pred_check_branch
          %582 = sbr.rel (%p580) target = $region60
        $region59: #{tpu_custom_call.1} parent=11 // pred_region
          _
        $region60: #{tpu_custom_call.1} parent=11 // pred_fallthru
          _
        // Predicated region
        $region61: #{tpu_custom_call.1} parent=11 // pred_check
          %p583 = pneg %p399
        $region62: #{tpu_custom_call.1} parent=11 // pred_check_branch
          %585 = sbr.rel (%p583) target = $region64
        $region63: #{tpu_custom_call.1} parent=11 // pred_region
          _
        $region64: #{tpu_custom_call.1} parent=11 // pred_fallthru
          _
        // Predicated region
        $region65: #{tpu_custom_call.1} parent=11 // pred_check
          %p586 = pneg %p420
        $region66: #{tpu_custom_call.1} parent=11 // pred_check_branch
          %588 = sbr.rel (%p586) target = $region68
        $region67: #{tpu_custom_call.1} parent=11 // pred_region
          _
        $region68: #{tpu_custom_call.1} parent=11 // pred_fallthru
          _
        // Predicated region
        $region69: #{tpu_custom_call.1} parent=11 // pred_check
          %p589 = pneg %p441
        $region70: #{tpu_custom_call.1} parent=11 // pred_check_branch
          %591 = sbr.rel (%p589) target = $region72
        $region71: #{tpu_custom_call.1} parent=11 // pred_region
          _
        $region72: #{tpu_custom_call.1} parent=11 // pred_fallthru
          _
        // Predicated region
        $region73: #{tpu_custom_call.1} parent=11 // pred_check
          %p592 = pneg %p462
        $region74: #{tpu_custom_call.1} parent=11 // pred_check_branch
          %594 = sbr.rel (%p592) target = $region76
        $region75: #{tpu_custom_call.1} parent=11 // pred_region
          _
        $region76: #{tpu_custom_call.1} parent=11 // pred_fallthru
          _
        // Predicated region
        $region77: #{tpu_custom_call.1} parent=11 // pred_check
          %p595 = pneg %p483
        $region78: #{tpu_custom_call.1} parent=11 // pred_check_branch
          %597 = sbr.rel (%p595) target = $region80
        $region79: #{tpu_custom_call.1} parent=11 // pred_region
          _
        $region80: #{tpu_custom_call.1} parent=11 // pred_fallthru
          _
        // Predicated region
        $region81: #{tpu_custom_call.1} parent=11 // pred_check
          %p598 = pneg %p504
        $region82: #{tpu_custom_call.1} parent=11 // pred_check_branch
          %600 = sbr.rel (%p598) target = $region84
        $region83: #{tpu_custom_call.1} parent=11 // pred_region
          _
        $region84: #{tpu_custom_call.1} parent=11 // pred_fallthru
          _
      $region12: #{tpu_custom_call.1} parent=5 // pred_fallthru
        _
      %p601 = scmp.lt.s32.totalorder %s30, 8
      // Predicated region
      $region85: #{tpu_custom_call.1} parent=5 // pred_check
        %p602 = pneg %p601
      $region86: #{tpu_custom_call.1} parent=5 // pred_check_branch
        %604 = sbr.rel (%p602) target = $region88
      $region87: #{tpu_custom_call.1} parent=5 // pred_region
        // Predicated region
        $region89: #{tpu_custom_call.1} parent=87 // pred_check
          %p605 = pneg %p64
        $region90: #{tpu_custom_call.1} parent=87 // pred_check_branch
          %607 = sbr.rel (%p605) target = $region92
        $region91: #{tpu_custom_call.1} parent=87 // pred_region
          %s608 = smul.u32 32, %s38
          %p609 = scmp.lt.s32.totalorder %s37, 1
          %s610 = scalar_select %p609, %s37, 1
          %p611 = scmp.lt.s32.totalorder %s608, 127
          %s612 = scalar_select %p611, %s608, 127
          %s613 = smul.addr %s610, 128
          %s614 = sadd.s32 %s612, %s613
          %s615 = smul.addr %s614, 8
          %s616 = scalar_lea.vmem %s0, %s615
          %s617 = smul.u32 32, %s38
        $region92: #{tpu_custom_call.1} parent=87 // pred_fallthru
          _
        // Predicated region
        $region93: #{tpu_custom_call.1} parent=87 // pred_check
          %p618 = pneg %p92
        $region94: #{tpu_custom_call.1} parent=87 // pred_check_branch
          %620 = sbr.rel (%p618) target = $region96
        $region95: #{tpu_custom_call.1} parent=87 // pred_region
          %s621 = smul.u32 32, %s38
          %p622 = scmp.lt.s32.totalorder %s37, 1
          %s623 = scalar_select %p622, %s37, 1
          %p624 = scmp.lt.s32.totalorder %s621, 127
          %s625 = scalar_select %p624, %s621, 127
          %s626 = smul.addr %s623, 128
          %s627 = sadd.s32 %s625, %s626
          %s628 = smul.addr %s627, 8
          %s629 = scalar_lea.vmem %s1, %s628
          %s630 = smul.u32 32, %s38
        $region96: #{tpu_custom_call.1} parent=87 // pred_fallthru
          _
        // Predicated region
        $region97: #{tpu_custom_call.1} parent=87 // pred_check
          %p631 = pneg %p120
        $region98: #{tpu_custom_call.1} parent=87 // pred_check_branch
          %633 = sbr.rel (%p631) target = $region100
        $region99: #{tpu_custom_call.1} parent=87 // pred_region
          %s634 = smul.u32 4, %s38
          %p635 = scmp.lt.s32.totalorder %s37, 1
          %s636 = scalar_select %p635, %s37, 1
          %p637 = scmp.lt.s32.totalorder %s634, 15
          %s638 = scalar_select %p637, %s634, 15
          %s639 = smul.addr %s636, 16
          %s640 = sadd.s32 %s638, %s639
          %s641 = smul.addr %s640, 8
          %s642 = scalar_lea.vmem %s2, %s641
          %s643 = smul.u32 4, %s38
        $region100: #{tpu_custom_call.1} parent=87 // pred_fallthru
          _
      $region88: #{tpu_custom_call.1} parent=5 // pred_fallthru
        _
      %p644 = scmp.le.s32.totalorder 1, %s30
      %p645 = scmp.lt.s32.totalorder %s30, 9
      %p646 = pnand %p644, %p645
      %p647 = pneg %p646
      // Predicated region
      $region101: #{tpu_custom_call.1} parent=5 // pred_check
        _
      $region102: #{tpu_custom_call.1} parent=5 // pred_check_branch
        %649 = sbr.rel (%p646) target = $region104
      $region103: #{tpu_custom_call.1} parent=5 // pred_region
        %s650 = ssub.s32 %s30, 1
        %s651 = smul.u32 32, %s40
        %p652 = scmp.lt.s32.totalorder %s39, 1
        %s653 = scalar_select %p652, %s39, 1
        %p654 = scmp.lt.s32.totalorder %s651, 127
        %s655 = scalar_select %p654, %s651, 127
        %s656 = smul.addr %s653, 128
        %s657 = sadd.s32 %s655, %s656
        %s658 = smul.addr %s657, 8
        %s659 = scalar_lea.vmem %s0, %s658
        %p660 = pneg %p70
        %p661 = pneg %p67
        %s662 = smul.u32 32, %s40
        %p663 = scmp.lt.s32.totalorder %s39, 1
        %s664 = scalar_select %p663, %s39, 1
        %p665 = scmp.lt.s32.totalorder %s662, 127
        %s666 = scalar_select %p665, %s662, 127
        %s667 = smul.addr %s664, 128
        %s668 = sadd.s32 %s666, %s667
        %s669 = smul.addr %s668, 8
        %s670 = scalar_lea.vmem %s1, %s669
        %p671 = pneg %p98
        %p672 = pneg %p95
        %s673 = smul.u32 4, %s40
        %p674 = scmp.lt.s32.totalorder %s39, 1
        %s675 = scalar_select %p674, %s39, 1
        %p676 = scmp.lt.s32.totalorder %s673, 15
        %s677 = scalar_select %p676, %s673, 15
        %s678 = smul.addr %s675, 16
        %s679 = sadd.s32 %s677, %s678
        %s680 = smul.addr %s679, 8
        %s681 = scalar_lea.vmem %s2, %s680
        %p682 = pneg %p126
        %p683 = pneg %p123
        %p684 = pneg %p147
        %p685 = pneg %p144
        %p686 = pneg %p168
        %p687 = pneg %p165
        %p688 = pneg %p189
        %p689 = pneg %p186
        %p690 = pneg %p210
        %p691 = pneg %p207
        %p692 = pneg %p231
        %p693 = pneg %p228
        %p694 = pneg %p252
        %p695 = pneg %p249
        %p696 = pneg %p273
        %p697 = pneg %p270
        %p698 = pneg %p294
        %p699 = pneg %p291
        %p700 = pneg %p315
        %p701 = pneg %p312
        %p702 = pneg %p336
        %p703 = pneg %p333
        %p704 = pneg %p357
        %p705 = pneg %p354
        %p706 = pneg %p378
        %p707 = pneg %p375
        %p708 = pneg %p399
        %p709 = pneg %p396
        %p710 = pneg %p420
        %p711 = pneg %p417
        %p712 = pneg %p441
        %p713 = pneg %p438
        %p714 = pneg %p462
        %p715 = pneg %p459
        %p716 = pneg %p483
        %p717 = pneg %p480
        %p718 = pneg %p504
        %p719 = pneg %p501
        %p720 = pneg %p532
        %p721 = pneg %p529
        %s722 = sand.u32 %s519, 1
        %s723 = scalar_lea.sflag [#allocation3], %s722
        %s724 = sand.u32 %s519, 1
        %s725 = smul.addr %s724, 32
        %s726 = scalar_lea.vmem [#allocation2], %s725
        %s727 = smul.u32 32, %s40
        %p728 = scmp.lt.s32.totalorder %s39, 1
        %s729 = scalar_select %p728, %s39, 1
        %p730 = scmp.lt.s32.totalorder %s727, 127
        %s731 = scalar_select %p730, %s727, 127
        %s732 = smul.addr %s729, 128
        %s733 = sadd.s32 %s731, %s732
        %s734 = smul.addr %s733, 8
        %s735 = scalar_lea.vmem %s0, %s734
        %s736 = smul.u32 32, %s40
        %s737 = smul.u32 32, %s40
        %p738 = scmp.lt.s32.totalorder %s39, 1
        %s739 = scalar_select %p738, %s39, 1
        %p740 = scmp.lt.s32.totalorder %s737, 127
        %s741 = scalar_select %p740, %s737, 127
        %s742 = smul.addr %s739, 128
        %s743 = sadd.s32 %s741, %s742
        %s744 = smul.addr %s743, 8
        %s745 = scalar_lea.vmem %s1, %s744
        %s746 = smul.u32 32, %s40
        %s747 = smul.u32 4, %s40
        %p748 = scmp.lt.s32.totalorder %s39, 1
        %s749 = scalar_select %p748, %s39, 1
        %p750 = scmp.lt.s32.totalorder %s747, 15
        %s751 = scalar_select %p750, %s747, 15
        %s752 = smul.addr %s749, 16
        %s753 = sadd.s32 %s751, %s752
        %s754 = smul.addr %s753, 8
        %s755 = scalar_lea.vmem %s2, %s754
        %s756 = smul.u32 4, %s40
        %s757 = smul.u32 4, %s40
        %v759 = vld [vmem:[%s735] sm:$0xff]
        %v760 = vld [vmem:[%s735 + $0x8] sm:$0xff]
        %v761 = vld [vmem:[%s735 + $0x10] sm:$0xff]
        %v762 = vld [vmem:[%s735 + $0x18] sm:$0xff]
        %v763 = vld [vmem:[%s735 + $0x20] sm:$0xff]
        %v764 = vld [vmem:[%s735 + $0x28] sm:$0xff]
        %v765 = vld [vmem:[%s735 + $0x30] sm:$0xff]
        %v766 = vld [vmem:[%s735 + $0x38] sm:$0xff]
        %v767 = vld [vmem:[%s735 + $0x40] sm:$0xff]
        %v768 = vld [vmem:[%s735 + $0x48] sm:$0xff]
        %v769 = vld [vmem:[%s735 + $0x50] sm:$0xff]
        %v770 = vld [vmem:[%s735 + $0x58] sm:$0xff]
        %v771 = vld [vmem:[%s735 + $0x60] sm:$0xff]
        %v772 = vld [vmem:[%s735 + $0x68] sm:$0xff]
        %v773 = vld [vmem:[%s735 + $0x70] sm:$0xff]
        %v774 = vld [vmem:[%s735 + $0x78] sm:$0xff]
        %v775 = vld [vmem:[%s735 + $0x80] sm:$0xff]
        %v776 = vld [vmem:[%s735 + $0x88] sm:$0xff]
        %v777 = vld [vmem:[%s735 + $0x90] sm:$0xff]
        %v778 = vld [vmem:[%s735 + $0x98] sm:$0xff]
        %v779 = vld [vmem:[%s735 + $0xa0] sm:$0xff]
        %v780 = vld [vmem:[%s735 + $0xa8] sm:$0xff]
        %v781 = vld [vmem:[%s735 + $0xb0] sm:$0xff]
        %v782 = vld [vmem:[%s735 + $0xb8] sm:$0xff]
        %v783 = vld [vmem:[%s735 + $0xc0] sm:$0xff]
        %v784 = vld [vmem:[%s735 + $0xc8] sm:$0xff]
        %v785 = vld [vmem:[%s735 + $0xd0] sm:$0xff]
        %v786 = vld [vmem:[%s735 + $0xd8] sm:$0xff]
        %v787 = vld [vmem:[%s735 + $0xe0] sm:$0xff]
        %v788 = vld [vmem:[%s735 + $0xe8] sm:$0xff]
        %v789 = vld [vmem:[%s735 + $0xf0] sm:$0xff]
        %v790 = vld [vmem:[%s735 + $0xf8] sm:$0xff]
        %v791 = vld [vmem:[%s745] sm:$0xff]
        %v792 = vld [vmem:[%s745 + $0x8] sm:$0xff]
        %v793 = vld [vmem:[%s745 + $0x10] sm:$0xff]
        %v794 = vld [vmem:[%s745 + $0x18] sm:$0xff]
        %v795 = vld [vmem:[%s745 + $0x20] sm:$0xff]
        %v796 = vld [vmem:[%s745 + $0x28] sm:$0xff]
        %v797 = vld [vmem:[%s745 + $0x30] sm:$0xff]
        %v798 = vld [vmem:[%s745 + $0x38] sm:$0xff]
        %v799 = vld [vmem:[%s745 + $0x40] sm:$0xff]
        %v800 = vld [vmem:[%s745 + $0x48] sm:$0xff]
        %v801 = vld [vmem:[%s745 + $0x50] sm:$0xff]
        %v802 = vld [vmem:[%s745 + $0x58] sm:$0xff]
        %v803 = vld [vmem:[%s745 + $0x60] sm:$0xff]
        %v804 = vld [vmem:[%s745 + $0x68] sm:$0xff]
        %v805 = vld [vmem:[%s745 + $0x70] sm:$0xff]
        %v806 = vld [vmem:[%s745 + $0x78] sm:$0xff]
        %v807 = vld [vmem:[%s745 + $0x80] sm:$0xff]
        %v808 = vld [vmem:[%s745 + $0x88] sm:$0xff]
        %v809 = vld [vmem:[%s745 + $0x90] sm:$0xff]
        %v810 = vld [vmem:[%s745 + $0x98] sm:$0xff]
        %v811 = vld [vmem:[%s745 + $0xa0] sm:$0xff]
        %v812 = vld [vmem:[%s745 + $0xa8] sm:$0xff]
        %v813 = vld [vmem:[%s745 + $0xb0] sm:$0xff]
        %v814 = vld [vmem:[%s745 + $0xb8] sm:$0xff]
        %v815 = vld [vmem:[%s745 + $0xc0] sm:$0xff]
        %v816 = vld [vmem:[%s745 + $0xc8] sm:$0xff]
        %v817 = vld [vmem:[%s745 + $0xd0] sm:$0xff]
        %v818 = vld [vmem:[%s745 + $0xd8] sm:$0xff]
        %v819 = vld [vmem:[%s745 + $0xe0] sm:$0xff]
        %v820 = vld [vmem:[%s745 + $0xe8] sm:$0xff]
        %v821 = vld [vmem:[%s745 + $0xf0] sm:$0xff]
        %v822 = vld [vmem:[%s745 + $0xf8] sm:$0xff]
        %v823 = vld [vmem:[%s755] sm:$0xff]
        %v824 = vld [vmem:[%s755 + $0x8] sm:$0xff]
        %v825 = vld [vmem:[%s755 + $0x10] sm:$0xff]
        %v826 = vld [vmem:[%s755 + $0x18] sm:$0xff]
        %v827 = vld [vmem:[%s3] sm:$0x7]
        %829 = vset.pattern.permute.xlu0 0
        %830 = vperm.xlu0 %829, %v823
        %v831 = vpop.permute.xlu0 %830
        %834 = vset.pattern.permute.xlu0 0
        %835 = vperm.xlu0 %834, %v824
        %v836 = vpop.permute.xlu0 %835
        %839 = vset.pattern.permute.xlu0 0
        %840 = vperm.xlu0 %839, %v825
        %v841 = vpop.permute.xlu0 %840
        %844 = vset.pattern.permute.xlu0 0
        %845 = vperm.xlu0 %844, %v826
        %v846 = vpop.permute.xlu0 %845
        %v848 = vlaneseq
        %v849 = vshrl.u32 %v848, 7
        %v850 = vsub.s32 0, %v849
        %v851 = vrot.slane %v827, %v850
        %v852 = vmul.f32 %v831, %v851
        %v853 = vmul.f32 %v836, %v851
        %v854 = vmul.f32 %v841, %v851
        %v855 = vmul.f32 %v846, %v851
        %856 = vset.pattern.permute.xlu0 1
        %857 = vperm.xlu0 %856, %v823
        %v858 = vpop.permute.xlu0 %857
        %860 = vset.pattern.permute.xlu0 1
        %861 = vperm.xlu0 %860, %v824
        %v862 = vpop.permute.xlu0 %861
        %864 = vset.pattern.permute.xlu0 1
        %865 = vperm.xlu0 %864, %v825
        %v866 = vpop.permute.xlu0 %865
        %868 = vset.pattern.permute.xlu0 1
        %869 = vperm.xlu0 %868, %v826
        %v870 = vpop.permute.xlu0 %869
        %v872 = vlaneseq
        %v873 = vshrl.u32 %v872, 7
        %v874 = vsub.s32 1, %v873
        %v875 = vrot.slane %v827, %v874
        %v876 = vmul.f32 %v858, %v875
        %v877 = vmul.f32 %v862, %v875
        %v878 = vmul.f32 %v866, %v875
        %v879 = vmul.f32 %v870, %v875
        %v880 = vadd.f32 %v852, %v876
        %v881 = vadd.f32 %v853, %v877
        %v882 = vadd.f32 %v854, %v878
        %v883 = vadd.f32 %v855, %v879
        %884 = vset.pattern.permute.xlu0 2
        %885 = vperm.xlu0 %884, %v823
        %v886 = vpop.permute.xlu0 %885
        %888 = vset.pattern.permute.xlu0 2
        %889 = vperm.xlu0 %888, %v824
        %v890 = vpop.permute.xlu0 %889
        %892 = vset.pattern.permute.xlu0 2
        %893 = vperm.xlu0 %892, %v825
        %v894 = vpop.permute.xlu0 %893
        %896 = vset.pattern.permute.xlu0 2
        %897 = vperm.xlu0 %896, %v826
        %v898 = vpop.permute.xlu0 %897
        %v900 = vlaneseq
        %v901 = vshrl.u32 %v900, 7
        %v902 = vsub.s32 2, %v901
        %v903 = vrot.slane %v827, %v902
        %v904 = vmul.f32 %v886, %v903
        %v905 = vmul.f32 %v890, %v903
        %v906 = vmul.f32 %v894, %v903
        %v907 = vmul.f32 %v898, %v903
        %v908 = vadd.f32 %v880, %v904
        %v909 = vadd.f32 %v881, %v905
        %v910 = vadd.f32 %v882, %v906
        %v911 = vadd.f32 %v883, %v907
        %v912 = vld [vmem:[%s4] sm:$0x1]
        %v914 = vlaneseq
        %v915 = vshrl.u32 %v914, 7
        %v916 = vsub.s32 0, %v915
        %v917 = vrot.slane %v912, %v916
        %v919 = vadd.f32 %v908, %v917
        %v920 = vadd.f32 %v909, %v917
        %v921 = vadd.f32 %v910, %v917
        %v922 = vadd.f32 %v911, %v917
        %v923 = vpack.c.bf16 %v760, %v759
        %v924 = vpack.c.bf16 %v762, %v761
        %v925 = vpack.c.bf16 %v764, %v763
        %v926 = vpack.c.bf16 %v766, %v765
        %v927 = vpack.c.bf16 %v768, %v767
        %v928 = vpack.c.bf16 %v770, %v769
        %v929 = vpack.c.bf16 %v772, %v771
        %v930 = vpack.c.bf16 %v774, %v773
        %v931 = vpack.c.bf16 %v776, %v775
        %v932 = vpack.c.bf16 %v778, %v777
        %v933 = vpack.c.bf16 %v780, %v779
        %v934 = vpack.c.bf16 %v782, %v781
        %v935 = vpack.c.bf16 %v784, %v783
        %v936 = vpack.c.bf16 %v786, %v785
        %v937 = vpack.c.bf16 %v788, %v787
        %v938 = vpack.c.bf16 %v790, %v789
        %v939 = vld [vmem:[%s5] sm:$0xf]
        %v940 = vld [vmem:[%s5 + $0x4] sm:$0xf]
        %v941 = vld [vmem:[%s6] sm:$0x1]
        %v943 = vlaneseq
        %v944 = vshrl.u32 %v943, 7
        %v945 = vsub.s32 0, %v944
        %v946 = vrot.slane %v941, %v945
        %v950 = vunpack.c.l.b16 %v939
        %v951 = vunpack.c.l.b16 %v940
        %v952 = vpack.c.b16 %v951, %v950
        %vm954 = vcmask 130048
        %v956 = vsel %vm954, %v923, 0
        %v959 = vsel %vm954, %v924, 0
        %v962 = vsel %vm954, %v925, 0
        %v965 = vsel %vm954, %v926, 0
        %v968 = vsel %vm954, %v927, 0
        %v971 = vsel %vm954, %v928, 0
        %v974 = vsel %vm954, %v929, 0
        %v977 = vsel %vm954, %v930, 0
        %v980 = vsel %vm954, %v931, 0
        %v983 = vsel %vm954, %v932, 0
        %v986 = vsel %vm954, %v933, 0
        %v989 = vsel %vm954, %v934, 0
        %v992 = vsel %vm954, %v935, 0
        %v995 = vsel %vm954, %v936, 0
        %v998 = vsel %vm954, %v937, 0
        %v1001 = vsel %vm954, %v938, 0
        %1003 = vmatprep.subr.bf16.mxu0 0
        %1004 = vmatpush1.bf16.msra.mxu0 %v952
        %1005 = vmatprep.subr.bf16.mxu0 0
        %1006 = vmatpush1.bf16.msra.mxu0 0
        %1007 = vmatprep.subr.bf16.mxu0 0
        %1008 = vmatpush1.bf16.msra.mxu0 0
        %1009 = vmatprep.subr.bf16.mxu0 0
        %1010 = vmatpush1.bf16.msra.mxu0 0
        %1011 = vmatprep.subr.bf16.mxu0 0
        %1012 = vmatpush1.bf16.msra.mxu0 0
        %1013 = vmatprep.subr.bf16.mxu0 0
        %1014 = vmatpush1.bf16.msra.mxu0 0
        %1015 = vmatprep.subr.bf16.mxu0 0
        %1016 = vmatpush1.bf16.msra.mxu0 0
        %1017 = vmatprep.subr.bf16.mxu0 0
        %1018 = vmatpush1.bf16.msra.mxu0 0
        %1019 = vmatprep.subr.bf16.mxu0 0
        %1020 = vmatpush1.bf16.msra.mxu0 0
        %1021 = vmatprep.subr.bf16.mxu0 0
        %1022 = vmatpush1.bf16.msra.mxu0 0
        %1023 = vmatprep.subr.bf16.mxu0 0
        %1024 = vmatpush1.bf16.msra.mxu0 0
        %1025 = vmatprep.subr.bf16.mxu0 0
        %1026 = vmatpush1.bf16.msra.mxu0 0
        %1027 = vmatprep.subr.bf16.mxu0 0
        %1028 = vmatpush1.bf16.msra.mxu0 0
        %1029 = vmatprep.subr.bf16.mxu0 0
        %1030 = vmatpush1.bf16.msra.mxu0 0
        %1031 = vmatprep.subr.bf16.mxu0 0
        %1032 = vmatpush1.bf16.msra.mxu0 0
        %1033 = vmatprep.subr.bf16.mxu0 0
        %1034 = vmatpush1.bf16.msra.mxu0 0
        %1035 = vmatprep.mubr.bf16.mxu0 0
        %1036 = vmatmul.mubr.bf16.gmra.mrb[0].mxu0 %v956
        %v1037 = vpop.f32.mrb[0].mxu0
        %v1038 = vadd.f32 %v946, %v1037
        %v1039 = vpop.f32.mrb[0].mxu0
        %v1040 = vpop.f32.mrb[0].mxu0
        %v1041 = vadd.f32 %v946, %v1040
        %v1042 = vpop.f32.mrb[0].mxu0
        %1043 = vmatprep.mubr.bf16.mxu0 0
        %1044 = vmatmul.mubr.bf16.gmra.mrb[0].mxu0 %v959
        %v1045 = vpop.f32.mrb[0].mxu0
        %v1046 = vadd.f32 %v946, %v1045
        %v1047 = vpop.f32.mrb[0].mxu0
        %v1048 = vpop.f32.mrb[0].mxu0
        %v1049 = vadd.f32 %v946, %v1048
        %v1050 = vpop.f32.mrb[0].mxu0
        %1051 = vmatprep.mubr.bf16.mxu0 0
        %1052 = vmatmul.mubr.bf16.gmra.mrb[0].mxu0 %v962
        %v1053 = vpop.f32.mrb[0].mxu0
        %v1054 = vadd.f32 %v946, %v1053
        %v1055 = vpop.f32.mrb[0].mxu0
        %v1056 = vpop.f32.mrb[0].mxu0
        %v1057 = vadd.f32 %v946, %v1056
        %v1058 = vpop.f32.mrb[0].mxu0
        %1059 = vmatprep.mubr.bf16.mxu0 0
        %1060 = vmatmul.mubr.bf16.gmra.mrb[0].mxu0 %v965
        %v1061 = vpop.f32.mrb[0].mxu0
        %v1062 = vadd.f32 %v946, %v1061
        %v1063 = vpop.f32.mrb[0].mxu0
        %v1064 = vpop.f32.mrb[0].mxu0
        %v1065 = vadd.f32 %v946, %v1064
        %v1066 = vpop.f32.mrb[0].mxu0
        %1067 = vmatprep.mubr.bf16.mxu0 0
        %1068 = vmatmul.mubr.bf16.gmra.mrb[0].mxu0 %v968
        %v1069 = vpop.f32.mrb[0].mxu0
        %v1070 = vadd.f32 %v946, %v1069
        %v1071 = vpop.f32.mrb[0].mxu0
        %v1072 = vpop.f32.mrb[0].mxu0
        %v1073 = vadd.f32 %v946, %v1072
        %v1074 = vpop.f32.mrb[0].mxu0
        %1075 = vmatprep.mubr.bf16.mxu0 0
        %1076 = vmatmul.mubr.bf16.gmra.mrb[0].mxu0 %v971
        %v1077 = vpop.f32.mrb[0].mxu0
        %v1078 = vadd.f32 %v946, %v1077
        %v1079 = vpop.f32.mrb[0].mxu0
        %v1080 = vpop.f32.mrb[0].mxu0
        %v1081 = vadd.f32 %v946, %v1080
        %v1082 = vpop.f32.mrb[0].mxu0
        %1083 = vmatprep.mubr.bf16.mxu0 0
        %1084 = vmatmul.mubr.bf16.gmra.mrb[0].mxu0 %v974
        %v1085 = vpop.f32.mrb[0].mxu0
        %v1086 = vadd.f32 %v946, %v1085
        %v1087 = vpop.f32.mrb[0].mxu0
        %v1088 = vpop.f32.mrb[0].mxu0
        %v1089 = vadd.f32 %v946, %v1088
        %v1090 = vpop.f32.mrb[0].mxu0
        %1091 = vmatprep.mubr.bf16.mxu0 0
        %1092 = vmatmul.mubr.bf16.gmra.mrb[0].mxu0 %v977
        %v1093 = vpop.f32.mrb[0].mxu0
        %v1094 = vadd.f32 %v946, %v1093
        %v1095 = vpop.f32.mrb[0].mxu0
        %v1096 = vpop.f32.mrb[0].mxu0
        %v1097 = vadd.f32 %v946, %v1096
        %v1098 = vpop.f32.mrb[0].mxu0
        %1099 = vmatprep.mubr.bf16.mxu0 0
        %1100 = vmatmul.mubr.bf16.gmra.mrb[0].mxu0 %v980
        %v1101 = vpop.f32.mrb[0].mxu0
        %v1102 = vadd.f32 %v946, %v1101
        %v1103 = vpop.f32.mrb[0].mxu0
        %v1104 = vpop.f32.mrb[0].mxu0
        %v1105 = vadd.f32 %v946, %v1104
        %v1106 = vpop.f32.mrb[0].mxu0
        %1107 = vmatprep.mubr.bf16.mxu0 0
        %1108 = vmatmul.mubr.bf16.gmra.mrb[0].mxu0 %v983
        %v1109 = vpop.f32.mrb[0].mxu0
        %v1110 = vadd.f32 %v946, %v1109
        %v1111 = vpop.f32.mrb[0].mxu0
        %v1112 = vpop.f32.mrb[0].mxu0
        %v1113 = vadd.f32 %v946, %v1112
        %v1114 = vpop.f32.mrb[0].mxu0
        %1115 = vmatprep.mubr.bf16.mxu0 0
        %1116 = vmatmul.mubr.bf16.gmra.mrb[0].mxu0 %v986
        %v1117 = vpop.f32.mrb[0].mxu0
        %v1118 = vadd.f32 %v946, %v1117
        %v1119 = vpop.f32.mrb[0].mxu0
        %v1120 = vpop.f32.mrb[0].mxu0
        %v1121 = vadd.f32 %v946, %v1120
        %v1122 = vpop.f32.mrb[0].mxu0
        %1123 = vmatprep.mubr.bf16.mxu0 0
        %1124 = vmatmul.mubr.bf16.gmra.mrb[0].mxu0 %v989
        %v1125 = vpop.f32.mrb[0].mxu0
        %v1126 = vadd.f32 %v946, %v1125
        %v1127 = vpop.f32.mrb[0].mxu0
        %v1128 = vpop.f32.mrb[0].mxu0
        %v1129 = vadd.f32 %v946, %v1128
        %v1130 = vpop.f32.mrb[0].mxu0
        %1131 = vmatprep.mubr.bf16.mxu0 0
        %1132 = vmatmul.mubr.bf16.gmra.mrb[0].mxu0 %v992
        %v1133 = vpop.f32.mrb[0].mxu0
        %v1134 = vadd.f32 %v946, %v1133
        %v1135 = vpop.f32.mrb[0].mxu0
        %v1136 = vpop.f32.mrb[0].mxu0
        %v1137 = vadd.f32 %v946, %v1136
        %v1138 = vpop.f32.mrb[0].mxu0
        %1139 = vmatprep.mubr.bf16.mxu0 0
        %1140 = vmatmul.mubr.bf16.gmra.mrb[0].mxu0 %v995
        %v1141 = vpop.f32.mrb[0].mxu0
        %v1142 = vadd.f32 %v946, %v1141
        %v1143 = vpop.f32.mrb[0].mxu0
        %v1144 = vpop.f32.mrb[0].mxu0
        %v1145 = vadd.f32 %v946, %v1144
        %v1146 = vpop.f32.mrb[0].mxu0
        %1147 = vmatprep.mubr.bf16.mxu0 0
        %1148 = vmatmul.mubr.bf16.gmra.mrb[0].mxu0 %v998
        %v1149 = vpop.f32.mrb[0].mxu0
        %v1150 = vadd.f32 %v946, %v1149
        %v1151 = vpop.f32.mrb[0].mxu0
        %v1152 = vpop.f32.mrb[0].mxu0
        %v1153 = vadd.f32 %v946, %v1152
        %v1154 = vpop.f32.mrb[0].mxu0
        %1155 = vmatprep.mubr.bf16.mxu0 0
        %1156 = vmatmul.mubr.bf16.gmra.mrb[0].mxu0 %v1001
        %v1157 = vpop.f32.mrb[0].mxu0
        %v1158 = vadd.f32 %v946, %v1157
        %v1159 = vpop.f32.mrb[0].mxu0
        %v1160 = vpop.f32.mrb[0].mxu0
        %v1161 = vadd.f32 %v946, %v1160
        %v1162 = vpop.f32.mrb[0].mxu0
        %1163 = vdwg.mxu0
        %v1164 = vpack.c.bf16 %v792, %v791
        %v1165 = vpack.c.bf16 %v794, %v793
        %v1166 = vpack.c.bf16 %v796, %v795
        %v1167 = vpack.c.bf16 %v798, %v797
        %v1168 = vpack.c.bf16 %v800, %v799
        %v1169 = vpack.c.bf16 %v802, %v801
        %v1170 = vpack.c.bf16 %v804, %v803
        %v1171 = vpack.c.bf16 %v806, %v805
        %v1172 = vpack.c.bf16 %v808, %v807
        %v1173 = vpack.c.bf16 %v810, %v809
        %v1174 = vpack.c.bf16 %v812, %v811
        %v1175 = vpack.c.bf16 %v814, %v813
        %v1176 = vpack.c.bf16 %v816, %v815
        %v1177 = vpack.c.bf16 %v818, %v817
        %v1178 = vpack.c.bf16 %v820, %v819
        %v1179 = vpack.c.bf16 %v822, %v821
        %v1180 = vld [vmem:[%s7] sm:$0xf]
        %v1181 = vld [vmem:[%s7 + $0x4] sm:$0xf]
        %v1182 = vld [vmem:[%s8] sm:$0x1]
        %v1184 = vlaneseq
        %v1185 = vshrl.u32 %v1184, 7
        %v1186 = vsub.s32 0, %v1185
        %v1187 = vrot.slane %v1182, %v1186
        %v1191 = vunpack.c.l.b16 %v1180
        %v1192 = vunpack.c.l.b16 %v1181
        %v1193 = vpack.c.b16 %v1192, %v1191
        %v1196 = vsel %vm954, %v1164, 0
        %v1199 = vsel %vm954, %v1165, 0
        %v1202 = vsel %vm954, %v1166, 0
        %v1205 = vsel %vm954, %v1167, 0
        %v1208 = vsel %vm954, %v1168, 0
        %v1211 = vsel %vm954, %v1169, 0
        %v1214 = vsel %vm954, %v1170, 0
        %v1217 = vsel %vm954, %v1171, 0
        %v1220 = vsel %vm954, %v1172, 0
        %v1223 = vsel %vm954, %v1173, 0
        %v1226 = vsel %vm954, %v1174, 0
        %v1229 = vsel %vm954, %v1175, 0
        %v1232 = vsel %vm954, %v1176, 0
        %v1235 = vsel %vm954, %v1177, 0
        %v1238 = vsel %vm954, %v1178, 0
        %v1241 = vsel %vm954, %v1179, 0
        %1243 = vmatprep.subr.bf16.mxu0 0
        %1244 = vmatpush1.bf16.msra.mxu0 %v1193
        %1245 = vmatprep.subr.bf16.mxu0 0
        %1246 = vmatpush1.bf16.msra.mxu0 0
        %1247 = vmatprep.subr.bf16.mxu0 0
        %1248 = vmatpush1.bf16.msra.mxu0 0
        %1249 = vmatprep.subr.bf16.mxu0 0
        %1250 = vmatpush1.bf16.msra.mxu0 0
        %1251 = vmatprep.subr.bf16.mxu0 0
        %1252 = vmatpush1.bf16.msra.mxu0 0
        %1253 = vmatprep.subr.bf16.mxu0 0
        %1254 = vmatpush1.bf16.msra.mxu0 0
        %1255 = vmatprep.subr.bf16.mxu0 0
        %1256 = vmatpush1.bf16.msra.mxu0 0
        %1257 = vmatprep.subr.bf16.mxu0 0
        %1258 = vmatpush1.bf16.msra.mxu0 0
        %1259 = vmatprep.subr.bf16.mxu0 0
        %1260 = vmatpush1.bf16.msra.mxu0 0
        %1261 = vmatprep.subr.bf16.mxu0 0
        %1262 = vmatpush1.bf16.msra.mxu0 0
        %1263 = vmatprep.subr.bf16.mxu0 0
        %1264 = vmatpush1.bf16.msra.mxu0 0
        %1265 = vmatprep.subr.bf16.mxu0 0
        %1266 = vmatpush1.bf16.msra.mxu0 0
        %1267 = vmatprep.subr.bf16.mxu0 0
        %1268 = vmatpush1.bf16.msra.mxu0 0
        %1269 = vmatprep.subr.bf16.mxu0 0
        %1270 = vmatpush1.bf16.msra.mxu0 0
        %1271 = vmatprep.subr.bf16.mxu0 0
        %1272 = vmatpush1.bf16.msra.mxu0 0
        %1273 = vmatprep.subr.bf16.mxu0 0
        %1274 = vmatpush1.bf16.msra.mxu0 0
        %1275 = vmatprep.mubr.bf16.mxu0 0
        %1276 = vmatmul.mubr.bf16.gmra.mrb[0].mxu0 %v1196
        %v1277 = vpop.f32.mrb[0].mxu0
        %v1278 = vadd.f32 %v1187, %v1277
        %v1279 = vpop.f32.mrb[0].mxu0
        %v1280 = vpop.f32.mrb[0].mxu0
        %v1281 = vadd.f32 %v1187, %v1280
        %v1282 = vpop.f32.mrb[0].mxu0
        %1283 = vmatprep.mubr.bf16.mxu0 0
        %1284 = vmatmul.mubr.bf16.gmra.mrb[0].mxu0 %v1199
        %v1285 = vpop.f32.mrb[0].mxu0
        %v1286 = vadd.f32 %v1187, %v1285
        %v1287 = vpop.f32.mrb[0].mxu0
        %v1288 = vpop.f32.mrb[0].mxu0
        %v1289 = vadd.f32 %v1187, %v1288
        %v1290 = vpop.f32.mrb[0].mxu0
        %1291 = vmatprep.mubr.bf16.mxu0 0
        %1292 = vmatmul.mubr.bf16.gmra.mrb[0].mxu0 %v1202
        %v1293 = vpop.f32.mrb[0].mxu0
        %v1294 = vadd.f32 %v1187, %v1293
        %v1295 = vpop.f32.mrb[0].mxu0
        %v1296 = vpop.f32.mrb[0].mxu0
        %v1297 = vadd.f32 %v1187, %v1296
        %v1298 = vpop.f32.mrb[0].mxu0
        %1299 = vmatprep.mubr.bf16.mxu0 0
        %1300 = vmatmul.mubr.bf16.gmra.mrb[0].mxu0 %v1205
        %v1301 = vpop.f32.mrb[0].mxu0
        %v1302 = vadd.f32 %v1187, %v1301
        %v1303 = vpop.f32.mrb[0].mxu0
        %v1304 = vpop.f32.mrb[0].mxu0
        %v1305 = vadd.f32 %v1187, %v1304
        %v1306 = vpop.f32.mrb[0].mxu0
        %1307 = vmatprep.mubr.bf16.mxu0 0
        %1308 = vmatmul.mubr.bf16.gmra.mrb[0].mxu0 %v1208
        %v1309 = vpop.f32.mrb[0].mxu0
        %v1310 = vadd.f32 %v1187, %v1309
        %v1311 = vpop.f32.mrb[0].mxu0
        %v1312 = vpop.f32.mrb[0].mxu0
        %v1313 = vadd.f32 %v1187, %v1312
        %v1314 = vpop.f32.mrb[0].mxu0
        %1315 = vmatprep.mubr.bf16.mxu0 0
        %1316 = vmatmul.mubr.bf16.gmra.mrb[0].mxu0 %v1211
        %v1317 = vpop.f32.mrb[0].mxu0
        %v1318 = vadd.f32 %v1187, %v1317
        %v1319 = vpop.f32.mrb[0].mxu0
        %v1320 = vpop.f32.mrb[0].mxu0
        %v1321 = vadd.f32 %v1187, %v1320
        %v1322 = vpop.f32.mrb[0].mxu0
        %1323 = vmatprep.mubr.bf16.mxu0 0
        %1324 = vmatmul.mubr.bf16.gmra.mrb[0].mxu0 %v1214
        %v1325 = vpop.f32.mrb[0].mxu0
        %v1326 = vadd.f32 %v1187, %v1325
        %v1327 = vpop.f32.mrb[0].mxu0
        %v1328 = vpop.f32.mrb[0].mxu0
        %v1329 = vadd.f32 %v1187, %v1328
        %v1330 = vpop.f32.mrb[0].mxu0
        %1331 = vmatprep.mubr.bf16.mxu0 0
        %1332 = vmatmul.mubr.bf16.gmra.mrb[0].mxu0 %v1217
        %v1333 = vpop.f32.mrb[0].mxu0
        %v1334 = vadd.f32 %v1187, %v1333
        %v1335 = vpop.f32.mrb[0].mxu0
        %v1336 = vpop.f32.mrb[0].mxu0
        %v1337 = vadd.f32 %v1187, %v1336
        %v1338 = vpop.f32.mrb[0].mxu0
        %1339 = vmatprep.mubr.bf16.mxu0 0
        %1340 = vmatmul.mubr.bf16.gmra.mrb[0].mxu0 %v1220
        %v1341 = vpop.f32.mrb[0].mxu0
        %v1342 = vadd.f32 %v1187, %v1341
        %v1343 = vpop.f32.mrb[0].mxu0
        %v1344 = vpop.f32.mrb[0].mxu0
        %v1345 = vadd.f32 %v1187, %v1344
        %v1346 = vpop.f32.mrb[0].mxu0
        %1347 = vmatprep.mubr.bf16.mxu0 0
        %1348 = vmatmul.mubr.bf16.gmra.mrb[0].mxu0 %v1223
        %v1349 = vpop.f32.mrb[0].mxu0
        %v1350 = vadd.f32 %v1187, %v1349
        %v1351 = vpop.f32.mrb[0].mxu0
        %v1352 = vpop.f32.mrb[0].mxu0
        %v1353 = vadd.f32 %v1187, %v1352
        %v1354 = vpop.f32.mrb[0].mxu0
        %1355 = vmatprep.mubr.bf16.mxu0 0
        %1356 = vmatmul.mubr.bf16.gmra.mrb[0].mxu0 %v1226
        %v1357 = vpop.f32.mrb[0].mxu0
        %v1358 = vadd.f32 %v1187, %v1357
        %v1359 = vpop.f32.mrb[0].mxu0
        %v1360 = vpop.f32.mrb[0].mxu0
        %v1361 = vadd.f32 %v1187, %v1360
        %v1362 = vpop.f32.mrb[0].mxu0
        %1363 = vmatprep.mubr.bf16.mxu0 0
        %1364 = vmatmul.mubr.bf16.gmra.mrb[0].mxu0 %v1229
        %v1365 = vpop.f32.mrb[0].mxu0
        %v1366 = vadd.f32 %v1187, %v1365
        %v1367 = vpop.f32.mrb[0].mxu0
        %v1368 = vpop.f32.mrb[0].mxu0
        %v1369 = vadd.f32 %v1187, %v1368
        %v1370 = vpop.f32.mrb[0].mxu0
        %1371 = vmatprep.mubr.bf16.mxu0 0
        %1372 = vmatmul.mubr.bf16.gmra.mrb[0].mxu0 %v1232
        %v1373 = vpop.f32.mrb[0].mxu0
        %v1374 = vadd.f32 %v1187, %v1373
        %v1375 = vpop.f32.mrb[0].mxu0
        %v1376 = vpop.f32.mrb[0].mxu0
        %v1377 = vadd.f32 %v1187, %v1376
        %v1378 = vpop.f32.mrb[0].mxu0
        %1379 = vmatprep.mubr.bf16.mxu0 0
        %1380 = vmatmul.mubr.bf16.gmra.mrb[0].mxu0 %v1235
        %v1381 = vpop.f32.mrb[0].mxu0
        %v1382 = vadd.f32 %v1187, %v1381
        %v1383 = vpop.f32.mrb[0].mxu0
        %v1384 = vpop.f32.mrb[0].mxu0
        %v1385 = vadd.f32 %v1187, %v1384
        %v1386 = vpop.f32.mrb[0].mxu0
        %1387 = vmatprep.mubr.bf16.mxu0 0
        %1388 = vmatmul.mubr.bf16.gmra.mrb[0].mxu0 %v1238
        %v1389 = vpop.f32.mrb[0].mxu0
        %v1390 = vadd.f32 %v1187, %v1389
        %v1391 = vpop.f32.mrb[0].mxu0
        %v1392 = vpop.f32.mrb[0].mxu0
        %v1393 = vadd.f32 %v1187, %v1392
        %v1394 = vpop.f32.mrb[0].mxu0
        %1395 = vmatprep.mubr.bf16.mxu0 0
        %1396 = vmatmul.mubr.bf16.gmra.mrb[0].mxu0 %v1241
        %v1397 = vpop.f32.mrb[0].mxu0
        %v1398 = vadd.f32 %v1187, %v1397
        %v1399 = vpop.f32.mrb[0].mxu0
        %v1400 = vpop.f32.mrb[0].mxu0
        %v1401 = vadd.f32 %v1187, %v1400
        %v1402 = vpop.f32.mrb[0].mxu0
        %1403 = vdwg.mxu0
        %v1404 = vpack.c.bf16 %v920, %v919
        %v1405 = vpack.c.bf16 %v922, %v921
        %v1406 = vld [vmem:[%s9] sm:$0xf]
        %v1407 = vld [vmem:[%s9 + $0x4] sm:$0xf]
        %v1408 = vld [vmem:[%s9 + $0x8] sm:$0xf]
        %v1409 = vld [vmem:[%s9 + $0xc] sm:$0xf]
        %v1410 = vld [vmem:[%s9 + $0x10] sm:$0xf]
        %v1411 = vld [vmem:[%s9 + $0x14] sm:$0xf]
        %v1412 = vld [vmem:[%s9 + $0x18] sm:$0xf]
        %v1413 = vld [vmem:[%s9 + $0x1c] sm:$0xf]
        %v1414 = vld [vmem:[%s9 + $0x20] sm:$0xf]
        %v1415 = vld [vmem:[%s9 + $0x24] sm:$0xf]
        %v1416 = vld [vmem:[%s9 + $0x28] sm:$0xf]
        %v1417 = vld [vmem:[%s9 + $0x2c] sm:$0xf]
        %v1418 = vld [vmem:[%s9 + $0x30] sm:$0xf]
        %v1419 = vld [vmem:[%s9 + $0x34] sm:$0xf]
        %v1420 = vld [vmem:[%s9 + $0x38] sm:$0xf]
        %v1421 = vld [vmem:[%s9 + $0x3c] sm:$0xf]
        %v1438 = vunpack.c.l.b16 %v1406
        %v1439 = vunpack.c.l.b16 %v1407
        %v1440 = vunpack.c.l.b16 %v1408
        %v1441 = vunpack.c.l.b16 %v1409
        %v1442 = vunpack.c.l.b16 %v1410
        %v1443 = vunpack.c.l.b16 %v1411
        %v1444 = vunpack.c.l.b16 %v1412
        %v1445 = vunpack.c.l.b16 %v1413
        %v1446 = vunpack.c.l.b16 %v1414
        %v1447 = vunpack.c.l.b16 %v1415
        %v1448 = vunpack.c.l.b16 %v1416
        %v1449 = vunpack.c.l.b16 %v1417
        %v1450 = vunpack.c.l.b16 %v1418
        %v1451 = vunpack.c.l.b16 %v1419
        %v1452 = vunpack.c.l.b16 %v1420
        %v1453 = vunpack.c.l.b16 %v1421
        %v1454 = vpack.c.b16 %v1439, %v1438
        %v1455 = vpack.c.b16 %v1441, %v1440
        %v1456 = vpack.c.b16 %v1443, %v1442
        %v1457 = vpack.c.b16 %v1445, %v1444
        %v1458 = vpack.c.b16 %v1447, %v1446
        %v1459 = vpack.c.b16 %v1449, %v1448
        %v1460 = vpack.c.b16 %v1451, %v1450
        %v1461 = vpack.c.b16 %v1453, %v1452
        %1470 = vmatprep.subr.bf16.mxu0 0
        %1471 = vmatpush1.bf16.msra.mxu0 %v1454
        %1472 = vmatprep.subr.bf16.mxu0 0
        %1473 = vmatpush1.bf16.msra.mxu0 %v1455
        %1474 = vmatprep.subr.bf16.mxu0 0
        %1475 = vmatpush1.bf16.msra.mxu0 %v1456
        %1476 = vmatprep.subr.bf16.mxu0 0
        %1477 = vmatpush1.bf16.msra.mxu0 %v1457
        %1478 = vmatprep.subr.bf16.mxu0 0
        %1479 = vmatpush1.bf16.msra.mxu0 %v1458
        %1480 = vmatprep.subr.bf16.mxu0 0
        %1481 = vmatpush1.bf16.msra.mxu0 %v1459
        %1482 = vmatprep.subr.bf16.mxu0 0
        %1483 = vmatpush1.bf16.msra.mxu0 %v1460
        %1484 = vmatprep.subr.bf16.mxu0 0
        %1485 = vmatpush1.bf16.msra.mxu0 %v1461
        %1486 = vmatprep.subr.bf16.mxu0 0
        %1487 = vmatpush1.bf16.msra.mxu0 0
        %1488 = vmatprep.subr.bf16.mxu0 0
        %1489 = vmatpush1.bf16.msra.mxu0 0
        %1490 = vmatprep.subr.bf16.mxu0 0
        %1491 = vmatpush1.bf16.msra.mxu0 0
        %1492 = vmatprep.subr.bf16.mxu0 0
        %1493 = vmatpush1.bf16.msra.mxu0 0
        %1494 = vmatprep.subr.bf16.mxu0 0
        %1495 = vmatpush1.bf16.msra.mxu0 0
        %1496 = vmatprep.subr.bf16.mxu0 0
        %1497 = vmatpush1.bf16.msra.mxu0 0
        %1498 = vmatprep.subr.bf16.mxu0 0
        %1499 = vmatpush1.bf16.msra.mxu0 0
        %1500 = vmatprep.subr.bf16.mxu0 0
        %1501 = vmatpush1.bf16.msra.mxu0 0
        %1502 = vmatprep.mubr.bf16.mxu0 0
        %1503 = vmatmul.mubr.bf16.gmra.mrb[0].mxu0 %v1404
        %v1504 = vpop.f32.mrb[0].mxu0
        %v1505 = vadd.f32 0.0, %v1504
        %v1506 = vpop.f32.mrb[0].mxu0
        %v1507 = vpop.f32.mrb[0].mxu0
        %v1508 = vadd.f32 0.0, %v1507
        %v1509 = vpop.f32.mrb[0].mxu0
        %1510 = vmatprep.mubr.bf16.mxu0 0
        %1511 = vmatmul.mubr.bf16.gmra.mrb[0].mxu0 %v1405
        %v1512 = vpop.f32.mrb[0].mxu0
        %v1513 = vadd.f32 0.0, %v1512
        %v1514 = vpop.f32.mrb[0].mxu0
        %v1515 = vpop.f32.mrb[0].mxu0
        %v1516 = vadd.f32 0.0, %v1515
        %v1517 = vpop.f32.mrb[0].mxu0
        %1518 = vdwg.mxu0
        %v1519 = vld [vmem:[%s10] sm:$0x1]
        %v1521 = vlaneseq
        %v1522 = vshrl.u32 %v1521, 7
        %v1523 = vsub.s32 0, %v1522
        %v1524 = vrot.slane %v1519, %v1523
        %v1526 = vmul.f32 %v1505, %v1524
        %v1527 = vmul.f32 %v1508, %v1524
        %v1528 = vmul.f32 %v1513, %v1524
        %v1529 = vmul.f32 %v1516, %v1524
        %v1530 = vld [vmem:[%s11] sm:$0x1]
        %v1532 = vlaneseq
        %v1533 = vshrl.u32 %v1532, 7
        %v1534 = vsub.s32 0, %v1533
        %v1535 = vrot.slane %v1530, %v1534
        %v1537 = vadd.f32 %v1526, %v1535
        %v1538 = vadd.f32 %v1527, %v1535
        %v1539 = vadd.f32 %v1528, %v1535
        %v1540 = vadd.f32 %v1529, %v1535
        %v1541 = vmax.f32 %v1537, 0.0
        %v1542 = vmax.f32 %v1538, 0.0
        %v1543 = vmax.f32 %v1539, 0.0
        %v1544 = vmax.f32 %v1540, 0.0
        %v1545 = vpack.c.bf16 %v1542, %v1541
        %v1546 = vpack.c.bf16 %v1544, %v1543
        %v1547 = vld [vmem:[%s12] sm:$0xf]
        %v1548 = vld [vmem:[%s12 + $0x4] sm:$0xf]
        %v1549 = vld [vmem:[%s12 + $0x8] sm:$0xf]
        %v1550 = vld [vmem:[%s12 + $0xc] sm:$0xf]
        %v1551 = vld [vmem:[%s13] sm:$0x1]
        %v1553 = vlaneseq
        %v1554 = vshrl.u32 %v1553, 7
        %v1555 = vsub.s32 0, %v1554
        %v1556 = vrot.slane %v1551, %v1555
        %v1562 = vunpack.c.l.b16 %v1547
        %v1563 = vunpack.c.l.b16 %v1548
        %v1564 = vunpack.c.l.b16 %v1549
        %v1565 = vunpack.c.l.b16 %v1550
        %v1566 = vpack.c.b16 %v1563, %v1562
        %v1567 = vpack.c.b16 %v1565, %v1564
        %vm1570 = vcmask 261120
        %v1572 = vsel %vm1570, %v1545, 0
        %v1575 = vsel %vm1570, %v1546, 0
        %1577 = vmatprep.subr.bf16.mxu0 0
        %1578 = vmatpush1.bf16.msra.mxu0 %v1566
        %1579 = vmatprep.subr.bf16.mxu0 0
        %1580 = vmatpush1.bf16.msra.mxu0 %v1567
        %1581 = vmatprep.subr.bf16.mxu0 0
        %1582 = vmatpush1.bf16.msra.mxu0 0
        %1583 = vmatprep.subr.bf16.mxu0 0
        %1584 = vmatpush1.bf16.msra.mxu0 0
        %1585 = vmatprep.subr.bf16.mxu0 0
        %1586 = vmatpush1.bf16.msra.mxu0 0
        %1587 = vmatprep.subr.bf16.mxu0 0
        %1588 = vmatpush1.bf16.msra.mxu0 0
        %1589 = vmatprep.subr.bf16.mxu0 0
        %1590 = vmatpush1.bf16.msra.mxu0 0
        %1591 = vmatprep.subr.bf16.mxu0 0
        %1592 = vmatpush1.bf16.msra.mxu0 0
        %1593 = vmatprep.subr.bf16.mxu0 0
        %1594 = vmatpush1.bf16.msra.mxu0 0
        %1595 = vmatprep.subr.bf16.mxu0 0
        %1596 = vmatpush1.bf16.msra.mxu0 0
        %1597 = vmatprep.subr.bf16.mxu0 0
        %1598 = vmatpush1.bf16.msra.mxu0 0
        %1599 = vmatprep.subr.bf16.mxu0 0
        %1600 = vmatpush1.bf16.msra.mxu0 0
        %1601 = vmatprep.subr.bf16.mxu0 0
        %1602 = vmatpush1.bf16.msra.mxu0 0
        %1603 = vmatprep.subr.bf16.mxu0 0
        %1604 = vmatpush1.bf16.msra.mxu0 0
        %1605 = vmatprep.subr.bf16.mxu0 0
        %1606 = vmatpush1.bf16.msra.mxu0 0
        %1607 = vmatprep.subr.bf16.mxu0 0
        %1608 = vmatpush1.bf16.msra.mxu0 0
        %1609 = vmatprep.mubr.bf16.mxu0 0
        %1610 = vmatmul.mubr.bf16.gmra.mrb[0].mxu0 %v1572
        %v1611 = vpop.f32.mrb[0].mxu0
        %v1612 = vadd.f32 %v1556, %v1611
        %v1613 = vpop.f32.mrb[0].mxu0
        %v1614 = vpop.f32.mrb[0].mxu0
        %v1615 = vadd.f32 %v1556, %v1614
        %v1616 = vpop.f32.mrb[0].mxu0
        %1617 = vmatprep.mubr.bf16.mxu0 0
        %1618 = vmatmul.mubr.bf16.gmra.mrb[0].mxu0 %v1575
        %v1619 = vpop.f32.mrb[0].mxu0
        %v1620 = vadd.f32 %v1556, %v1619
        %v1621 = vpop.f32.mrb[0].mxu0
        %v1622 = vpop.f32.mrb[0].mxu0
        %v1623 = vadd.f32 %v1556, %v1622
        %v1624 = vpop.f32.mrb[0].mxu0
        %1625 = vdwg.mxu0
        %v1630 = vcombine.high %v1612, %v1612
        %v1632 = vunpack.c.l.s4 1966171168
        %v1633 = vunpack.c.0.s8 %v1632
        %v1634 = vlaneseq
        %v1635 = vshrl.u32 %v1634, 7
        %v1636 = vsub.s32 %v1633, %v1635
        %v1637 = vrot.slane %v1612, %v1636
        %v1639 = vunpack.c.l.s4 1966171168
        %v1640 = vunpack.c.0.s8 %v1639
        %v1641 = vlaneseq
        %v1642 = vshrl.u32 %v1641, 7
        %v1643 = vsub.s32 %v1640, %v1642
        %v1644 = vrot.slane %v1630, %v1643
        %v1645 = vcombine.high %v1637, %v1637
        %v1646 = vcombine.high %v1644, %v1644
        %v1648 = vunpack.c.l.s4 1966171168
        %v1649 = vunpack.c.0.s8 %v1648
        %v1650 = vlaneseq
        %v1651 = vshrl.u32 %v1650, 7
        %v1652 = vsub.s32 %v1649, %v1651
        %v1653 = vrot.slane %v1637, %v1652
        %v1655 = vunpack.c.l.s4 1966171168
        %v1656 = vunpack.c.0.s8 %v1655
        %v1657 = vlaneseq
        %v1658 = vshrl.u32 %v1657, 7
        %v1659 = vsub.s32 %v1656, %v1658
        %v1660 = vrot.slane %v1644, %v1659
        %v1662 = vunpack.c.l.s4 1966171168
        %v1663 = vunpack.c.0.s8 %v1662
        %v1664 = vlaneseq
        %v1665 = vshrl.u32 %v1664, 7
        %v1666 = vsub.s32 %v1663, %v1665
        %v1667 = vrot.slane %v1645, %v1666
        %v1669 = vunpack.c.l.s4 1966171168
        %v1670 = vunpack.c.0.s8 %v1669
        %v1671 = vlaneseq
        %v1672 = vshrl.u32 %v1671, 7
        %v1673 = vsub.s32 %v1670, %v1672
        %v1674 = vrot.slane %v1646, %v1673
        %v1675 = vcombine.high %v1653, %v1653
        %v1676 = vcombine.high %v1660, %v1660
        %v1677 = vcombine.high %v1667, %v1667
        %v1678 = vcombine.high %v1674, %v1674
        %v1679 = vcombine.high %v1615, %v1615
        %v1681 = vunpack.c.l.s4 1966171168
        %v1682 = vunpack.c.0.s8 %v1681
        %v1683 = vlaneseq
        %v1684 = vshrl.u32 %v1683, 7
        %v1685 = vsub.s32 %v1682, %v1684
        %v1686 = vrot.slane %v1615, %v1685
        %v1688 = vunpack.c.l.s4 1966171168
        %v1689 = vunpack.c.0.s8 %v1688
        %v1690 = vlaneseq
        %v1691 = vshrl.u32 %v1690, 7
        %v1692 = vsub.s32 %v1689, %v1691
        %v1693 = vrot.slane %v1679, %v1692
        %v1694 = vcombine.high %v1686, %v1686
        %v1695 = vcombine.high %v1693, %v1693
        %v1697 = vunpack.c.l.s4 1966171168
        %v1698 = vunpack.c.0.s8 %v1697
        %v1699 = vlaneseq
        %v1700 = vshrl.u32 %v1699, 7
        %v1701 = vsub.s32 %v1698, %v1700
        %v1702 = vrot.slane %v1686, %v1701
        %v1704 = vunpack.c.l.s4 1966171168
        %v1705 = vunpack.c.0.s8 %v1704
        %v1706 = vlaneseq
        %v1707 = vshrl.u32 %v1706, 7
        %v1708 = vsub.s32 %v1705, %v1707
        %v1709 = vrot.slane %v1693, %v1708
        %v1711 = vunpack.c.l.s4 1966171168
        %v1712 = vunpack.c.0.s8 %v1711
        %v1713 = vlaneseq
        %v1714 = vshrl.u32 %v1713, 7
        %v1715 = vsub.s32 %v1712, %v1714
        %v1716 = vrot.slane %v1694, %v1715
        %v1718 = vunpack.c.l.s4 1966171168
        %v1719 = vunpack.c.0.s8 %v1718
        %v1720 = vlaneseq
        %v1721 = vshrl.u32 %v1720, 7
        %v1722 = vsub.s32 %v1719, %v1721
        %v1723 = vrot.slane %v1695, %v1722
        %v1724 = vcombine.high %v1702, %v1702
        %v1725 = vcombine.high %v1709, %v1709
        %v1726 = vcombine.high %v1716, %v1716
        %v1727 = vcombine.high %v1723, %v1723
        %v1728 = vcombine.high %v1620, %v1620
        %v1730 = vunpack.c.l.s4 1966171168
        %v1731 = vunpack.c.0.s8 %v1730
        %v1732 = vlaneseq
        %v1733 = vshrl.u32 %v1732, 7
        %v1734 = vsub.s32 %v1731, %v1733
        %v1735 = vrot.slane %v1620, %v1734
        %v1737 = vunpack.c.l.s4 1966171168
        %v1738 = vunpack.c.0.s8 %v1737
        %v1739 = vlaneseq
        %v1740 = vshrl.u32 %v1739, 7
        %v1741 = vsub.s32 %v1738, %v1740
        %v1742 = vrot.slane %v1728, %v1741
        %v1743 = vcombine.high %v1735, %v1735
        %v1744 = vcombine.high %v1742, %v1742
        %v1746 = vunpack.c.l.s4 1966171168
        %v1747 = vunpack.c.0.s8 %v1746
        %v1748 = vlaneseq
        %v1749 = vshrl.u32 %v1748, 7
        %v1750 = vsub.s32 %v1747, %v1749
        %v1751 = vrot.slane %v1735, %v1750
        %v1753 = vunpack.c.l.s4 1966171168
        %v1754 = vunpack.c.0.s8 %v1753
        %v1755 = vlaneseq
        %v1756 = vshrl.u32 %v1755, 7
        %v1757 = vsub.s32 %v1754, %v1756
        %v1758 = vrot.slane %v1742, %v1757
        %v1760 = vunpack.c.l.s4 1966171168
        %v1761 = vunpack.c.0.s8 %v1760
        %v1762 = vlaneseq
        %v1763 = vshrl.u32 %v1762, 7
        %v1764 = vsub.s32 %v1761, %v1763
        %v1765 = vrot.slane %v1743, %v1764
        %v1767 = vunpack.c.l.s4 1966171168
        %v1768 = vunpack.c.0.s8 %v1767
        %v1769 = vlaneseq
        %v1770 = vshrl.u32 %v1769, 7
        %v1771 = vsub.s32 %v1768, %v1770
        %v1772 = vrot.slane %v1744, %v1771
        %v1773 = vcombine.high %v1751, %v1751
        %v1774 = vcombine.high %v1758, %v1758
        %v1775 = vcombine.high %v1765, %v1765
        %v1776 = vcombine.high %v1772, %v1772
        %v1777 = vcombine.high %v1623, %v1623
        %v1779 = vunpack.c.l.s4 1966171168
        %v1780 = vunpack.c.0.s8 %v1779
        %v1781 = vlaneseq
        %v1782 = vshrl.u32 %v1781, 7
        %v1783 = vsub.s32 %v1780, %v1782
        %v1784 = vrot.slane %v1623, %v1783
        %v1786 = vunpack.c.l.s4 1966171168
        %v1787 = vunpack.c.0.s8 %v1786
        %v1788 = vlaneseq
        %v1789 = vshrl.u32 %v1788, 7
        %v1790 = vsub.s32 %v1787, %v1789
        %v1791 = vrot.slane %v1777, %v1790
        %v1792 = vcombine.high %v1784, %v1784
        %v1793 = vcombine.high %v1791, %v1791
        %v1795 = vunpack.c.l.s4 1966171168
        %v1796 = vunpack.c.0.s8 %v1795
        %v1797 = vlaneseq
        %v1798 = vshrl.u32 %v1797, 7
        %v1799 = vsub.s32 %v1796, %v1798
        %v1800 = vrot.slane %v1784, %v1799
        %v1802 = vunpack.c.l.s4 1966171168
        %v1803 = vunpack.c.0.s8 %v1802
        %v1804 = vlaneseq
        %v1805 = vshrl.u32 %v1804, 7
        %v1806 = vsub.s32 %v1803, %v1805
        %v1807 = vrot.slane %v1791, %v1806
        %v1809 = vunpack.c.l.s4 1966171168
        %v1810 = vunpack.c.0.s8 %v1809
        %v1811 = vlaneseq
        %v1812 = vshrl.u32 %v1811, 7
        %v1813 = vsub.s32 %v1810, %v1812
        %v1814 = vrot.slane %v1792, %v1813
        %v1816 = vunpack.c.l.s4 1966171168
        %v1817 = vunpack.c.0.s8 %v1816
        %v1818 = vlaneseq
        %v1819 = vshrl.u32 %v1818, 7
        %v1820 = vsub.s32 %v1817, %v1819
        %v1821 = vrot.slane %v1793, %v1820
        %v1822 = vcombine.high %v1800, %v1800
        %v1823 = vcombine.high %v1807, %v1807
        %v1824 = vcombine.high %v1814, %v1814
        %v1825 = vcombine.high %v1821, %v1821
        %v1826 = vadd.f32 %v919, 1.0
        %v1827 = vadd.f32 %v920, 1.0
        %v1828 = vadd.f32 %v921, 1.0
        %v1829 = vadd.f32 %v922, 1.0
        %v1834 = vcombine.high %v1826, %v1826
        %v1836 = vunpack.c.l.s4 1966171168
        %v1837 = vunpack.c.0.s8 %v1836
        %v1838 = vlaneseq
        %v1839 = vshrl.u32 %v1838, 7
        %v1840 = vsub.s32 %v1837, %v1839
        %v1841 = vrot.slane %v1826, %v1840
        %v1843 = vunpack.c.l.s4 1966171168
        %v1844 = vunpack.c.0.s8 %v1843
        %v1845 = vlaneseq
        %v1846 = vshrl.u32 %v1845, 7
        %v1847 = vsub.s32 %v1844, %v1846
        %v1848 = vrot.slane %v1834, %v1847
        %v1849 = vcombine.high %v1841, %v1841
        %v1850 = vcombine.high %v1848, %v1848
        %v1852 = vunpack.c.l.s4 1966171168
        %v1853 = vunpack.c.0.s8 %v1852
        %v1854 = vlaneseq
        %v1855 = vshrl.u32 %v1854, 7
        %v1856 = vsub.s32 %v1853, %v1855
        %v1857 = vrot.slane %v1841, %v1856
        %v1859 = vunpack.c.l.s4 1966171168
        %v1860 = vunpack.c.0.s8 %v1859
        %v1861 = vlaneseq
        %v1862 = vshrl.u32 %v1861, 7
        %v1863 = vsub.s32 %v1860, %v1862
        %v1864 = vrot.slane %v1848, %v1863
        %v1866 = vunpack.c.l.s4 1966171168
        %v1867 = vunpack.c.0.s8 %v1866
        %v1868 = vlaneseq
        %v1869 = vshrl.u32 %v1868, 7
        %v1870 = vsub.s32 %v1867, %v1869
        %v1871 = vrot.slane %v1849, %v1870
        %v1873 = vunpack.c.l.s4 1966171168
        %v1874 = vunpack.c.0.s8 %v1873
        %v1875 = vlaneseq
        %v1876 = vshrl.u32 %v1875, 7
        %v1877 = vsub.s32 %v1874, %v1876
        %v1878 = vrot.slane %v1850, %v1877
        %v1879 = vcombine.high %v1857, %v1857
        %v1880 = vcombine.high %v1864, %v1864
        %v1881 = vcombine.high %v1871, %v1871
        %v1882 = vcombine.high %v1878, %v1878
        %v1883 = vcombine.high %v1827, %v1827
        %v1885 = vunpack.c.l.s4 1966171168
        %v1886 = vunpack.c.0.s8 %v1885
        %v1887 = vlaneseq
        %v1888 = vshrl.u32 %v1887, 7
        %v1889 = vsub.s32 %v1886, %v1888
        %v1890 = vrot.slane %v1827, %v1889
        %v1892 = vunpack.c.l.s4 1966171168
        %v1893 = vunpack.c.0.s8 %v1892
        %v1894 = vlaneseq
        %v1895 = vshrl.u32 %v1894, 7
        %v1896 = vsub.s32 %v1893, %v1895
        %v1897 = vrot.slane %v1883, %v1896
        %v1898 = vcombine.high %v1890, %v1890
        %v1899 = vcombine.high %v1897, %v1897
        %v1901 = vunpack.c.l.s4 1966171168
        %v1902 = vunpack.c.0.s8 %v1901
        %v1903 = vlaneseq
        %v1904 = vshrl.u32 %v1903, 7
        %v1905 = vsub.s32 %v1902, %v1904
        %v1906 = vrot.slane %v1890, %v1905
        %v1908 = vunpack.c.l.s4 1966171168
        %v1909 = vunpack.c.0.s8 %v1908
        %v1910 = vlaneseq
        %v1911 = vshrl.u32 %v1910, 7
        %v1912 = vsub.s32 %v1909, %v1911
        %v1913 = vrot.slane %v1897, %v1912
        %v1915 = vunpack.c.l.s4 1966171168
        %v1916 = vunpack.c.0.s8 %v1915
        %v1917 = vlaneseq
        %v1918 = vshrl.u32 %v1917, 7
        %v1919 = vsub.s32 %v1916, %v1918
        %v1920 = vrot.slane %v1898, %v1919
        %v1922 = vunpack.c.l.s4 1966171168
        %v1923 = vunpack.c.0.s8 %v1922
        %v1924 = vlaneseq
        %v1925 = vshrl.u32 %v1924, 7
        %v1926 = vsub.s32 %v1923, %v1925
        %v1927 = vrot.slane %v1899, %v1926
        %v1928 = vcombine.high %v1906, %v1906
        %v1929 = vcombine.high %v1913, %v1913
        %v1930 = vcombine.high %v1920, %v1920
        %v1931 = vcombine.high %v1927, %v1927
        %v1932 = vcombine.high %v1828, %v1828
        %v1934 = vunpack.c.l.s4 1966171168
        %v1935 = vunpack.c.0.s8 %v1934
        %v1936 = vlaneseq
        %v1937 = vshrl.u32 %v1936, 7
        %v1938 = vsub.s32 %v1935, %v1937
        %v1939 = vrot.slane %v1828, %v1938
        %v1941 = vunpack.c.l.s4 1966171168
        %v1942 = vunpack.c.0.s8 %v1941
        %v1943 = vlaneseq
        %v1944 = vshrl.u32 %v1943, 7
        %v1945 = vsub.s32 %v1942, %v1944
        %v1946 = vrot.slane %v1932, %v1945
        %v1947 = vcombine.high %v1939, %v1939
        %v1948 = vcombine.high %v1946, %v1946
        %v1950 = vunpack.c.l.s4 1966171168
        %v1951 = vunpack.c.0.s8 %v1950
        %v1952 = vlaneseq
        %v1953 = vshrl.u32 %v1952, 7
        %v1954 = vsub.s32 %v1951, %v1953
        %v1955 = vrot.slane %v1939, %v1954
        %v1957 = vunpack.c.l.s4 1966171168
        %v1958 = vunpack.c.0.s8 %v1957
        %v1959 = vlaneseq
        %v1960 = vshrl.u32 %v1959, 7
        %v1961 = vsub.s32 %v1958, %v1960
        %v1962 = vrot.slane %v1946, %v1961
        %v1964 = vunpack.c.l.s4 1966171168
        %v1965 = vunpack.c.0.s8 %v1964
        %v1966 = vlaneseq
        %v1967 = vshrl.u32 %v1966, 7
        %v1968 = vsub.s32 %v1965, %v1967
        %v1969 = vrot.slane %v1947, %v1968
        %v1971 = vunpack.c.l.s4 1966171168
        %v1972 = vunpack.c.0.s8 %v1971
        %v1973 = vlaneseq
        %v1974 = vshrl.u32 %v1973, 7
        %v1975 = vsub.s32 %v1972, %v1974
        %v1976 = vrot.slane %v1948, %v1975
        %v1977 = vcombine.high %v1955, %v1955
        %v1978 = vcombine.high %v1962, %v1962
        %v1979 = vcombine.high %v1969, %v1969
        %v1980 = vcombine.high %v1976, %v1976
        %v1981 = vcombine.high %v1829, %v1829
        %v1983 = vunpack.c.l.s4 1966171168
        %v1984 = vunpack.c.0.s8 %v1983
        %v1985 = vlaneseq
        %v1986 = vshrl.u32 %v1985, 7
        %v1987 = vsub.s32 %v1984, %v1986
        %v1988 = vrot.slane %v1829, %v1987
        %v1990 = vunpack.c.l.s4 1966171168
        %v1991 = vunpack.c.0.s8 %v1990
        %v1992 = vlaneseq
        %v1993 = vshrl.u32 %v1992, 7
        %v1994 = vsub.s32 %v1991, %v1993
        %v1995 = vrot.slane %v1981, %v1994
        %v1996 = vcombine.high %v1988, %v1988
        %v1997 = vcombine.high %v1995, %v1995
        %v1999 = vunpack.c.l.s4 1966171168
        %v2000 = vunpack.c.0.s8 %v1999
        %v2001 = vlaneseq
        %v2002 = vshrl.u32 %v2001, 7
        %v2003 = vsub.s32 %v2000, %v2002
        %v2004 = vrot.slane %v1988, %v2003
        %v2006 = vunpack.c.l.s4 1966171168
        %v2007 = vunpack.c.0.s8 %v2006
        %v2008 = vlaneseq
        %v2009 = vshrl.u32 %v2008, 7
        %v2010 = vsub.s32 %v2007, %v2009
        %v2011 = vrot.slane %v1995, %v2010
        %v2013 = vunpack.c.l.s4 1966171168
        %v2014 = vunpack.c.0.s8 %v2013
        %v2015 = vlaneseq
        %v2016 = vshrl.u32 %v2015, 7
        %v2017 = vsub.s32 %v2014, %v2016
        %v2018 = vrot.slane %v1996, %v2017
        %v2020 = vunpack.c.l.s4 1966171168
        %v2021 = vunpack.c.0.s8 %v2020
        %v2022 = vlaneseq
        %v2023 = vshrl.u32 %v2022, 7
        %v2024 = vsub.s32 %v2021, %v2023
        %v2025 = vrot.slane %v1997, %v2024
        %v2026 = vcombine.high %v2004, %v2004
        %v2027 = vcombine.high %v2011, %v2011
        %v2028 = vcombine.high %v2018, %v2018
        %v2029 = vcombine.high %v2025, %v2025
        %v2030 = vlaneseq
        %v2031 = vshrl.u32 %v2030, 7
        %v2032 = vsub.s32 0, %v2031
        %v2033 = vrot.slane %v1857, %v2032
        %v2034 = vlaneseq
        %v2035 = vshrl.u32 %v2034, 7
        %v2036 = vsub.s32 0, %v2035
        %v2037 = vrot.slane %v1871, %v2036
        %v2038 = vlaneseq
        %v2039 = vshrl.u32 %v2038, 7
        %v2040 = vsub.s32 0, %v2039
        %v2041 = vrot.slane %v1879, %v2040
        %v2042 = vlaneseq
        %v2043 = vshrl.u32 %v2042, 7
        %v2044 = vsub.s32 0, %v2043
        %v2045 = vrot.slane %v1881, %v2044
        %v2046 = vlaneseq
        %v2047 = vshrl.u32 %v2046, 7
        %v2048 = vsub.s32 0, %v2047
        %v2049 = vrot.slane %v1864, %v2048
        %v2050 = vlaneseq
        %v2051 = vshrl.u32 %v2050, 7
        %v2052 = vsub.s32 0, %v2051
        %v2053 = vrot.slane %v1878, %v2052
        %v2054 = vlaneseq
        %v2055 = vshrl.u32 %v2054, 7
        %v2056 = vsub.s32 0, %v2055
        %v2057 = vrot.slane %v1880, %v2056
        %v2058 = vlaneseq
        %v2059 = vshrl.u32 %v2058, 7
        %v2060 = vsub.s32 0, %v2059
        %v2061 = vrot.slane %v1882, %v2060
        %v2062 = vlaneseq
        %v2063 = vshrl.u32 %v2062, 7
        %v2064 = vsub.s32 0, %v2063
        %v2065 = vrot.slane %v1906, %v2064
        %v2066 = vlaneseq
        %v2067 = vshrl.u32 %v2066, 7
        %v2068 = vsub.s32 0, %v2067
        %v2069 = vrot.slane %v1920, %v2068
        %v2070 = vlaneseq
        %v2071 = vshrl.u32 %v2070, 7
        %v2072 = vsub.s32 0, %v2071
        %v2073 = vrot.slane %v1928, %v2072
        %v2074 = vlaneseq
        %v2075 = vshrl.u32 %v2074, 7
        %v2076 = vsub.s32 0, %v2075
        %v2077 = vrot.slane %v1930, %v2076
        %v2078 = vlaneseq
        %v2079 = vshrl.u32 %v2078, 7
        %v2080 = vsub.s32 0, %v2079
        %v2081 = vrot.slane %v1913, %v2080
        %v2082 = vlaneseq
        %v2083 = vshrl.u32 %v2082, 7
        %v2084 = vsub.s32 0, %v2083
        %v2085 = vrot.slane %v1927, %v2084
        %v2086 = vlaneseq
        %v2087 = vshrl.u32 %v2086, 7
        %v2088 = vsub.s32 0, %v2087
        %v2089 = vrot.slane %v1929, %v2088
        %v2090 = vlaneseq
        %v2091 = vshrl.u32 %v2090, 7
        %v2092 = vsub.s32 0, %v2091
        %v2093 = vrot.slane %v1931, %v2092
        %v2094 = vlaneseq
        %v2095 = vshrl.u32 %v2094, 7
        %v2096 = vsub.s32 0, %v2095
        %v2097 = vrot.slane %v1955, %v2096
        %v2098 = vlaneseq
        %v2099 = vshrl.u32 %v2098, 7
        %v2100 = vsub.s32 0, %v2099
        %v2101 = vrot.slane %v1969, %v2100
        %v2102 = vlaneseq
        %v2103 = vshrl.u32 %v2102, 7
        %v2104 = vsub.s32 0, %v2103
        %v2105 = vrot.slane %v1977, %v2104
        %v2106 = vlaneseq
        %v2107 = vshrl.u32 %v2106, 7
        %v2108 = vsub.s32 0, %v2107
        %v2109 = vrot.slane %v1979, %v2108
        %v2110 = vlaneseq
        %v2111 = vshrl.u32 %v2110, 7
        %v2112 = vsub.s32 0, %v2111
        %v2113 = vrot.slane %v1962, %v2112
        %v2114 = vlaneseq
        %v2115 = vshrl.u32 %v2114, 7
        %v2116 = vsub.s32 0, %v2115
        %v2117 = vrot.slane %v1976, %v2116
        %v2118 = vlaneseq
        %v2119 = vshrl.u32 %v2118, 7
        %v2120 = vsub.s32 0, %v2119
        %v2121 = vrot.slane %v1978, %v2120
        %v2122 = vlaneseq
        %v2123 = vshrl.u32 %v2122, 7
        %v2124 = vsub.s32 0, %v2123
        %v2125 = vrot.slane %v1980, %v2124
        %v2126 = vlaneseq
        %v2127 = vshrl.u32 %v2126, 7
        %v2128 = vsub.s32 0, %v2127
        %v2129 = vrot.slane %v2004, %v2128
        %v2130 = vlaneseq
        %v2131 = vshrl.u32 %v2130, 7
        %v2132 = vsub.s32 0, %v2131
        %v2133 = vrot.slane %v2018, %v2132
        %v2134 = vlaneseq
        %v2135 = vshrl.u32 %v2134, 7
        %v2136 = vsub.s32 0, %v2135
        %v2137 = vrot.slane %v2026, %v2136
        %v2138 = vlaneseq
        %v2139 = vshrl.u32 %v2138, 7
        %v2140 = vsub.s32 0, %v2139
        %v2141 = vrot.slane %v2028, %v2140
        %v2142 = vlaneseq
        %v2143 = vshrl.u32 %v2142, 7
        %v2144 = vsub.s32 0, %v2143
        %v2145 = vrot.slane %v2011, %v2144
        %v2146 = vlaneseq
        %v2147 = vshrl.u32 %v2146, 7
        %v2148 = vsub.s32 0, %v2147
        %v2149 = vrot.slane %v2025, %v2148
        %v2150 = vlaneseq
        %v2151 = vshrl.u32 %v2150, 7
        %v2152 = vsub.s32 0, %v2151
        %v2153 = vrot.slane %v2027, %v2152
        %v2154 = vlaneseq
        %v2155 = vshrl.u32 %v2154, 7
        %v2156 = vsub.s32 0, %v2155
        %v2157 = vrot.slane %v2029, %v2156
        %v2190 = vsub.f32 %v2033, %v1038
        %v2191 = vsub.f32 %v2037, %v1041
        %v2192 = vsub.f32 %v2041, %v1046
        %v2193 = vsub.f32 %v2045, %v1049
        %v2194 = vsub.f32 %v2049, %v1054
        %v2195 = vsub.f32 %v2053, %v1057
        %v2196 = vsub.f32 %v2057, %v1062
        %v2197 = vsub.f32 %v2061, %v1065
        %v2198 = vsub.f32 %v2065, %v1070
        %v2199 = vsub.f32 %v2069, %v1073
        %v2200 = vsub.f32 %v2073, %v1078
        %v2201 = vsub.f32 %v2077, %v1081
        %v2202 = vsub.f32 %v2081, %v1086
        %v2203 = vsub.f32 %v2085, %v1089
        %v2204 = vsub.f32 %v2089, %v1094
        %v2205 = vsub.f32 %v2093, %v1097
        %v2206 = vsub.f32 %v2097, %v1102
        %v2207 = vsub.f32 %v2101, %v1105
        %v2208 = vsub.f32 %v2105, %v1110
        %v2209 = vsub.f32 %v2109, %v1113
        %v2210 = vsub.f32 %v2113, %v1118
        %v2211 = vsub.f32 %v2117, %v1121
        %v2212 = vsub.f32 %v2121, %v1126
        %v2213 = vsub.f32 %v2125, %v1129
        %v2214 = vsub.f32 %v2129, %v1134
        %v2215 = vsub.f32 %v2133, %v1137
        %v2216 = vsub.f32 %v2137, %v1142
        %v2217 = vsub.f32 %v2141, %v1145
        %v2218 = vsub.f32 %v2145, %v1150
        %v2219 = vsub.f32 %v2149, %v1153
        %v2220 = vsub.f32 %v2153, %v1158
        %v2221 = vsub.f32 %v2157, %v1161
        %v2222 = vlaneseq
        %v2223 = vshrl.u32 %v2222, 7
        %v2224 = vsub.s32 0, %v2223
        %v2225 = vrot.slane %v1653, %v2224
        %v2226 = vlaneseq
        %v2227 = vshrl.u32 %v2226, 7
        %v2228 = vsub.s32 0, %v2227
        %v2229 = vrot.slane %v1667, %v2228
        %v2230 = vlaneseq
        %v2231 = vshrl.u32 %v2230, 7
        %v2232 = vsub.s32 0, %v2231
        %v2233 = vrot.slane %v1675, %v2232
        %v2234 = vlaneseq
        %v2235 = vshrl.u32 %v2234, 7
        %v2236 = vsub.s32 0, %v2235
        %v2237 = vrot.slane %v1677, %v2236
        %v2238 = vlaneseq
        %v2239 = vshrl.u32 %v2238, 7
        %v2240 = vsub.s32 0, %v2239
        %v2241 = vrot.slane %v1660, %v2240
        %v2242 = vlaneseq
        %v2243 = vshrl.u32 %v2242, 7
        %v2244 = vsub.s32 0, %v2243
        %v2245 = vrot.slane %v1674, %v2244
        %v2246 = vlaneseq
        %v2247 = vshrl.u32 %v2246, 7
        %v2248 = vsub.s32 0, %v2247
        %v2249 = vrot.slane %v1676, %v2248
        %v2250 = vlaneseq
        %v2251 = vshrl.u32 %v2250, 7
        %v2252 = vsub.s32 0, %v2251
        %v2253 = vrot.slane %v1678, %v2252
        %v2254 = vlaneseq
        %v2255 = vshrl.u32 %v2254, 7
        %v2256 = vsub.s32 0, %v2255
        %v2257 = vrot.slane %v1702, %v2256
        %v2258 = vlaneseq
        %v2259 = vshrl.u32 %v2258, 7
        %v2260 = vsub.s32 0, %v2259
        %v2261 = vrot.slane %v1716, %v2260
        %v2262 = vlaneseq
        %v2263 = vshrl.u32 %v2262, 7
        %v2264 = vsub.s32 0, %v2263
        %v2265 = vrot.slane %v1724, %v2264
        %v2266 = vlaneseq
        %v2267 = vshrl.u32 %v2266, 7
        %v2268 = vsub.s32 0, %v2267
        %v2269 = vrot.slane %v1726, %v2268
        %v2270 = vlaneseq
        %v2271 = vshrl.u32 %v2270, 7
        %v2272 = vsub.s32 0, %v2271
        %v2273 = vrot.slane %v1709, %v2272
        %v2274 = vlaneseq
        %v2275 = vshrl.u32 %v2274, 7
        %v2276 = vsub.s32 0, %v2275
        %v2277 = vrot.slane %v1723, %v2276
        %v2278 = vlaneseq
        %v2279 = vshrl.u32 %v2278, 7
        %v2280 = vsub.s32 0, %v2279
        %v2281 = vrot.slane %v1725, %v2280
        %v2282 = vlaneseq
        %v2283 = vshrl.u32 %v2282, 7
        %v2284 = vsub.s32 0, %v2283
        %v2285 = vrot.slane %v1727, %v2284
        %v2286 = vlaneseq
        %v2287 = vshrl.u32 %v2286, 7
        %v2288 = vsub.s32 0, %v2287
        %v2289 = vrot.slane %v1751, %v2288
        %v2290 = vlaneseq
        %v2291 = vshrl.u32 %v2290, 7
        %v2292 = vsub.s32 0, %v2291
        %v2293 = vrot.slane %v1765, %v2292
        %v2294 = vlaneseq
        %v2295 = vshrl.u32 %v2294, 7
        %v2296 = vsub.s32 0, %v2295
        %v2297 = vrot.slane %v1773, %v2296
        %v2298 = vlaneseq
        %v2299 = vshrl.u32 %v2298, 7
        %v2300 = vsub.s32 0, %v2299
        %v2301 = vrot.slane %v1775, %v2300
        %v2302 = vlaneseq
        %v2303 = vshrl.u32 %v2302, 7
        %v2304 = vsub.s32 0, %v2303
        %v2305 = vrot.slane %v1758, %v2304
        %v2306 = vlaneseq
        %v2307 = vshrl.u32 %v2306, 7
        %v2308 = vsub.s32 0, %v2307
        %v2309 = vrot.slane %v1772, %v2308
        %v2310 = vlaneseq
        %v2311 = vshrl.u32 %v2310, 7
        %v2312 = vsub.s32 0, %v2311
        %v2313 = vrot.slane %v1774, %v2312
        %v2314 = vlaneseq
        %v2315 = vshrl.u32 %v2314, 7
        %v2316 = vsub.s32 0, %v2315
        %v2317 = vrot.slane %v1776, %v2316
        %v2318 = vlaneseq
        %v2319 = vshrl.u32 %v2318, 7
        %v2320 = vsub.s32 0, %v2319
        %v2321 = vrot.slane %v1800, %v2320
        %v2322 = vlaneseq
        %v2323 = vshrl.u32 %v2322, 7
        %v2324 = vsub.s32 0, %v2323
        %v2325 = vrot.slane %v1814, %v2324
        %v2326 = vlaneseq
        %v2327 = vshrl.u32 %v2326, 7
        %v2328 = vsub.s32 0, %v2327
        %v2329 = vrot.slane %v1822, %v2328
        %v2330 = vlaneseq
        %v2331 = vshrl.u32 %v2330, 7
        %v2332 = vsub.s32 0, %v2331
        %v2333 = vrot.slane %v1824, %v2332
        %v2334 = vlaneseq
        %v2335 = vshrl.u32 %v2334, 7
        %v2336 = vsub.s32 0, %v2335
        %v2337 = vrot.slane %v1807, %v2336
        %v2338 = vlaneseq
        %v2339 = vshrl.u32 %v2338, 7
        %v2340 = vsub.s32 0, %v2339
        %v2341 = vrot.slane %v1821, %v2340
        %v2342 = vlaneseq
        %v2343 = vshrl.u32 %v2342, 7
        %v2344 = vsub.s32 0, %v2343
        %v2345 = vrot.slane %v1823, %v2344
        %v2346 = vlaneseq
        %v2347 = vshrl.u32 %v2346, 7
        %v2348 = vsub.s32 0, %v2347
        %v2349 = vrot.slane %v1825, %v2348
        %v2382 = vmul.f32 %v2190, %v2225
        %v2383 = vmul.f32 %v2191, %v2229
        %v2384 = vmul.f32 %v2192, %v2233
        %v2385 = vmul.f32 %v2193, %v2237
        %v2386 = vmul.f32 %v2194, %v2241
        %v2387 = vmul.f32 %v2195, %v2245
        %v2388 = vmul.f32 %v2196, %v2249
        %v2389 = vmul.f32 %v2197, %v2253
        %v2390 = vmul.f32 %v2198, %v2257
        %v2391 = vmul.f32 %v2199, %v2261
        %v2392 = vmul.f32 %v2200, %v2265
        %v2393 = vmul.f32 %v2201, %v2269
        %v2394 = vmul.f32 %v2202, %v2273
        %v2395 = vmul.f32 %v2203, %v2277
        %v2396 = vmul.f32 %v2204, %v2281
        %v2397 = vmul.f32 %v2205, %v2285
        %v2398 = vmul.f32 %v2206, %v2289
        %v2399 = vmul.f32 %v2207, %v2293
        %v2400 = vmul.f32 %v2208, %v2297
        %v2401 = vmul.f32 %v2209, %v2301
        %v2402 = vmul.f32 %v2210, %v2305
        %v2403 = vmul.f32 %v2211, %v2309
        %v2404 = vmul.f32 %v2212, %v2313
        %v2405 = vmul.f32 %v2213, %v2317
        %v2406 = vmul.f32 %v2214, %v2321
        %v2407 = vmul.f32 %v2215, %v2325
        %v2408 = vmul.f32 %v2216, %v2329
        %v2409 = vmul.f32 %v2217, %v2333
        %v2410 = vmul.f32 %v2218, %v2337
        %v2411 = vmul.f32 %v2219, %v2341
        %v2412 = vmul.f32 %v2220, %v2345
        %v2413 = vmul.f32 %v2221, %v2349
        %v2414 = vpack.c.bf16 %v2383, %v2382
        %v2415 = vpack.c.bf16 %v2385, %v2384
        %v2416 = vpack.c.bf16 %v2387, %v2386
        %v2417 = vpack.c.bf16 %v2389, %v2388
        %v2418 = vpack.c.bf16 %v2391, %v2390
        %v2419 = vpack.c.bf16 %v2393, %v2392
        %v2420 = vpack.c.bf16 %v2395, %v2394
        %v2421 = vpack.c.bf16 %v2397, %v2396
        %v2422 = vpack.c.bf16 %v2399, %v2398
        %v2423 = vpack.c.bf16 %v2401, %v2400
        %v2424 = vpack.c.bf16 %v2403, %v2402
        %v2425 = vpack.c.bf16 %v2405, %v2404
        %v2426 = vpack.c.bf16 %v2407, %v2406
        %v2427 = vpack.c.bf16 %v2409, %v2408
        %v2428 = vpack.c.bf16 %v2411, %v2410
        %v2429 = vpack.c.bf16 %v2413, %v2412
        %v2430 = vld [vmem:[%s14] sm:$0xff]
        %v2431 = vld [vmem:[%s14 + $0x8] sm:$0xff]
        %v2432 = vld [vmem:[%s14 + $0x10] sm:$0xff]
        %v2433 = vld [vmem:[%s14 + $0x18] sm:$0xff]
        %v2434 = vld [vmem:[%s14 + $0x20] sm:$0xff]
        %v2435 = vld [vmem:[%s14 + $0x28] sm:$0xff]
        %v2436 = vld [vmem:[%s14 + $0x30] sm:$0xff]
        %v2437 = vld [vmem:[%s14 + $0x38] sm:$0xff]
        %v2438 = vld [vmem:[%s14 + $0x40] sm:$0xff]
        %v2439 = vld [vmem:[%s14 + $0x48] sm:$0xff]
        %v2440 = vld [vmem:[%s14 + $0x50] sm:$0xff]
        %v2441 = vld [vmem:[%s14 + $0x58] sm:$0xff]
        %v2442 = vld [vmem:[%s14 + $0x60] sm:$0xff]
        %v2443 = vld [vmem:[%s14 + $0x68] sm:$0xff]
        %v2444 = vld [vmem:[%s14 + $0x70] sm:$0xff]
        %v2445 = vld [vmem:[%s14 + $0x78] sm:$0xff]
        %v2446 = vld [vmem:[%s14 + $0x80] sm:$0xff]
        %v2447 = vld [vmem:[%s14 + $0x88] sm:$0xff]
        %v2448 = vld [vmem:[%s14 + $0x90] sm:$0xff]
        %v2449 = vld [vmem:[%s14 + $0x98] sm:$0xff]
        %v2450 = vld [vmem:[%s14 + $0xa0] sm:$0xff]
        %v2451 = vld [vmem:[%s14 + $0xa8] sm:$0xff]
        %v2452 = vld [vmem:[%s14 + $0xb0] sm:$0xff]
        %v2453 = vld [vmem:[%s14 + $0xb8] sm:$0xff]
        %v2454 = vld [vmem:[%s14 + $0xc0] sm:$0xff]
        %v2455 = vld [vmem:[%s14 + $0xc8] sm:$0xff]
        %v2456 = vld [vmem:[%s14 + $0xd0] sm:$0xff]
        %v2457 = vld [vmem:[%s14 + $0xd8] sm:$0xff]
        %v2458 = vld [vmem:[%s14 + $0xe0] sm:$0xff]
        %v2459 = vld [vmem:[%s14 + $0xe8] sm:$0xff]
        %v2460 = vld [vmem:[%s14 + $0xf0] sm:$0xff]
        %v2461 = vld [vmem:[%s14 + $0xf8] sm:$0xff]
        %v2494 = vunpack.c.l.b16 %v2430
        %v2495 = vunpack.c.h.b16 %v2430
        %v2496 = vunpack.c.l.b16 %v2431
        %v2497 = vunpack.c.h.b16 %v2431
        %v2498 = vunpack.c.l.b16 %v2432
        %v2499 = vunpack.c.h.b16 %v2432
        %v2500 = vunpack.c.l.b16 %v2433
        %v2501 = vunpack.c.h.b16 %v2433
        %v2502 = vunpack.c.l.b16 %v2434
        %v2503 = vunpack.c.h.b16 %v2434
        %v2504 = vunpack.c.l.b16 %v2435
        %v2505 = vunpack.c.h.b16 %v2435
        %v2506 = vunpack.c.l.b16 %v2436
        %v2507 = vunpack.c.h.b16 %v2436
        %v2508 = vunpack.c.l.b16 %v2437
        %v2509 = vunpack.c.h.b16 %v2437
        %v2510 = vunpack.c.l.b16 %v2438
        %v2511 = vunpack.c.h.b16 %v2438
        %v2512 = vunpack.c.l.b16 %v2439
        %v2513 = vunpack.c.h.b16 %v2439
        %v2514 = vunpack.c.l.b16 %v2440
        %v2515 = vunpack.c.h.b16 %v2440
        %v2516 = vunpack.c.l.b16 %v2441
        %v2517 = vunpack.c.h.b16 %v2441
        %v2518 = vunpack.c.l.b16 %v2442
        %v2519 = vunpack.c.h.b16 %v2442
        %v2520 = vunpack.c.l.b16 %v2443
        %v2521 = vunpack.c.h.b16 %v2443
        %v2522 = vunpack.c.l.b16 %v2444
        %v2523 = vunpack.c.h.b16 %v2444
        %v2524 = vunpack.c.l.b16 %v2445
        %v2525 = vunpack.c.h.b16 %v2445
        %v2526 = vunpack.c.l.b16 %v2446
        %v2527 = vunpack.c.h.b16 %v2446
        %v2528 = vunpack.c.l.b16 %v2447
        %v2529 = vunpack.c.h.b16 %v2447
        %v2530 = vunpack.c.l.b16 %v2448
        %v2531 = vunpack.c.h.b16 %v2448
        %v2532 = vunpack.c.l.b16 %v2449
        %v2533 = vunpack.c.h.b16 %v2449
        %v2534 = vunpack.c.l.b16 %v2450
        %v2535 = vunpack.c.h.b16 %v2450
        %v2536 = vunpack.c.l.b16 %v2451
        %v2537 = vunpack.c.h.b16 %v2451
        %v2538 = vunpack.c.l.b16 %v2452
        %v2539 = vunpack.c.h.b16 %v2452
        %v2540 = vunpack.c.l.b16 %v2453
        %v2541 = vunpack.c.h.b16 %v2453
        %v2542 = vunpack.c.l.b16 %v2454
        %v2543 = vunpack.c.h.b16 %v2454
        %v2544 = vunpack.c.l.b16 %v2455
        %v2545 = vunpack.c.h.b16 %v2455
        %v2546 = vunpack.c.l.b16 %v2456
        %v2547 = vunpack.c.h.b16 %v2456
        %v2548 = vunpack.c.l.b16 %v2457
        %v2549 = vunpack.c.h.b16 %v2457
        %v2550 = vunpack.c.l.b16 %v2458
        %v2551 = vunpack.c.h.b16 %v2458
        %v2552 = vunpack.c.l.b16 %v2459
        %v2553 = vunpack.c.h.b16 %v2459
        %v2554 = vunpack.c.l.b16 %v2460
        %v2555 = vunpack.c.h.b16 %v2460
        %v2556 = vunpack.c.l.b16 %v2461
        %v2557 = vunpack.c.h.b16 %v2461
        %v2558 = vpack.c.b16 %v2498, %v2494
        %v2559 = vpack.c.b16 %v2499, %v2495
        %v2560 = vpack.c.b16 %v2500, %v2496
        %v2561 = vpack.c.b16 %v2501, %v2497
        %v2562 = vpack.c.b16 %v2506, %v2502
        %v2563 = vpack.c.b16 %v2507, %v2503
        %v2564 = vpack.c.b16 %v2508, %v2504
        %v2565 = vpack.c.b16 %v2509, %v2505
        %v2566 = vpack.c.b16 %v2514, %v2510
        %v2567 = vpack.c.b16 %v2515, %v2511
        %v2568 = vpack.c.b16 %v2516, %v2512
        %v2569 = vpack.c.b16 %v2517, %v2513
        %v2570 = vpack.c.b16 %v2522, %v2518
        %v2571 = vpack.c.b16 %v2523, %v2519
        %v2572 = vpack.c.b16 %v2524, %v2520
        %v2573 = vpack.c.b16 %v2525, %v2521
        %v2574 = vpack.c.b16 %v2530, %v2526
        %v2575 = vpack.c.b16 %v2531, %v2527
        %v2576 = vpack.c.b16 %v2532, %v2528
        %v2577 = vpack.c.b16 %v2533, %v2529
        %v2578 = vpack.c.b16 %v2538, %v2534
        %v2579 = vpack.c.b16 %v2539, %v2535
        %v2580 = vpack.c.b16 %v2540, %v2536
        %v2581 = vpack.c.b16 %v2541, %v2537
        %v2582 = vpack.c.b16 %v2546, %v2542
        %v2583 = vpack.c.b16 %v2547, %v2543
        %v2584 = vpack.c.b16 %v2548, %v2544
        %v2585 = vpack.c.b16 %v2549, %v2545
        %v2586 = vpack.c.b16 %v2554, %v2550
        %v2587 = vpack.c.b16 %v2555, %v2551
        %v2588 = vpack.c.b16 %v2556, %v2552
        %v2589 = vpack.c.b16 %v2557, %v2553
        %2622 = vmatprep.subr.bf16.mxu0 %v2559
        %2623 = vmatpush1.bf16.msra.mxu0 %v2558
        %2624 = vmatprep.subr.bf16.mxu0 %v2563
        %2625 = vmatpush1.bf16.msra.mxu0 %v2562
        %2626 = vmatprep.subr.bf16.mxu0 %v2567
        %2627 = vmatpush1.bf16.msra.mxu0 %v2566
        %2628 = vmatprep.subr.bf16.mxu0 %v2571
        %2629 = vmatpush1.bf16.msra.mxu0 %v2570
        %2630 = vmatprep.subr.bf16.mxu0 %v2575
        %2631 = vmatpush1.bf16.msra.mxu0 %v2574
        %2632 = vmatprep.subr.bf16.mxu0 %v2579
        %2633 = vmatpush1.bf16.msra.mxu0 %v2578
        %2634 = vmatprep.subr.bf16.mxu0 %v2583
        %2635 = vmatpush1.bf16.msra.mxu0 %v2582
        %2636 = vmatprep.subr.bf16.mxu0 %v2587
        %2637 = vmatpush1.bf16.msra.mxu0 %v2586
        %2638 = vmatprep.subr.bf16.mxu0 0
        %2639 = vmatpush1.bf16.msra.mxu0 0
        %2640 = vmatprep.subr.bf16.mxu0 0
        %2641 = vmatpush1.bf16.msra.mxu0 0
        %2642 = vmatprep.subr.bf16.mxu0 0
        %2643 = vmatpush1.bf16.msra.mxu0 0
        %2644 = vmatprep.subr.bf16.mxu0 0
        %2645 = vmatpush1.bf16.msra.mxu0 0
        %2646 = vmatprep.subr.bf16.mxu0 0
        %2647 = vmatpush1.bf16.msra.mxu0 0
        %2648 = vmatprep.subr.bf16.mxu0 0
        %2649 = vmatpush1.bf16.msra.mxu0 0
        %2650 = vmatprep.subr.bf16.mxu0 0
        %2651 = vmatpush1.bf16.msra.mxu0 0
        %2652 = vmatprep.subr.bf16.mxu0 0
        %2653 = vmatpush1.bf16.msra.mxu0 0
        %2654 = vmatprep.mubr.bf16.mxu0 0
        %2655 = vmatmul.mubr.bf16.gmra.mrb[0].mxu0 %v2414
        %v2656 = vpop.f32.mrb[0].mxu0
        %v2657 = vadd.f32 0.0, %v2656
        %v2658 = vpop.f32.mrb[0].mxu0
        %v2659 = vadd.f32 0.0, %v2658
        %v2660 = vpop.f32.mrb[0].mxu0
        %v2661 = vadd.f32 0.0, %v2660
        %v2662 = vpop.f32.mrb[0].mxu0
        %v2663 = vadd.f32 0.0, %v2662
        %2664 = vmatprep.mubr.bf16.mxu0 0
        %2665 = vmatmul.mubr.bf16.gmra.mrb[0].mxu0 %v2415
        %v2666 = vpop.f32.mrb[0].mxu0
        %v2667 = vadd.f32 0.0, %v2666
        %v2668 = vpop.f32.mrb[0].mxu0
        %v2669 = vadd.f32 0.0, %v2668
        %v2670 = vpop.f32.mrb[0].mxu0
        %v2671 = vadd.f32 0.0, %v2670
        %v2672 = vpop.f32.mrb[0].mxu0
        %v2673 = vadd.f32 0.0, %v2672
        %2674 = vmatprep.mubr.bf16.mxu0 0
        %2675 = vmatmul.mubr.bf16.gmra.mrb[0].mxu0 %v2416
        %v2676 = vpop.f32.mrb[0].mxu0
        %v2677 = vadd.f32 0.0, %v2676
        %v2678 = vpop.f32.mrb[0].mxu0
        %v2679 = vadd.f32 0.0, %v2678
        %v2680 = vpop.f32.mrb[0].mxu0
        %v2681 = vadd.f32 0.0, %v2680
        %v2682 = vpop.f32.mrb[0].mxu0
        %v2683 = vadd.f32 0.0, %v2682
        %2684 = vmatprep.mubr.bf16.mxu0 0
        %2685 = vmatmul.mubr.bf16.gmra.mrb[0].mxu0 %v2417
        %v2686 = vpop.f32.mrb[0].mxu0
        %v2687 = vadd.f32 0.0, %v2686
        %v2688 = vpop.f32.mrb[0].mxu0
        %v2689 = vadd.f32 0.0, %v2688
        %v2690 = vpop.f32.mrb[0].mxu0
        %v2691 = vadd.f32 0.0, %v2690
        %v2692 = vpop.f32.mrb[0].mxu0
        %v2693 = vadd.f32 0.0, %v2692
        %2694 = vmatprep.mubr.bf16.mxu0 0
        %2695 = vmatmul.mubr.bf16.gmra.mrb[0].mxu0 %v2418
        %v2696 = vpop.f32.mrb[0].mxu0
        %v2697 = vadd.f32 0.0, %v2696
        %v2698 = vpop.f32.mrb[0].mxu0
        %v2699 = vadd.f32 0.0, %v2698
        %v2700 = vpop.f32.mrb[0].mxu0
        %v2701 = vadd.f32 0.0, %v2700
        %v2702 = vpop.f32.mrb[0].mxu0
        %v2703 = vadd.f32 0.0, %v2702
        %2704 = vmatprep.mubr.bf16.mxu0 0
        %2705 = vmatmul.mubr.bf16.gmra.mrb[0].mxu0 %v2419
        %v2706 = vpop.f32.mrb[0].mxu0
        %v2707 = vadd.f32 0.0, %v2706
        %v2708 = vpop.f32.mrb[0].mxu0
        %v2709 = vadd.f32 0.0, %v2708
        %v2710 = vpop.f32.mrb[0].mxu0
        %v2711 = vadd.f32 0.0, %v2710
        %v2712 = vpop.f32.mrb[0].mxu0
        %v2713 = vadd.f32 0.0, %v2712
        %2714 = vmatprep.mubr.bf16.mxu0 0
        %2715 = vmatmul.mubr.bf16.gmra.mrb[0].mxu0 %v2420
        %v2716 = vpop.f32.mrb[0].mxu0
        %v2717 = vadd.f32 0.0, %v2716
        %v2718 = vpop.f32.mrb[0].mxu0
        %v2719 = vadd.f32 0.0, %v2718
        %v2720 = vpop.f32.mrb[0].mxu0
        %v2721 = vadd.f32 0.0, %v2720
        %v2722 = vpop.f32.mrb[0].mxu0
        %v2723 = vadd.f32 0.0, %v2722
        %2724 = vmatprep.mubr.bf16.mxu0 0
        %2725 = vmatmul.mubr.bf16.gmra.mrb[0].mxu0 %v2421
        %v2726 = vpop.f32.mrb[0].mxu0
        %v2727 = vadd.f32 0.0, %v2726
        %v2728 = vpop.f32.mrb[0].mxu0
        %v2729 = vadd.f32 0.0, %v2728
        %v2730 = vpop.f32.mrb[0].mxu0
        %v2731 = vadd.f32 0.0, %v2730
        %v2732 = vpop.f32.mrb[0].mxu0
        %v2733 = vadd.f32 0.0, %v2732
        %2734 = vmatprep.mubr.bf16.mxu0 0
        %2735 = vmatmul.mubr.bf16.gmra.mrb[0].mxu0 %v2422
        %v2736 = vpop.f32.mrb[0].mxu0
        %v2737 = vadd.f32 0.0, %v2736
        %v2738 = vpop.f32.mrb[0].mxu0
        %v2739 = vadd.f32 0.0, %v2738
        %v2740 = vpop.f32.mrb[0].mxu0
        %v2741 = vadd.f32 0.0, %v2740
        %v2742 = vpop.f32.mrb[0].mxu0
        %v2743 = vadd.f32 0.0, %v2742
        %2744 = vmatprep.mubr.bf16.mxu0 0
        %2745 = vmatmul.mubr.bf16.gmra.mrb[0].mxu0 %v2423
        %v2746 = vpop.f32.mrb[0].mxu0
        %v2747 = vadd.f32 0.0, %v2746
        %v2748 = vpop.f32.mrb[0].mxu0
        %v2749 = vadd.f32 0.0, %v2748
        %v2750 = vpop.f32.mrb[0].mxu0
        %v2751 = vadd.f32 0.0, %v2750
        %v2752 = vpop.f32.mrb[0].mxu0
        %v2753 = vadd.f32 0.0, %v2752
        %2754 = vmatprep.mubr.bf16.mxu0 0
        %2755 = vmatmul.mubr.bf16.gmra.mrb[0].mxu0 %v2424
        %v2756 = vpop.f32.mrb[0].mxu0
        %v2757 = vadd.f32 0.0, %v2756
        %v2758 = vpop.f32.mrb[0].mxu0
        %v2759 = vadd.f32 0.0, %v2758
        %v2760 = vpop.f32.mrb[0].mxu0
        %v2761 = vadd.f32 0.0, %v2760
        %v2762 = vpop.f32.mrb[0].mxu0
        %v2763 = vadd.f32 0.0, %v2762
        %2764 = vmatprep.mubr.bf16.mxu0 0
        %2765 = vmatmul.mubr.bf16.gmra.mrb[0].mxu0 %v2425
        %v2766 = vpop.f32.mrb[0].mxu0
        %v2767 = vadd.f32 0.0, %v2766
        %v2768 = vpop.f32.mrb[0].mxu0
        %v2769 = vadd.f32 0.0, %v2768
        %v2770 = vpop.f32.mrb[0].mxu0
        %v2771 = vadd.f32 0.0, %v2770
        %v2772 = vpop.f32.mrb[0].mxu0
        %v2773 = vadd.f32 0.0, %v2772
        %2774 = vmatprep.mubr.bf16.mxu0 0
        %2775 = vmatmul.mubr.bf16.gmra.mrb[0].mxu0 %v2426
        %v2776 = vpop.f32.mrb[0].mxu0
        %v2777 = vadd.f32 0.0, %v2776
        %v2778 = vpop.f32.mrb[0].mxu0
        %v2779 = vadd.f32 0.0, %v2778
        %v2780 = vpop.f32.mrb[0].mxu0
        %v2781 = vadd.f32 0.0, %v2780
        %v2782 = vpop.f32.mrb[0].mxu0
        %v2783 = vadd.f32 0.0, %v2782
        %2784 = vmatprep.mubr.bf16.mxu0 0
        %2785 = vmatmul.mubr.bf16.gmra.mrb[0].mxu0 %v2427
        %v2786 = vpop.f32.mrb[0].mxu0
        %v2787 = vadd.f32 0.0, %v2786
        %v2788 = vpop.f32.mrb[0].mxu0
        %v2789 = vadd.f32 0.0, %v2788
        %v2790 = vpop.f32.mrb[0].mxu0
        %v2791 = vadd.f32 0.0, %v2790
        %v2792 = vpop.f32.mrb[0].mxu0
        %v2793 = vadd.f32 0.0, %v2792
        %2794 = vmatprep.mubr.bf16.mxu0 0
        %2795 = vmatmul.mubr.bf16.gmra.mrb[0].mxu0 %v2428
        %v2796 = vpop.f32.mrb[0].mxu0
        %v2797 = vadd.f32 0.0, %v2796
        %v2798 = vpop.f32.mrb[0].mxu0
        %v2799 = vadd.f32 0.0, %v2798
        %v2800 = vpop.f32.mrb[0].mxu0
        %v2801 = vadd.f32 0.0, %v2800
        %v2802 = vpop.f32.mrb[0].mxu0
        %v2803 = vadd.f32 0.0, %v2802
        %2804 = vmatprep.mubr.bf16.mxu0 0
        %2805 = vmatmul.mubr.bf16.gmra.mrb[0].mxu0 %v2429
        %v2806 = vpop.f32.mrb[0].mxu0
        %v2807 = vadd.f32 0.0, %v2806
        %v2808 = vpop.f32.mrb[0].mxu0
        %v2809 = vadd.f32 0.0, %v2808
        %v2810 = vpop.f32.mrb[0].mxu0
        %v2811 = vadd.f32 0.0, %v2810
        %v2812 = vpop.f32.mrb[0].mxu0
        %v2813 = vadd.f32 0.0, %v2812
        %2814 = vdwg.mxu0
        %2815 = vmatprep.subr.bf16.mxu0 %v2561
        %2816 = vmatpush1.bf16.msra.mxu0 %v2560
        %2817 = vmatprep.subr.bf16.mxu0 %v2565
        %2818 = vmatpush1.bf16.msra.mxu0 %v2564
        %2819 = vmatprep.subr.bf16.mxu0 %v2569
        %2820 = vmatpush1.bf16.msra.mxu0 %v2568
        %2821 = vmatprep.subr.bf16.mxu0 %v2573
        %2822 = vmatpush1.bf16.msra.mxu0 %v2572
        %2823 = vmatprep.subr.bf16.mxu0 %v2577
        %2824 = vmatpush1.bf16.msra.mxu0 %v2576
        %2825 = vmatprep.subr.bf16.mxu0 %v2581
        %2826 = vmatpush1.bf16.msra.mxu0 %v2580
        %2827 = vmatprep.subr.bf16.mxu0 %v2585
        %2828 = vmatpush1.bf16.msra.mxu0 %v2584
        %2829 = vmatprep.subr.bf16.mxu0 %v2589
        %2830 = vmatpush1.bf16.msra.mxu0 %v2588
        %2831 = vmatprep.subr.bf16.mxu0 0
        %2832 = vmatpush1.bf16.msra.mxu0 0
        %2833 = vmatprep.subr.bf16.mxu0 0
        %2834 = vmatpush1.bf16.msra.mxu0 0
        %2835 = vmatprep.subr.bf16.mxu0 0
        %2836 = vmatpush1.bf16.msra.mxu0 0
        %2837 = vmatprep.subr.bf16.mxu0 0
        %2838 = vmatpush1.bf16.msra.mxu0 0
        %2839 = vmatprep.subr.bf16.mxu0 0
        %2840 = vmatpush1.bf16.msra.mxu0 0
        %2841 = vmatprep.subr.bf16.mxu0 0
        %2842 = vmatpush1.bf16.msra.mxu0 0
        %2843 = vmatprep.subr.bf16.mxu0 0
        %2844 = vmatpush1.bf16.msra.mxu0 0
        %2845 = vmatprep.subr.bf16.mxu0 0
        %2846 = vmatpush1.bf16.msra.mxu0 0
        %2847 = vmatprep.mubr.bf16.mxu0 0
        %2848 = vmatmul.mubr.bf16.gmra.mrb[0].mxu0 %v2414
        %v2849 = vpop.f32.mrb[0].mxu0
        %v2850 = vadd.f32 0.0, %v2849
        %v2851 = vpop.f32.mrb[0].mxu0
        %v2852 = vadd.f32 0.0, %v2851
        %v2853 = vpop.f32.mrb[0].mxu0
        %v2854 = vadd.f32 0.0, %v2853
        %v2855 = vpop.f32.mrb[0].mxu0
        %v2856 = vadd.f32 0.0, %v2855
        %2857 = vmatprep.mubr.bf16.mxu0 0
        %2858 = vmatmul.mubr.bf16.gmra.mrb[0].mxu0 %v2415
        %v2859 = vpop.f32.mrb[0].mxu0
        %v2860 = vadd.f32 0.0, %v2859
        %v2861 = vpop.f32.mrb[0].mxu0
        %v2862 = vadd.f32 0.0, %v2861
        %v2863 = vpop.f32.mrb[0].mxu0
        %v2864 = vadd.f32 0.0, %v2863
        %v2865 = vpop.f32.mrb[0].mxu0
        %v2866 = vadd.f32 0.0, %v2865
        %2867 = vmatprep.mubr.bf16.mxu0 0
        %2868 = vmatmul.mubr.bf16.gmra.mrb[0].mxu0 %v2416
        %v2869 = vpop.f32.mrb[0].mxu0
        %v2870 = vadd.f32 0.0, %v2869
        %v2871 = vpop.f32.mrb[0].mxu0
        %v2872 = vadd.f32 0.0, %v2871
        %v2873 = vpop.f32.mrb[0].mxu0
        %v2874 = vadd.f32 0.0, %v2873
        %v2875 = vpop.f32.mrb[0].mxu0
        %v2876 = vadd.f32 0.0, %v2875
        %2877 = vmatprep.mubr.bf16.mxu0 0
        %2878 = vmatmul.mubr.bf16.gmra.mrb[0].mxu0 %v2417
        %v2879 = vpop.f32.mrb[0].mxu0
        %v2880 = vadd.f32 0.0, %v2879
        %v2881 = vpop.f32.mrb[0].mxu0
        %v2882 = vadd.f32 0.0, %v2881
        %v2883 = vpop.f32.mrb[0].mxu0
        %v2884 = vadd.f32 0.0, %v2883
        %v2885 = vpop.f32.mrb[0].mxu0
        %v2886 = vadd.f32 0.0, %v2885
        %2887 = vmatprep.mubr.bf16.mxu0 0
        %2888 = vmatmul.mubr.bf16.gmra.mrb[0].mxu0 %v2418
        %v2889 = vpop.f32.mrb[0].mxu0
        %v2890 = vadd.f32 0.0, %v2889
        %v2891 = vpop.f32.mrb[0].mxu0
        %v2892 = vadd.f32 0.0, %v2891
        %v2893 = vpop.f32.mrb[0].mxu0
        %v2894 = vadd.f32 0.0, %v2893
        %v2895 = vpop.f32.mrb[0].mxu0
        %v2896 = vadd.f32 0.0, %v2895
        %2897 = vmatprep.mubr.bf16.mxu0 0
        %2898 = vmatmul.mubr.bf16.gmra.mrb[0].mxu0 %v2419
        %v2899 = vpop.f32.mrb[0].mxu0
        %v2900 = vadd.f32 0.0, %v2899
        %v2901 = vpop.f32.mrb[0].mxu0
        %v2902 = vadd.f32 0.0, %v2901
        %v2903 = vpop.f32.mrb[0].mxu0
        %v2904 = vadd.f32 0.0, %v2903
        %v2905 = vpop.f32.mrb[0].mxu0
        %v2906 = vadd.f32 0.0, %v2905
        %2907 = vmatprep.mubr.bf16.mxu0 0
        %2908 = vmatmul.mubr.bf16.gmra.mrb[0].mxu0 %v2420
        %v2909 = vpop.f32.mrb[0].mxu0
        %v2910 = vadd.f32 0.0, %v2909
        %v2911 = vpop.f32.mrb[0].mxu0
        %v2912 = vadd.f32 0.0, %v2911
        %v2913 = vpop.f32.mrb[0].mxu0
        %v2914 = vadd.f32 0.0, %v2913
        %v2915 = vpop.f32.mrb[0].mxu0
        %v2916 = vadd.f32 0.0, %v2915
        %2917 = vmatprep.mubr.bf16.mxu0 0
        %2918 = vmatmul.mubr.bf16.gmra.mrb[0].mxu0 %v2421
        %v2919 = vpop.f32.mrb[0].mxu0
        %v2920 = vadd.f32 0.0, %v2919
        %v2921 = vpop.f32.mrb[0].mxu0
        %v2922 = vadd.f32 0.0, %v2921
        %v2923 = vpop.f32.mrb[0].mxu0
        %v2924 = vadd.f32 0.0, %v2923
        %v2925 = vpop.f32.mrb[0].mxu0
        %v2926 = vadd.f32 0.0, %v2925
        %2927 = vmatprep.mubr.bf16.mxu0 0
        %2928 = vmatmul.mubr.bf16.gmra.mrb[0].mxu0 %v2422
        %v2929 = vpop.f32.mrb[0].mxu0
        %v2930 = vadd.f32 0.0, %v2929
        %v2931 = vpop.f32.mrb[0].mxu0
        %v2932 = vadd.f32 0.0, %v2931
        %v2933 = vpop.f32.mrb[0].mxu0
        %v2934 = vadd.f32 0.0, %v2933
        %v2935 = vpop.f32.mrb[0].mxu0
        %v2936 = vadd.f32 0.0, %v2935
        %2937 = vmatprep.mubr.bf16.mxu0 0
        %2938 = vmatmul.mubr.bf16.gmra.mrb[0].mxu0 %v2423
        %v2939 = vpop.f32.mrb[0].mxu0
        %v2940 = vadd.f32 0.0, %v2939
        %v2941 = vpop.f32.mrb[0].mxu0
        %v2942 = vadd.f32 0.0, %v2941
        %v2943 = vpop.f32.mrb[0].mxu0
        %v2944 = vadd.f32 0.0, %v2943
        %v2945 = vpop.f32.mrb[0].mxu0
        %v2946 = vadd.f32 0.0, %v2945
        %2947 = vmatprep.mubr.bf16.mxu0 0
        %2948 = vmatmul.mubr.bf16.gmra.mrb[0].mxu0 %v2424
        %v2949 = vpop.f32.mrb[0].mxu0
        %v2950 = vadd.f32 0.0, %v2949
        %v2951 = vpop.f32.mrb[0].mxu0
        %v2952 = vadd.f32 0.0, %v2951
        %v2953 = vpop.f32.mrb[0].mxu0
        %v2954 = vadd.f32 0.0, %v2953
        %v2955 = vpop.f32.mrb[0].mxu0
        %v2956 = vadd.f32 0.0, %v2955
        %2957 = vmatprep.mubr.bf16.mxu0 0
        %2958 = vmatmul.mubr.bf16.gmra.mrb[0].mxu0 %v2425
        %v2959 = vpop.f32.mrb[0].mxu0
        %v2960 = vadd.f32 0.0, %v2959
        %v2961 = vpop.f32.mrb[0].mxu0
        %v2962 = vadd.f32 0.0, %v2961
        %v2963 = vpop.f32.mrb[0].mxu0
        %v2964 = vadd.f32 0.0, %v2963
        %v2965 = vpop.f32.mrb[0].mxu0
        %v2966 = vadd.f32 0.0, %v2965
        %2967 = vmatprep.mubr.bf16.mxu0 0
        %2968 = vmatmul.mubr.bf16.gmra.mrb[0].mxu0 %v2426
        %v2969 = vpop.f32.mrb[0].mxu0
        %v2970 = vadd.f32 0.0, %v2969
        %v2971 = vpop.f32.mrb[0].mxu0
        %v2972 = vadd.f32 0.0, %v2971
        %v2973 = vpop.f32.mrb[0].mxu0
        %v2974 = vadd.f32 0.0, %v2973
        %v2975 = vpop.f32.mrb[0].mxu0
        %v2976 = vadd.f32 0.0, %v2975
        %2977 = vmatprep.mubr.bf16.mxu0 0
        %2978 = vmatmul.mubr.bf16.gmra.mrb[0].mxu0 %v2427
        %v2979 = vpop.f32.mrb[0].mxu0
        %v2980 = vadd.f32 0.0, %v2979
        %v2981 = vpop.f32.mrb[0].mxu0
        %v2982 = vadd.f32 0.0, %v2981
        %v2983 = vpop.f32.mrb[0].mxu0
        %v2984 = vadd.f32 0.0, %v2983
        %v2985 = vpop.f32.mrb[0].mxu0
        %v2986 = vadd.f32 0.0, %v2985
        %2987 = vmatprep.mubr.bf16.mxu0 0
        %2988 = vmatmul.mubr.bf16.gmra.mrb[0].mxu0 %v2428
        %v2989 = vpop.f32.mrb[0].mxu0
        %v2990 = vadd.f32 0.0, %v2989
        %v2991 = vpop.f32.mrb[0].mxu0
        %v2992 = vadd.f32 0.0, %v2991
        %v2993 = vpop.f32.mrb[0].mxu0
        %v2994 = vadd.f32 0.0, %v2993
        %v2995 = vpop.f32.mrb[0].mxu0
        %v2996 = vadd.f32 0.0, %v2995
        %2997 = vmatprep.mubr.bf16.mxu0 0
        %2998 = vmatmul.mubr.bf16.gmra.mrb[0].mxu0 %v2429
        %v2999 = vpop.f32.mrb[0].mxu0
        %v3000 = vadd.f32 0.0, %v2999
        %v3001 = vpop.f32.mrb[0].mxu0
        %v3002 = vadd.f32 0.0, %v3001
        %v3003 = vpop.f32.mrb[0].mxu0
        %v3004 = vadd.f32 0.0, %v3003
        %v3005 = vpop.f32.mrb[0].mxu0
        %v3006 = vadd.f32 0.0, %v3005
        %3007 = vdwg.mxu0
        %v3008 = vld [vmem:[%s15] sm:$0xf]
        %v3010 = vlaneseq
        %v3011 = vshrl.u32 %v3010, 7
        %v3012 = vsub.s32 0, %v3011
        %v3013 = vrot.slane %v3008, %v3012
        %v3014 = vlaneseq
        %v3015 = vshrl.u32 %v3014, 7
        %v3016 = vsub.s32 1, %v3015
        %v3017 = vrot.slane %v3008, %v3016
        %v3018 = vlaneseq
        %v3019 = vshrl.u32 %v3018, 7
        %v3020 = vsub.s32 2, %v3019
        %v3021 = vrot.slane %v3008, %v3020
        %v3022 = vlaneseq
        %v3023 = vshrl.u32 %v3022, 7
        %v3024 = vsub.s32 3, %v3023
        %v3025 = vrot.slane %v3008, %v3024
        %v3030 = vmul.f32 %v2657, %v3013
        %v3031 = vmul.f32 %v2659, %v3017
        %v3032 = vmul.f32 %v2850, %v3021
        %v3033 = vmul.f32 %v2852, %v3025
        %v3034 = vmul.f32 %v2661, %v3013
        %v3035 = vmul.f32 %v2663, %v3017
        %v3036 = vmul.f32 %v2854, %v3021
        %v3037 = vmul.f32 %v2856, %v3025
        %v3038 = vmul.f32 %v2667, %v3013
        %v3039 = vmul.f32 %v2669, %v3017
        %v3040 = vmul.f32 %v2860, %v3021
        %v3041 = vmul.f32 %v2862, %v3025
        %v3042 = vmul.f32 %v2671, %v3013
        %v3043 = vmul.f32 %v2673, %v3017
        %v3044 = vmul.f32 %v2864, %v3021
        %v3045 = vmul.f32 %v2866, %v3025
        %v3046 = vmul.f32 %v2677, %v3013
        %v3047 = vmul.f32 %v2679, %v3017
        %v3048 = vmul.f32 %v2870, %v3021
        %v3049 = vmul.f32 %v2872, %v3025
        %v3050 = vmul.f32 %v2681, %v3013
        %v3051 = vmul.f32 %v2683, %v3017
        %v3052 = vmul.f32 %v2874, %v3021
        %v3053 = vmul.f32 %v2876, %v3025
        %v3054 = vmul.f32 %v2687, %v3013
        %v3055 = vmul.f32 %v2689, %v3017
        %v3056 = vmul.f32 %v2880, %v3021
        %v3057 = vmul.f32 %v2882, %v3025
        %v3058 = vmul.f32 %v2691, %v3013
        %v3059 = vmul.f32 %v2693, %v3017
        %v3060 = vmul.f32 %v2884, %v3021
        %v3061 = vmul.f32 %v2886, %v3025
        %v3062 = vmul.f32 %v2697, %v3013
        %v3063 = vmul.f32 %v2699, %v3017
        %v3064 = vmul.f32 %v2890, %v3021
        %v3065 = vmul.f32 %v2892, %v3025
        %v3066 = vmul.f32 %v2701, %v3013
        %v3067 = vmul.f32 %v2703, %v3017
        %v3068 = vmul.f32 %v2894, %v3021
        %v3069 = vmul.f32 %v2896, %v3025
        %v3070 = vmul.f32 %v2707, %v3013
        %v3071 = vmul.f32 %v2709, %v3017
        %v3072 = vmul.f32 %v2900, %v3021
        %v3073 = vmul.f32 %v2902, %v3025
        %v3074 = vmul.f32 %v2711, %v3013
        %v3075 = vmul.f32 %v2713, %v3017
        %v3076 = vmul.f32 %v2904, %v3021
        %v3077 = vmul.f32 %v2906, %v3025
        %v3078 = vmul.f32 %v2717, %v3013
        %v3079 = vmul.f32 %v2719, %v3017
        %v3080 = vmul.f32 %v2910, %v3021
        %v3081 = vmul.f32 %v2912, %v3025
        %v3082 = vmul.f32 %v2721, %v3013
        %v3083 = vmul.f32 %v2723, %v3017
        %v3084 = vmul.f32 %v2914, %v3021
        %v3085 = vmul.f32 %v2916, %v3025
        %v3086 = vmul.f32 %v2727, %v3013
        %v3087 = vmul.f32 %v2729, %v3017
        %v3088 = vmul.f32 %v2920, %v3021
        %v3089 = vmul.f32 %v2922, %v3025
        %v3090 = vmul.f32 %v2731, %v3013
        %v3091 = vmul.f32 %v2733, %v3017
        %v3092 = vmul.f32 %v2924, %v3021
        %v3093 = vmul.f32 %v2926, %v3025
        %v3094 = vmul.f32 %v2737, %v3013
        %v3095 = vmul.f32 %v2739, %v3017
        %v3096 = vmul.f32 %v2930, %v3021
        %v3097 = vmul.f32 %v2932, %v3025
        %v3098 = vmul.f32 %v2741, %v3013
        %v3099 = vmul.f32 %v2743, %v3017
        %v3100 = vmul.f32 %v2934, %v3021
        %v3101 = vmul.f32 %v2936, %v3025
        %v3102 = vmul.f32 %v2747, %v3013
        %v3103 = vmul.f32 %v2749, %v3017
        %v3104 = vmul.f32 %v2940, %v3021
        %v3105 = vmul.f32 %v2942, %v3025
        %v3106 = vmul.f32 %v2751, %v3013
        %v3107 = vmul.f32 %v2753, %v3017
        %v3108 = vmul.f32 %v2944, %v3021
        %v3109 = vmul.f32 %v2946, %v3025
        %v3110 = vmul.f32 %v2757, %v3013
        %v3111 = vmul.f32 %v2759, %v3017
        %v3112 = vmul.f32 %v2950, %v3021
        %v3113 = vmul.f32 %v2952, %v3025
        %v3114 = vmul.f32 %v2761, %v3013
        %v3115 = vmul.f32 %v2763, %v3017
        %v3116 = vmul.f32 %v2954, %v3021
        %v3117 = vmul.f32 %v2956, %v3025
        %v3118 = vmul.f32 %v2767, %v3013
        %v3119 = vmul.f32 %v2769, %v3017
        %v3120 = vmul.f32 %v2960, %v3021
        %v3121 = vmul.f32 %v2962, %v3025
        %v3122 = vmul.f32 %v2771, %v3013
        %v3123 = vmul.f32 %v2773, %v3017
        %v3124 = vmul.f32 %v2964, %v3021
        %v3125 = vmul.f32 %v2966, %v3025
        %v3126 = vmul.f32 %v2777, %v3013
        %v3127 = vmul.f32 %v2779, %v3017
        %v3128 = vmul.f32 %v2970, %v3021
        %v3129 = vmul.f32 %v2972, %v3025
        %v3130 = vmul.f32 %v2781, %v3013
        %v3131 = vmul.f32 %v2783, %v3017
        %v3132 = vmul.f32 %v2974, %v3021
        %v3133 = vmul.f32 %v2976, %v3025
        %v3134 = vmul.f32 %v2787, %v3013
        %v3135 = vmul.f32 %v2789, %v3017
        %v3136 = vmul.f32 %v2980, %v3021
        %v3137 = vmul.f32 %v2982, %v3025
        %v3138 = vmul.f32 %v2791, %v3013
        %v3139 = vmul.f32 %v2793, %v3017
        %v3140 = vmul.f32 %v2984, %v3021
        %v3141 = vmul.f32 %v2986, %v3025
        %v3142 = vmul.f32 %v2797, %v3013
        %v3143 = vmul.f32 %v2799, %v3017
        %v3144 = vmul.f32 %v2990, %v3021
        %v3145 = vmul.f32 %v2992, %v3025
        %v3146 = vmul.f32 %v2801, %v3013
        %v3147 = vmul.f32 %v2803, %v3017
        %v3148 = vmul.f32 %v2994, %v3021
        %v3149 = vmul.f32 %v2996, %v3025
        %v3150 = vmul.f32 %v2807, %v3013
        %v3151 = vmul.f32 %v2809, %v3017
        %v3152 = vmul.f32 %v3000, %v3021
        %v3153 = vmul.f32 %v3002, %v3025
        %v3154 = vmul.f32 %v2811, %v3013
        %v3155 = vmul.f32 %v2813, %v3017
        %v3156 = vmul.f32 %v3004, %v3021
        %v3157 = vmul.f32 %v3006, %v3025
        %v3158 = vld [vmem:[%s16] sm:$0xf]
        %v3160 = vlaneseq
        %v3161 = vshrl.u32 %v3160, 7
        %v3162 = vsub.s32 0, %v3161
        %v3163 = vrot.slane %v3158, %v3162
        %v3164 = vlaneseq
        %v3165 = vshrl.u32 %v3164, 7
        %v3166 = vsub.s32 1, %v3165
        %v3167 = vrot.slane %v3158, %v3166
        %v3168 = vlaneseq
        %v3169 = vshrl.u32 %v3168, 7
        %v3170 = vsub.s32 2, %v3169
        %v3171 = vrot.slane %v3158, %v3170
        %v3172 = vlaneseq
        %v3173 = vshrl.u32 %v3172, 7
        %v3174 = vsub.s32 3, %v3173
        %v3175 = vrot.slane %v3158, %v3174
        %v3180 = vadd.f32 %v3030, %v3163
        %v3181 = vadd.f32 %v3031, %v3167
        %v3182 = vadd.f32 %v3032, %v3171
        %v3183 = vadd.f32 %v3033, %v3175
        %v3184 = vadd.f32 %v3034, %v3163
        %v3185 = vadd.f32 %v3035, %v3167
        %v3186 = vadd.f32 %v3036, %v3171
        %v3187 = vadd.f32 %v3037, %v3175
        %v3188 = vadd.f32 %v3038, %v3163
        %v3189 = vadd.f32 %v3039, %v3167
        %v3190 = vadd.f32 %v3040, %v3171
        %v3191 = vadd.f32 %v3041, %v3175
        %v3192 = vadd.f32 %v3042, %v3163
        %v3193 = vadd.f32 %v3043, %v3167
        %v3194 = vadd.f32 %v3044, %v3171
        %v3195 = vadd.f32 %v3045, %v3175
        %v3196 = vadd.f32 %v3046, %v3163
        %v3197 = vadd.f32 %v3047, %v3167
        %v3198 = vadd.f32 %v3048, %v3171
        %v3199 = vadd.f32 %v3049, %v3175
        %v3200 = vadd.f32 %v3050, %v3163
        %v3201 = vadd.f32 %v3051, %v3167
        %v3202 = vadd.f32 %v3052, %v3171
        %v3203 = vadd.f32 %v3053, %v3175
        %v3204 = vadd.f32 %v3054, %v3163
        %v3205 = vadd.f32 %v3055, %v3167
        %v3206 = vadd.f32 %v3056, %v3171
        %v3207 = vadd.f32 %v3057, %v3175
        %v3208 = vadd.f32 %v3058, %v3163
        %v3209 = vadd.f32 %v3059, %v3167
        %v3210 = vadd.f32 %v3060, %v3171
        %v3211 = vadd.f32 %v3061, %v3175
        %v3212 = vadd.f32 %v3062, %v3163
        %v3213 = vadd.f32 %v3063, %v3167
        %v3214 = vadd.f32 %v3064, %v3171
        %v3215 = vadd.f32 %v3065, %v3175
        %v3216 = vadd.f32 %v3066, %v3163
        %v3217 = vadd.f32 %v3067, %v3167
        %v3218 = vadd.f32 %v3068, %v3171
        %v3219 = vadd.f32 %v3069, %v3175
        %v3220 = vadd.f32 %v3070, %v3163
        %v3221 = vadd.f32 %v3071, %v3167
        %v3222 = vadd.f32 %v3072, %v3171
        %v3223 = vadd.f32 %v3073, %v3175
        %v3224 = vadd.f32 %v3074, %v3163
        %v3225 = vadd.f32 %v3075, %v3167
        %v3226 = vadd.f32 %v3076, %v3171
        %v3227 = vadd.f32 %v3077, %v3175
        %v3228 = vadd.f32 %v3078, %v3163
        %v3229 = vadd.f32 %v3079, %v3167
        %v3230 = vadd.f32 %v3080, %v3171
        %v3231 = vadd.f32 %v3081, %v3175
        %v3232 = vadd.f32 %v3082, %v3163
        %v3233 = vadd.f32 %v3083, %v3167
        %v3234 = vadd.f32 %v3084, %v3171
        %v3235 = vadd.f32 %v3085, %v3175
        %v3236 = vadd.f32 %v3086, %v3163
        %v3237 = vadd.f32 %v3087, %v3167
        %v3238 = vadd.f32 %v3088, %v3171
        %v3239 = vadd.f32 %v3089, %v3175
        %v3240 = vadd.f32 %v3090, %v3163
        %v3241 = vadd.f32 %v3091, %v3167
        %v3242 = vadd.f32 %v3092, %v3171
        %v3243 = vadd.f32 %v3093, %v3175
        %v3244 = vadd.f32 %v3094, %v3163
        %v3245 = vadd.f32 %v3095, %v3167
        %v3246 = vadd.f32 %v3096, %v3171
        %v3247 = vadd.f32 %v3097, %v3175
        %v3248 = vadd.f32 %v3098, %v3163
        %v3249 = vadd.f32 %v3099, %v3167
        %v3250 = vadd.f32 %v3100, %v3171
        %v3251 = vadd.f32 %v3101, %v3175
        %v3252 = vadd.f32 %v3102, %v3163
        %v3253 = vadd.f32 %v3103, %v3167
        %v3254 = vadd.f32 %v3104, %v3171
        %v3255 = vadd.f32 %v3105, %v3175
        %v3256 = vadd.f32 %v3106, %v3163
        %v3257 = vadd.f32 %v3107, %v3167
        %v3258 = vadd.f32 %v3108, %v3171
        %v3259 = vadd.f32 %v3109, %v3175
        %v3260 = vadd.f32 %v3110, %v3163
        %v3261 = vadd.f32 %v3111, %v3167
        %v3262 = vadd.f32 %v3112, %v3171
        %v3263 = vadd.f32 %v3113, %v3175
        %v3264 = vadd.f32 %v3114, %v3163
        %v3265 = vadd.f32 %v3115, %v3167
        %v3266 = vadd.f32 %v3116, %v3171
        %v3267 = vadd.f32 %v3117, %v3175
        %v3268 = vadd.f32 %v3118, %v3163
        %v3269 = vadd.f32 %v3119, %v3167
        %v3270 = vadd.f32 %v3120, %v3171
        %v3271 = vadd.f32 %v3121, %v3175
        %v3272 = vadd.f32 %v3122, %v3163
        %v3273 = vadd.f32 %v3123, %v3167
        %v3274 = vadd.f32 %v3124, %v3171
        %v3275 = vadd.f32 %v3125, %v3175
        %v3276 = vadd.f32 %v3126, %v3163
        %v3277 = vadd.f32 %v3127, %v3167
        %v3278 = vadd.f32 %v3128, %v3171
        %v3279 = vadd.f32 %v3129, %v3175
        %v3280 = vadd.f32 %v3130, %v3163
        %v3281 = vadd.f32 %v3131, %v3167
        %v3282 = vadd.f32 %v3132, %v3171
        %v3283 = vadd.f32 %v3133, %v3175
        %v3284 = vadd.f32 %v3134, %v3163
        %v3285 = vadd.f32 %v3135, %v3167
        %v3286 = vadd.f32 %v3136, %v3171
        %v3287 = vadd.f32 %v3137, %v3175
        %v3288 = vadd.f32 %v3138, %v3163
        %v3289 = vadd.f32 %v3139, %v3167
        %v3290 = vadd.f32 %v3140, %v3171
        %v3291 = vadd.f32 %v3141, %v3175
        %v3292 = vadd.f32 %v3142, %v3163
        %v3293 = vadd.f32 %v3143, %v3167
        %v3294 = vadd.f32 %v3144, %v3171
        %v3295 = vadd.f32 %v3145, %v3175
        %v3296 = vadd.f32 %v3146, %v3163
        %v3297 = vadd.f32 %v3147, %v3167
        %v3298 = vadd.f32 %v3148, %v3171
        %v3299 = vadd.f32 %v3149, %v3175
        %v3300 = vadd.f32 %v3150, %v3163
        %v3301 = vadd.f32 %v3151, %v3167
        %v3302 = vadd.f32 %v3152, %v3171
        %v3303 = vadd.f32 %v3153, %v3175
        %v3304 = vadd.f32 %v3154, %v3163
        %v3305 = vadd.f32 %v3155, %v3167
        %v3306 = vadd.f32 %v3156, %v3171
        %v3307 = vadd.f32 %v3157, %v3175
        %v3308 = vmax.f32 %v3180, 0.0
        %v3309 = vmax.f32 %v3181, 0.0
        %v3310 = vmax.f32 %v3182, 0.0
        %v3311 = vmax.f32 %v3183, 0.0
        %v3312 = vmax.f32 %v3184, 0.0
        %v3313 = vmax.f32 %v3185, 0.0
        %v3314 = vmax.f32 %v3186, 0.0
        %v3315 = vmax.f32 %v3187, 0.0
        %v3316 = vmax.f32 %v3188, 0.0
        %v3317 = vmax.f32 %v3189, 0.0
        %v3318 = vmax.f32 %v3190, 0.0
        %v3319 = vmax.f32 %v3191, 0.0
        %v3320 = vmax.f32 %v3192, 0.0
        %v3321 = vmax.f32 %v3193, 0.0
        %v3322 = vmax.f32 %v3194, 0.0
        %v3323 = vmax.f32 %v3195, 0.0
        %v3324 = vmax.f32 %v3196, 0.0
        %v3325 = vmax.f32 %v3197, 0.0
        %v3326 = vmax.f32 %v3198, 0.0
        %v3327 = vmax.f32 %v3199, 0.0
        %v3328 = vmax.f32 %v3200, 0.0
        %v3329 = vmax.f32 %v3201, 0.0
        %v3330 = vmax.f32 %v3202, 0.0
        %v3331 = vmax.f32 %v3203, 0.0
        %v3332 = vmax.f32 %v3204, 0.0
        %v3333 = vmax.f32 %v3205, 0.0
        %v3334 = vmax.f32 %v3206, 0.0
        %v3335 = vmax.f32 %v3207, 0.0
        %v3336 = vmax.f32 %v3208, 0.0
        %v3337 = vmax.f32 %v3209, 0.0
        %v3338 = vmax.f32 %v3210, 0.0
        %v3339 = vmax.f32 %v3211, 0.0
        %v3340 = vmax.f32 %v3212, 0.0
        %v3341 = vmax.f32 %v3213, 0.0
        %v3342 = vmax.f32 %v3214, 0.0
        %v3343 = vmax.f32 %v3215, 0.0
        %v3344 = vmax.f32 %v3216, 0.0
        %v3345 = vmax.f32 %v3217, 0.0
        %v3346 = vmax.f32 %v3218, 0.0
        %v3347 = vmax.f32 %v3219, 0.0
        %v3348 = vmax.f32 %v3220, 0.0
        %v3349 = vmax.f32 %v3221, 0.0
        %v3350 = vmax.f32 %v3222, 0.0
        %v3351 = vmax.f32 %v3223, 0.0
        %v3352 = vmax.f32 %v3224, 0.0
        %v3353 = vmax.f32 %v3225, 0.0
        %v3354 = vmax.f32 %v3226, 0.0
        %v3355 = vmax.f32 %v3227, 0.0
        %v3356 = vmax.f32 %v3228, 0.0
        %v3357 = vmax.f32 %v3229, 0.0
        %v3358 = vmax.f32 %v3230, 0.0
        %v3359 = vmax.f32 %v3231, 0.0
        %v3360 = vmax.f32 %v3232, 0.0
        %v3361 = vmax.f32 %v3233, 0.0
        %v3362 = vmax.f32 %v3234, 0.0
        %v3363 = vmax.f32 %v3235, 0.0
        %v3364 = vmax.f32 %v3236, 0.0
        %v3365 = vmax.f32 %v3237, 0.0
        %v3366 = vmax.f32 %v3238, 0.0
        %v3367 = vmax.f32 %v3239, 0.0
        %v3368 = vmax.f32 %v3240, 0.0
        %v3369 = vmax.f32 %v3241, 0.0
        %v3370 = vmax.f32 %v3242, 0.0
        %v3371 = vmax.f32 %v3243, 0.0
        %v3372 = vmax.f32 %v3244, 0.0
        %v3373 = vmax.f32 %v3245, 0.0
        %v3374 = vmax.f32 %v3246, 0.0
        %v3375 = vmax.f32 %v3247, 0.0
        %v3376 = vmax.f32 %v3248, 0.0
        %v3377 = vmax.f32 %v3249, 0.0
        %v3378 = vmax.f32 %v3250, 0.0
        %v3379 = vmax.f32 %v3251, 0.0
        %v3380 = vmax.f32 %v3252, 0.0
        %v3381 = vmax.f32 %v3253, 0.0
        %v3382 = vmax.f32 %v3254, 0.0
        %v3383 = vmax.f32 %v3255, 0.0
        %v3384 = vmax.f32 %v3256, 0.0
        %v3385 = vmax.f32 %v3257, 0.0
        %v3386 = vmax.f32 %v3258, 0.0
        %v3387 = vmax.f32 %v3259, 0.0
        %v3388 = vmax.f32 %v3260, 0.0
        %v3389 = vmax.f32 %v3261, 0.0
        %v3390 = vmax.f32 %v3262, 0.0
        %v3391 = vmax.f32 %v3263, 0.0
        %v3392 = vmax.f32 %v3264, 0.0
        %v3393 = vmax.f32 %v3265, 0.0
        %v3394 = vmax.f32 %v3266, 0.0
        %v3395 = vmax.f32 %v3267, 0.0
        %v3396 = vmax.f32 %v3268, 0.0
        %v3397 = vmax.f32 %v3269, 0.0
        %v3398 = vmax.f32 %v3270, 0.0
        %v3399 = vmax.f32 %v3271, 0.0
        %v3400 = vmax.f32 %v3272, 0.0
        %v3401 = vmax.f32 %v3273, 0.0
        %v3402 = vmax.f32 %v3274, 0.0
        %v3403 = vmax.f32 %v3275, 0.0
        %v3404 = vmax.f32 %v3276, 0.0
        %v3405 = vmax.f32 %v3277, 0.0
        %v3406 = vmax.f32 %v3278, 0.0
        %v3407 = vmax.f32 %v3279, 0.0
        %v3408 = vmax.f32 %v3280, 0.0
        %v3409 = vmax.f32 %v3281, 0.0
        %v3410 = vmax.f32 %v3282, 0.0
        %v3411 = vmax.f32 %v3283, 0.0
        %v3412 = vmax.f32 %v3284, 0.0
        %v3413 = vmax.f32 %v3285, 0.0
        %v3414 = vmax.f32 %v3286, 0.0
        %v3415 = vmax.f32 %v3287, 0.0
        %v3416 = vmax.f32 %v3288, 0.0
        %v3417 = vmax.f32 %v3289, 0.0
        %v3418 = vmax.f32 %v3290, 0.0
        %v3419 = vmax.f32 %v3291, 0.0
        %v3420 = vmax.f32 %v3292, 0.0
        %v3421 = vmax.f32 %v3293, 0.0
        %v3422 = vmax.f32 %v3294, 0.0
        %v3423 = vmax.f32 %v3295, 0.0
        %v3424 = vmax.f32 %v3296, 0.0
        %v3425 = vmax.f32 %v3297, 0.0
        %v3426 = vmax.f32 %v3298, 0.0
        %v3427 = vmax.f32 %v3299, 0.0
        %v3428 = vmax.f32 %v3300, 0.0
        %v3429 = vmax.f32 %v3301, 0.0
        %v3430 = vmax.f32 %v3302, 0.0
        %v3431 = vmax.f32 %v3303, 0.0
        %v3432 = vmax.f32 %v3304, 0.0
        %v3433 = vmax.f32 %v3305, 0.0
        %v3434 = vmax.f32 %v3306, 0.0
        %v3435 = vmax.f32 %v3307, 0.0
        %v3436 = vpack.c.bf16 %v3312, %v3308
        %v3437 = vpack.c.bf16 %v3313, %v3309
        %v3438 = vpack.c.bf16 %v3314, %v3310
        %v3439 = vpack.c.bf16 %v3315, %v3311
        %v3440 = vpack.c.bf16 %v3320, %v3316
        %v3441 = vpack.c.bf16 %v3321, %v3317
        %v3442 = vpack.c.bf16 %v3322, %v3318
        %v3443 = vpack.c.bf16 %v3323, %v3319
        %v3444 = vpack.c.bf16 %v3328, %v3324
        %v3445 = vpack.c.bf16 %v3329, %v3325
        %v3446 = vpack.c.bf16 %v3330, %v3326
        %v3447 = vpack.c.bf16 %v3331, %v3327
        %v3448 = vpack.c.bf16 %v3336, %v3332
        %v3449 = vpack.c.bf16 %v3337, %v3333
        %v3450 = vpack.c.bf16 %v3338, %v3334
        %v3451 = vpack.c.bf16 %v3339, %v3335
        %v3452 = vpack.c.bf16 %v3344, %v3340
        %v3453 = vpack.c.bf16 %v3345, %v3341
        %v3454 = vpack.c.bf16 %v3346, %v3342
        %v3455 = vpack.c.bf16 %v3347, %v3343
        %v3456 = vpack.c.bf16 %v3352, %v3348
        %v3457 = vpack.c.bf16 %v3353, %v3349
        %v3458 = vpack.c.bf16 %v3354, %v3350
        %v3459 = vpack.c.bf16 %v3355, %v3351
        %v3460 = vpack.c.bf16 %v3360, %v3356
        %v3461 = vpack.c.bf16 %v3361, %v3357
        %v3462 = vpack.c.bf16 %v3362, %v3358
        %v3463 = vpack.c.bf16 %v3363, %v3359
        %v3464 = vpack.c.bf16 %v3368, %v3364
        %v3465 = vpack.c.bf16 %v3369, %v3365
        %v3466 = vpack.c.bf16 %v3370, %v3366
        %v3467 = vpack.c.bf16 %v3371, %v3367
        %v3468 = vpack.c.bf16 %v3376, %v3372
        %v3469 = vpack.c.bf16 %v3377, %v3373
        %v3470 = vpack.c.bf16 %v3378, %v3374
        %v3471 = vpack.c.bf16 %v3379, %v3375
        %v3472 = vpack.c.bf16 %v3384, %v3380
        %v3473 = vpack.c.bf16 %v3385, %v3381
        %v3474 = vpack.c.bf16 %v3386, %v3382
        %v3475 = vpack.c.bf16 %v3387, %v3383
        %v3476 = vpack.c.bf16 %v3392, %v3388
        %v3477 = vpack.c.bf16 %v3393, %v3389
        %v3478 = vpack.c.bf16 %v3394, %v3390
        %v3479 = vpack.c.bf16 %v3395, %v3391
        %v3480 = vpack.c.bf16 %v3400, %v3396
        %v3481 = vpack.c.bf16 %v3401, %v3397
        %v3482 = vpack.c.bf16 %v3402, %v3398
        %v3483 = vpack.c.bf16 %v3403, %v3399
        %v3484 = vpack.c.bf16 %v3408, %v3404
        %v3485 = vpack.c.bf16 %v3409, %v3405
        %v3486 = vpack.c.bf16 %v3410, %v3406
        %v3487 = vpack.c.bf16 %v3411, %v3407
        %v3488 = vpack.c.bf16 %v3416, %v3412
        %v3489 = vpack.c.bf16 %v3417, %v3413
        %v3490 = vpack.c.bf16 %v3418, %v3414
        %v3491 = vpack.c.bf16 %v3419, %v3415
        %v3492 = vpack.c.bf16 %v3424, %v3420
        %v3493 = vpack.c.bf16 %v3425, %v3421
        %v3494 = vpack.c.bf16 %v3426, %v3422
        %v3495 = vpack.c.bf16 %v3427, %v3423
        %v3496 = vpack.c.bf16 %v3432, %v3428
        %v3497 = vpack.c.bf16 %v3433, %v3429
        %v3498 = vpack.c.bf16 %v3434, %v3430
        %v3499 = vpack.c.bf16 %v3435, %v3431
        %v3500 = vld [vmem:[%s17] sm:$0xf]
        %v3501 = vld [vmem:[%s17 + $0x4] sm:$0xf]
        %v3502 = vld [vmem:[%s17 + $0x8] sm:$0xf]
        %v3503 = vld [vmem:[%s17 + $0xc] sm:$0xf]
        %v3504 = vld [vmem:[%s17 + $0x10] sm:$0xf]
        %v3505 = vld [vmem:[%s17 + $0x14] sm:$0xf]
        %v3506 = vld [vmem:[%s17 + $0x18] sm:$0xf]
        %v3507 = vld [vmem:[%s17 + $0x1c] sm:$0xf]
        %v3508 = vld [vmem:[%s17 + $0x20] sm:$0xf]
        %v3509 = vld [vmem:[%s17 + $0x24] sm:$0xf]
        %v3510 = vld [vmem:[%s17 + $0x28] sm:$0xf]
        %v3511 = vld [vmem:[%s17 + $0x2c] sm:$0xf]
        %v3512 = vld [vmem:[%s17 + $0x30] sm:$0xf]
        %v3513 = vld [vmem:[%s17 + $0x34] sm:$0xf]
        %v3514 = vld [vmem:[%s17 + $0x38] sm:$0xf]
        %v3515 = vld [vmem:[%s17 + $0x3c] sm:$0xf]
        %v3516 = vld [vmem:[%s17 + $0x40] sm:$0xf]
        %v3517 = vld [vmem:[%s17 + $0x44] sm:$0xf]
        %v3518 = vld [vmem:[%s17 + $0x48] sm:$0xf]
        %v3519 = vld [vmem:[%s17 + $0x4c] sm:$0xf]
        %v3520 = vld [vmem:[%s17 + $0x50] sm:$0xf]
        %v3521 = vld [vmem:[%s17 + $0x54] sm:$0xf]
        %v3522 = vld [vmem:[%s17 + $0x58] sm:$0xf]
        %v3523 = vld [vmem:[%s17 + $0x5c] sm:$0xf]
        %v3524 = vld [vmem:[%s17 + $0x60] sm:$0xf]
        %v3525 = vld [vmem:[%s17 + $0x64] sm:$0xf]
        %v3526 = vld [vmem:[%s17 + $0x68] sm:$0xf]
        %v3527 = vld [vmem:[%s17 + $0x6c] sm:$0xf]
        %v3528 = vld [vmem:[%s17 + $0x70] sm:$0xf]
        %v3529 = vld [vmem:[%s17 + $0x74] sm:$0xf]
        %v3530 = vld [vmem:[%s17 + $0x78] sm:$0xf]
        %v3531 = vld [vmem:[%s17 + $0x7c] sm:$0xf]
        %v3532 = vld [vmem:[%s17 + $0x80] sm:$0xf]
        %v3533 = vld [vmem:[%s17 + $0x84] sm:$0xf]
        %v3534 = vld [vmem:[%s17 + $0x88] sm:$0xf]
        %v3535 = vld [vmem:[%s17 + $0x8c] sm:$0xf]
        %v3536 = vld [vmem:[%s17 + $0x90] sm:$0xf]
        %v3537 = vld [vmem:[%s17 + $0x94] sm:$0xf]
        %v3538 = vld [vmem:[%s17 + $0x98] sm:$0xf]
        %v3539 = vld [vmem:[%s17 + $0x9c] sm:$0xf]
        %v3540 = vld [vmem:[%s17 + $0xa0] sm:$0xf]
        %v3541 = vld [vmem:[%s17 + $0xa4] sm:$0xf]
        %v3542 = vld [vmem:[%s17 + $0xa8] sm:$0xf]
        %v3543 = vld [vmem:[%s17 + $0xac] sm:$0xf]
        %v3544 = vld [vmem:[%s17 + $0xb0] sm:$0xf]
        %v3545 = vld [vmem:[%s17 + $0xb4] sm:$0xf]
        %v3546 = vld [vmem:[%s17 + $0xb8] sm:$0xf]
        %v3547 = vld [vmem:[%s17 + $0xbc] sm:$0xf]
        %v3548 = vld [vmem:[%s17 + $0xc0] sm:$0xf]
        %v3549 = vld [vmem:[%s17 + $0xc4] sm:$0xf]
        %v3550 = vld [vmem:[%s17 + $0xc8] sm:$0xf]
        %v3551 = vld [vmem:[%s17 + $0xcc] sm:$0xf]
        %v3552 = vld [vmem:[%s17 + $0xd0] sm:$0xf]
        %v3553 = vld [vmem:[%s17 + $0xd4] sm:$0xf]
        %v3554 = vld [vmem:[%s17 + $0xd8] sm:$0xf]
        %v3555 = vld [vmem:[%s17 + $0xdc] sm:$0xf]
        %v3556 = vld [vmem:[%s17 + $0xe0] sm:$0xf]
        %v3557 = vld [vmem:[%s17 + $0xe4] sm:$0xf]
        %v3558 = vld [vmem:[%s17 + $0xe8] sm:$0xf]
        %v3559 = vld [vmem:[%s17 + $0xec] sm:$0xf]
        %v3560 = vld [vmem:[%s17 + $0xf0] sm:$0xf]
        %v3561 = vld [vmem:[%s17 + $0xf4] sm:$0xf]
        %v3562 = vld [vmem:[%s17 + $0xf8] sm:$0xf]
        %v3563 = vld [vmem:[%s17 + $0xfc] sm:$0xf]
        %v3564 = vld [vmem:[%s18] sm:$0x1]
        %v3566 = vlaneseq
        %v3567 = vshrl.u32 %v3566, 7
        %v3568 = vsub.s32 0, %v3567
        %v3569 = vrot.slane %v3564, %v3568
        %v3635 = vunpack.c.l.b16 %v3500
        %v3636 = vunpack.c.l.b16 %v3501
        %v3637 = vunpack.c.l.b16 %v3502
        %v3638 = vunpack.c.l.b16 %v3503
        %v3639 = vunpack.c.l.b16 %v3504
        %v3640 = vunpack.c.l.b16 %v3505
        %v3641 = vunpack.c.l.b16 %v3506
        %v3642 = vunpack.c.l.b16 %v3507
        %v3643 = vunpack.c.l.b16 %v3508
        %v3644 = vunpack.c.l.b16 %v3509
        %v3645 = vunpack.c.l.b16 %v3510
        %v3646 = vunpack.c.l.b16 %v3511
        %v3647 = vunpack.c.l.b16 %v3512
        %v3648 = vunpack.c.l.b16 %v3513
        %v3649 = vunpack.c.l.b16 %v3514
        %v3650 = vunpack.c.l.b16 %v3515
        %v3651 = vunpack.c.l.b16 %v3516
        %v3652 = vunpack.c.l.b16 %v3517
        %v3653 = vunpack.c.l.b16 %v3518
        %v3654 = vunpack.c.l.b16 %v3519
        %v3655 = vunpack.c.l.b16 %v3520
        %v3656 = vunpack.c.l.b16 %v3521
        %v3657 = vunpack.c.l.b16 %v3522
        %v3658 = vunpack.c.l.b16 %v3523
        %v3659 = vunpack.c.l.b16 %v3524
        %v3660 = vunpack.c.l.b16 %v3525
        %v3661 = vunpack.c.l.b16 %v3526
        %v3662 = vunpack.c.l.b16 %v3527
        %v3663 = vunpack.c.l.b16 %v3528
        %v3664 = vunpack.c.l.b16 %v3529
        %v3665 = vunpack.c.l.b16 %v3530
        %v3666 = vunpack.c.l.b16 %v3531
        %v3667 = vunpack.c.l.b16 %v3532
        %v3668 = vunpack.c.l.b16 %v3533
        %v3669 = vunpack.c.l.b16 %v3534
        %v3670 = vunpack.c.l.b16 %v3535
        %v3671 = vunpack.c.l.b16 %v3536
        %v3672 = vunpack.c.l.b16 %v3537
        %v3673 = vunpack.c.l.b16 %v3538
        %v3674 = vunpack.c.l.b16 %v3539
        %v3675 = vunpack.c.l.b16 %v3540
        %v3676 = vunpack.c.l.b16 %v3541
        %v3677 = vunpack.c.l.b16 %v3542
        %v3678 = vunpack.c.l.b16 %v3543
        %v3679 = vunpack.c.l.b16 %v3544
        %v3680 = vunpack.c.l.b16 %v3545
        %v3681 = vunpack.c.l.b16 %v3546
        %v3682 = vunpack.c.l.b16 %v3547
        %v3683 = vunpack.c.l.b16 %v3548
        %v3684 = vunpack.c.l.b16 %v3549
        %v3685 = vunpack.c.l.b16 %v3550
        %v3686 = vunpack.c.l.b16 %v3551
        %v3687 = vunpack.c.l.b16 %v3552
        %v3688 = vunpack.c.l.b16 %v3553
        %v3689 = vunpack.c.l.b16 %v3554
        %v3690 = vunpack.c.l.b16 %v3555
        %v3691 = vunpack.c.l.b16 %v3556
        %v3692 = vunpack.c.l.b16 %v3557
        %v3693 = vunpack.c.l.b16 %v3558
        %v3694 = vunpack.c.l.b16 %v3559
        %v3695 = vunpack.c.l.b16 %v3560
        %v3696 = vunpack.c.l.b16 %v3561
        %v3697 = vunpack.c.l.b16 %v3562
        %v3698 = vunpack.c.l.b16 %v3563
        %v3699 = vpack.c.b16 %v3636, %v3635
        %v3700 = vpack.c.b16 %v3638, %v3637
        %v3701 = vpack.c.b16 %v3640, %v3639
        %v3702 = vpack.c.b16 %v3642, %v3641
        %v3703 = vpack.c.b16 %v3644, %v3643
        %v3704 = vpack.c.b16 %v3646, %v3645
        %v3705 = vpack.c.b16 %v3648, %v3647
        %v3706 = vpack.c.b16 %v3650, %v3649
        %v3707 = vpack.c.b16 %v3652, %v3651
        %v3708 = vpack.c.b16 %v3654, %v3653
        %v3709 = vpack.c.b16 %v3656, %v3655
        %v3710 = vpack.c.b16 %v3658, %v3657
        %v3711 = vpack.c.b16 %v3660, %v3659
        %v3712 = vpack.c.b16 %v3662, %v3661
        %v3713 = vpack.c.b16 %v3664, %v3663
        %v3714 = vpack.c.b16 %v3666, %v3665
        %v3715 = vpack.c.b16 %v3668, %v3667
        %v3716 = vpack.c.b16 %v3670, %v3669
        %v3717 = vpack.c.b16 %v3672, %v3671
        %v3718 = vpack.c.b16 %v3674, %v3673
        %v3719 = vpack.c.b16 %v3676, %v3675
        %v3720 = vpack.c.b16 %v3678, %v3677
        %v3721 = vpack.c.b16 %v3680, %v3679
        %v3722 = vpack.c.b16 %v3682, %v3681
        %v3723 = vpack.c.b16 %v3684, %v3683
        %v3724 = vpack.c.b16 %v3686, %v3685
        %v3725 = vpack.c.b16 %v3688, %v3687
        %v3726 = vpack.c.b16 %v3690, %v3689
        %v3727 = vpack.c.b16 %v3692, %v3691
        %v3728 = vpack.c.b16 %v3694, %v3693
        %v3729 = vpack.c.b16 %v3696, %v3695
        %v3730 = vpack.c.b16 %v3698, %v3697
        %3763 = vmatprep.subr.bf16.mxu0 0
        %3764 = vmatpush1.bf16.msra.mxu0 %v3699
        %3765 = vmatprep.subr.bf16.mxu0 0
        %3766 = vmatpush1.bf16.msra.mxu0 %v3700
        %3767 = vmatprep.subr.bf16.mxu0 0
        %3768 = vmatpush1.bf16.msra.mxu0 %v3701
        %3769 = vmatprep.subr.bf16.mxu0 0
        %3770 = vmatpush1.bf16.msra.mxu0 %v3702
        %3771 = vmatprep.subr.bf16.mxu0 0
        %3772 = vmatpush1.bf16.msra.mxu0 %v3703
        %3773 = vmatprep.subr.bf16.mxu0 0
        %3774 = vmatpush1.bf16.msra.mxu0 %v3704
        %3775 = vmatprep.subr.bf16.mxu0 0
        %3776 = vmatpush1.bf16.msra.mxu0 %v3705
        %3777 = vmatprep.subr.bf16.mxu0 0
        %3778 = vmatpush1.bf16.msra.mxu0 %v3706
        %3779 = vmatprep.subr.bf16.mxu0 0
        %3780 = vmatpush1.bf16.msra.mxu0 %v3707
        %3781 = vmatprep.subr.bf16.mxu0 0
        %3782 = vmatpush1.bf16.msra.mxu0 %v3708
        %3783 = vmatprep.subr.bf16.mxu0 0
        %3784 = vmatpush1.bf16.msra.mxu0 %v3709
        %3785 = vmatprep.subr.bf16.mxu0 0
        %3786 = vmatpush1.bf16.msra.mxu0 %v3710
        %3787 = vmatprep.subr.bf16.mxu0 0
        %3788 = vmatpush1.bf16.msra.mxu0 %v3711
        %3789 = vmatprep.subr.bf16.mxu0 0
        %3790 = vmatpush1.bf16.msra.mxu0 %v3712
        %3791 = vmatprep.subr.bf16.mxu0 0
        %3792 = vmatpush1.bf16.msra.mxu0 %v3713
        %3793 = vmatprep.subr.bf16.mxu0 0
        %3794 = vmatpush1.bf16.msra.mxu0 %v3714
        %3795 = vmatprep.mubr.bf16.mxu0 %v3437
        %3796 = vmatmul.mubr.bf16.gmra.mrb[0].mxu0 %v3436
        %v3797 = vpop.f32.mrb[0].mxu0
        %v3798 = vadd.f32 %v3569, %v3797
        %v3799 = vpop.f32.mrb[0].mxu0
        %v3800 = vpop.f32.mrb[0].mxu0
        %v3801 = vadd.f32 %v3569, %v3800
        %v3802 = vpop.f32.mrb[0].mxu0
        %3803 = vmatprep.mubr.bf16.mxu0 %v3441
        %3804 = vmatmul.mubr.bf16.gmra.mrb[0].mxu0 %v3440
        %v3805 = vpop.f32.mrb[0].mxu0
        %v3806 = vadd.f32 %v3569, %v3805
        %v3807 = vpop.f32.mrb[0].mxu0
        %v3808 = vpop.f32.mrb[0].mxu0
        %v3809 = vadd.f32 %v3569, %v3808
        %v3810 = vpop.f32.mrb[0].mxu0
        %3811 = vmatprep.mubr.bf16.mxu0 %v3445
        %3812 = vmatmul.mubr.bf16.gmra.mrb[0].mxu0 %v3444
        %v3813 = vpop.f32.mrb[0].mxu0
        %v3814 = vadd.f32 %v3569, %v3813
        %v3815 = vpop.f32.mrb[0].mxu0
        %v3816 = vpop.f32.mrb[0].mxu0
        %v3817 = vadd.f32 %v3569, %v3816
        %v3818 = vpop.f32.mrb[0].mxu0
        %3819 = vmatprep.mubr.bf16.mxu0 %v3449
        %3820 = vmatmul.mubr.bf16.gmra.mrb[0].mxu0 %v3448
        %v3821 = vpop.f32.mrb[0].mxu0
        %v3822 = vadd.f32 %v3569, %v3821
        %v3823 = vpop.f32.mrb[0].mxu0
        %v3824 = vpop.f32.mrb[0].mxu0
        %v3825 = vadd.f32 %v3569, %v3824
        %v3826 = vpop.f32.mrb[0].mxu0
        %3827 = vmatprep.mubr.bf16.mxu0 %v3453
        %3828 = vmatmul.mubr.bf16.gmra.mrb[0].mxu0 %v3452
        %v3829 = vpop.f32.mrb[0].mxu0
        %v3830 = vadd.f32 %v3569, %v3829
        %v3831 = vpop.f32.mrb[0].mxu0
        %v3832 = vpop.f32.mrb[0].mxu0
        %v3833 = vadd.f32 %v3569, %v3832
        %v3834 = vpop.f32.mrb[0].mxu0
        %3835 = vmatprep.mubr.bf16.mxu0 %v3457
        %3836 = vmatmul.mubr.bf16.gmra.mrb[0].mxu0 %v3456
        %v3837 = vpop.f32.mrb[0].mxu0
        %v3838 = vadd.f32 %v3569, %v3837
        %v3839 = vpop.f32.mrb[0].mxu0
        %v3840 = vpop.f32.mrb[0].mxu0
        %v3841 = vadd.f32 %v3569, %v3840
        %v3842 = vpop.f32.mrb[0].mxu0
        %3843 = vmatprep.mubr.bf16.mxu0 %v3461
        %3844 = vmatmul.mubr.bf16.gmra.mrb[0].mxu0 %v3460
        %v3845 = vpop.f32.mrb[0].mxu0
        %v3846 = vadd.f32 %v3569, %v3845
        %v3847 = vpop.f32.mrb[0].mxu0
        %v3848 = vpop.f32.mrb[0].mxu0
        %v3849 = vadd.f32 %v3569, %v3848
        %v3850 = vpop.f32.mrb[0].mxu0
        %3851 = vmatprep.mubr.bf16.mxu0 %v3465
        %3852 = vmatmul.mubr.bf16.gmra.mrb[0].mxu0 %v3464
        %v3853 = vpop.f32.mrb[0].mxu0
        %v3854 = vadd.f32 %v3569, %v3853
        %v3855 = vpop.f32.mrb[0].mxu0
        %v3856 = vpop.f32.mrb[0].mxu0
        %v3857 = vadd.f32 %v3569, %v3856
        %v3858 = vpop.f32.mrb[0].mxu0
        %3859 = vmatprep.mubr.bf16.mxu0 %v3469
        %3860 = vmatmul.mubr.bf16.gmra.mrb[0].mxu0 %v3468
        %v3861 = vpop.f32.mrb[0].mxu0
        %v3862 = vadd.f32 %v3569, %v3861
        %v3863 = vpop.f32.mrb[0].mxu0
        %v3864 = vpop.f32.mrb[0].mxu0
        %v3865 = vadd.f32 %v3569, %v3864
        %v3866 = vpop.f32.mrb[0].mxu0
        %3867 = vmatprep.mubr.bf16.mxu0 %v3473
        %3868 = vmatmul.mubr.bf16.gmra.mrb[0].mxu0 %v3472
        %v3869 = vpop.f32.mrb[0].mxu0
        %v3870 = vadd.f32 %v3569, %v3869
        %v3871 = vpop.f32.mrb[0].mxu0
        %v3872 = vpop.f32.mrb[0].mxu0
        %v3873 = vadd.f32 %v3569, %v3872
        %v3874 = vpop.f32.mrb[0].mxu0
        %3875 = vmatprep.mubr.bf16.mxu0 %v3477
        %3876 = vmatmul.mubr.bf16.gmra.mrb[0].mxu0 %v3476
        %v3877 = vpop.f32.mrb[0].mxu0
        %v3878 = vadd.f32 %v3569, %v3877
        %v3879 = vpop.f32.mrb[0].mxu0
        %v3880 = vpop.f32.mrb[0].mxu0
        %v3881 = vadd.f32 %v3569, %v3880
        %v3882 = vpop.f32.mrb[0].mxu0
        %3883 = vmatprep.mubr.bf16.mxu0 %v3481
        %3884 = vmatmul.mubr.bf16.gmra.mrb[0].mxu0 %v3480
        %v3885 = vpop.f32.mrb[0].mxu0
        %v3886 = vadd.f32 %v3569, %v3885
        %v3887 = vpop.f32.mrb[0].mxu0
        %v3888 = vpop.f32.mrb[0].mxu0
        %v3889 = vadd.f32 %v3569, %v3888
        %v3890 = vpop.f32.mrb[0].mxu0
        %3891 = vmatprep.mubr.bf16.mxu0 %v3485
        %3892 = vmatmul.mubr.bf16.gmra.mrb[0].mxu0 %v3484
        %v3893 = vpop.f32.mrb[0].mxu0
        %v3894 = vadd.f32 %v3569, %v3893
        %v3895 = vpop.f32.mrb[0].mxu0
        %v3896 = vpop.f32.mrb[0].mxu0
        %v3897 = vadd.f32 %v3569, %v3896
        %v3898 = vpop.f32.mrb[0].mxu0
        %3899 = vmatprep.mubr.bf16.mxu0 %v3489
        %3900 = vmatmul.mubr.bf16.gmra.mrb[0].mxu0 %v3488
        %v3901 = vpop.f32.mrb[0].mxu0
        %v3902 = vadd.f32 %v3569, %v3901
        %v3903 = vpop.f32.mrb[0].mxu0
        %v3904 = vpop.f32.mrb[0].mxu0
        %v3905 = vadd.f32 %v3569, %v3904
        %v3906 = vpop.f32.mrb[0].mxu0
        %3907 = vmatprep.mubr.bf16.mxu0 %v3493
        %3908 = vmatmul.mubr.bf16.gmra.mrb[0].mxu0 %v3492
        %v3909 = vpop.f32.mrb[0].mxu0
        %v3910 = vadd.f32 %v3569, %v3909
        %v3911 = vpop.f32.mrb[0].mxu0
        %v3912 = vpop.f32.mrb[0].mxu0
        %v3913 = vadd.f32 %v3569, %v3912
        %v3914 = vpop.f32.mrb[0].mxu0
        %3915 = vmatprep.mubr.bf16.mxu0 %v3497
        %3916 = vmatmul.mubr.bf16.gmra.mrb[0].mxu0 %v3496
        %v3917 = vpop.f32.mrb[0].mxu0
        %v3918 = vadd.f32 %v3569, %v3917
        %v3919 = vpop.f32.mrb[0].mxu0
        %v3920 = vpop.f32.mrb[0].mxu0
        %v3921 = vadd.f32 %v3569, %v3920
        %v3922 = vpop.f32.mrb[0].mxu0
        %3923 = vdwg.mxu0
        %3924 = vmatprep.subr.bf16.mxu0 0
        %3925 = vmatpush1.bf16.msra.mxu0 %v3715
        %3926 = vmatprep.subr.bf16.mxu0 0
        %3927 = vmatpush1.bf16.msra.mxu0 %v3716
        %3928 = vmatprep.subr.bf16.mxu0 0
        %3929 = vmatpush1.bf16.msra.mxu0 %v3717
        %3930 = vmatprep.subr.bf16.mxu0 0
        %3931 = vmatpush1.bf16.msra.mxu0 %v3718
        %3932 = vmatprep.subr.bf16.mxu0 0
        %3933 = vmatpush1.bf16.msra.mxu0 %v3719
        %3934 = vmatprep.subr.bf16.mxu0 0
        %3935 = vmatpush1.bf16.msra.mxu0 %v3720
        %3936 = vmatprep.subr.bf16.mxu0 0
        %3937 = vmatpush1.bf16.msra.mxu0 %v3721
        %3938 = vmatprep.subr.bf16.mxu0 0
        %3939 = vmatpush1.bf16.msra.mxu0 %v3722
        %3940 = vmatprep.subr.bf16.mxu0 0
        %3941 = vmatpush1.bf16.msra.mxu0 %v3723
        %3942 = vmatprep.subr.bf16.mxu0 0
        %3943 = vmatpush1.bf16.msra.mxu0 %v3724
        %3944 = vmatprep.subr.bf16.mxu0 0
        %3945 = vmatpush1.bf16.msra.mxu0 %v3725
        %3946 = vmatprep.subr.bf16.mxu0 0
        %3947 = vmatpush1.bf16.msra.mxu0 %v3726
        %3948 = vmatprep.subr.bf16.mxu0 0
        %3949 = vmatpush1.bf16.msra.mxu0 %v3727
        %3950 = vmatprep.subr.bf16.mxu0 0
        %3951 = vmatpush1.bf16.msra.mxu0 %v3728
        %3952 = vmatprep.subr.bf16.mxu0 0
        %3953 = vmatpush1.bf16.msra.mxu0 %v3729
        %3954 = vmatprep.subr.bf16.mxu0 0
        %3955 = vmatpush1.bf16.msra.mxu0 %v3730
        %3956 = vmatprep.mubr.bf16.mxu0 %v3439
        %3957 = vmatmul.mubr.bf16.gmra.mrb[0].mxu0 %v3438
        %v3958 = vpop.f32.mrb[0].mxu0
        %v3959 = vadd.f32 %v3798, %v3958
        %v3960 = vpop.f32.mrb[0].mxu0
        %v3961 = vpop.f32.mrb[0].mxu0
        %v3962 = vadd.f32 %v3801, %v3961
        %v3963 = vpop.f32.mrb[0].mxu0
        %3964 = vmatprep.mubr.bf16.mxu0 %v3443
        %3965 = vmatmul.mubr.bf16.gmra.mrb[0].mxu0 %v3442
        %v3966 = vpop.f32.mrb[0].mxu0
        %v3967 = vadd.f32 %v3806, %v3966
        %v3968 = vpop.f32.mrb[0].mxu0
        %v3969 = vpop.f32.mrb[0].mxu0
        %v3970 = vadd.f32 %v3809, %v3969
        %v3971 = vpop.f32.mrb[0].mxu0
        %3972 = vmatprep.mubr.bf16.mxu0 %v3447
        %3973 = vmatmul.mubr.bf16.gmra.mrb[0].mxu0 %v3446
        %v3974 = vpop.f32.mrb[0].mxu0
        %v3975 = vadd.f32 %v3814, %v3974
        %v3976 = vpop.f32.mrb[0].mxu0
        %v3977 = vpop.f32.mrb[0].mxu0
        %v3978 = vadd.f32 %v3817, %v3977
        %v3979 = vpop.f32.mrb[0].mxu0
        %3980 = vmatprep.mubr.bf16.mxu0 %v3451
        %3981 = vmatmul.mubr.bf16.gmra.mrb[0].mxu0 %v3450
        %v3982 = vpop.f32.mrb[0].mxu0
        %v3983 = vadd.f32 %v3822, %v3982
        %v3984 = vpop.f32.mrb[0].mxu0
        %v3985 = vpop.f32.mrb[0].mxu0
        %v3986 = vadd.f32 %v3825, %v3985
        %v3987 = vpop.f32.mrb[0].mxu0
        %3988 = vmatprep.mubr.bf16.mxu0 %v3455
        %3989 = vmatmul.mubr.bf16.gmra.mrb[0].mxu0 %v3454
        %v3990 = vpop.f32.mrb[0].mxu0
        %v3991 = vadd.f32 %v3830, %v3990
        %v3992 = vpop.f32.mrb[0].mxu0
        %v3993 = vpop.f32.mrb[0].mxu0
        %v3994 = vadd.f32 %v3833, %v3993
        %v3995 = vpop.f32.mrb[0].mxu0
        %3996 = vmatprep.mubr.bf16.mxu0 %v3459
        %3997 = vmatmul.mubr.bf16.gmra.mrb[0].mxu0 %v3458
        %v3998 = vpop.f32.mrb[0].mxu0
        %v3999 = vadd.f32 %v3838, %v3998
        %v4000 = vpop.f32.mrb[0].mxu0
        %v4001 = vpop.f32.mrb[0].mxu0
        %v4002 = vadd.f32 %v3841, %v4001
        %v4003 = vpop.f32.mrb[0].mxu0
        %4004 = vmatprep.mubr.bf16.mxu0 %v3463
        %4005 = vmatmul.mubr.bf16.gmra.mrb[0].mxu0 %v3462
        %v4006 = vpop.f32.mrb[0].mxu0
        %v4007 = vadd.f32 %v3846, %v4006
        %v4008 = vpop.f32.mrb[0].mxu0
        %v4009 = vpop.f32.mrb[0].mxu0
        %v4010 = vadd.f32 %v3849, %v4009
        %v4011 = vpop.f32.mrb[0].mxu0
        %4012 = vmatprep.mubr.bf16.mxu0 %v3467
        %4013 = vmatmul.mubr.bf16.gmra.mrb[0].mxu0 %v3466
        %v4014 = vpop.f32.mrb[0].mxu0
        %v4015 = vadd.f32 %v3854, %v4014
        %v4016 = vpop.f32.mrb[0].mxu0
        %v4017 = vpop.f32.mrb[0].mxu0
        %v4018 = vadd.f32 %v3857, %v4017
        %v4019 = vpop.f32.mrb[0].mxu0
        %4020 = vmatprep.mubr.bf16.mxu0 %v3471
        %4021 = vmatmul.mubr.bf16.gmra.mrb[0].mxu0 %v3470
        %v4022 = vpop.f32.mrb[0].mxu0
        %v4023 = vadd.f32 %v3862, %v4022
        %v4024 = vpop.f32.mrb[0].mxu0
        %v4025 = vpop.f32.mrb[0].mxu0
        %v4026 = vadd.f32 %v3865, %v4025
        %v4027 = vpop.f32.mrb[0].mxu0
        %4028 = vmatprep.mubr.bf16.mxu0 %v3475
        %4029 = vmatmul.mubr.bf16.gmra.mrb[0].mxu0 %v3474
        %v4030 = vpop.f32.mrb[0].mxu0
        %v4031 = vadd.f32 %v3870, %v4030
        %v4032 = vpop.f32.mrb[0].mxu0
        %v4033 = vpop.f32.mrb[0].mxu0
        %v4034 = vadd.f32 %v3873, %v4033
        %v4035 = vpop.f32.mrb[0].mxu0
        %4036 = vmatprep.mubr.bf16.mxu0 %v3479
        %4037 = vmatmul.mubr.bf16.gmra.mrb[0].mxu0 %v3478
        %v4038 = vpop.f32.mrb[0].mxu0
        %v4039 = vadd.f32 %v3878, %v4038
        %v4040 = vpop.f32.mrb[0].mxu0
        %v4041 = vpop.f32.mrb[0].mxu0
        %v4042 = vadd.f32 %v3881, %v4041
        %v4043 = vpop.f32.mrb[0].mxu0
        %4044 = vmatprep.mubr.bf16.mxu0 %v3483
        %4045 = vmatmul.mubr.bf16.gmra.mrb[0].mxu0 %v3482
        %v4046 = vpop.f32.mrb[0].mxu0
        %v4047 = vadd.f32 %v3886, %v4046
        %v4048 = vpop.f32.mrb[0].mxu0
        %v4049 = vpop.f32.mrb[0].mxu0
        %v4050 = vadd.f32 %v3889, %v4049
        %v4051 = vpop.f32.mrb[0].mxu0
        %4052 = vmatprep.mubr.bf16.mxu0 %v3487
        %4053 = vmatmul.mubr.bf16.gmra.mrb[0].mxu0 %v3486
        %v4054 = vpop.f32.mrb[0].mxu0
        %v4055 = vadd.f32 %v3894, %v4054
        %v4056 = vpop.f32.mrb[0].mxu0
        %v4057 = vpop.f32.mrb[0].mxu0
        %v4058 = vadd.f32 %v3897, %v4057
        %v4059 = vpop.f32.mrb[0].mxu0
        %4060 = vmatprep.mubr.bf16.mxu0 %v3491
        %4061 = vmatmul.mubr.bf16.gmra.mrb[0].mxu0 %v3490
        %v4062 = vpop.f32.mrb[0].mxu0
        %v4063 = vadd.f32 %v3902, %v4062
        %v4064 = vpop.f32.mrb[0].mxu0
        %v4065 = vpop.f32.mrb[0].mxu0
        %v4066 = vadd.f32 %v3905, %v4065
        %v4067 = vpop.f32.mrb[0].mxu0
        %4068 = vmatprep.mubr.bf16.mxu0 %v3495
        %4069 = vmatmul.mubr.bf16.gmra.mrb[0].mxu0 %v3494
        %v4070 = vpop.f32.mrb[0].mxu0
        %v4071 = vadd.f32 %v3910, %v4070
        %v4072 = vpop.f32.mrb[0].mxu0
        %v4073 = vpop.f32.mrb[0].mxu0
        %v4074 = vadd.f32 %v3913, %v4073
        %v4075 = vpop.f32.mrb[0].mxu0
        %4076 = vmatprep.mubr.bf16.mxu0 %v3499
        %4077 = vmatmul.mubr.bf16.gmra.mrb[0].mxu0 %v3498
        %v4078 = vpop.f32.mrb[0].mxu0
        %v4079 = vadd.f32 %v3918, %v4078
        %v4080 = vpop.f32.mrb[0].mxu0
        %v4081 = vpop.f32.mrb[0].mxu0
        %v4082 = vadd.f32 %v3921, %v4081
        %v4083 = vpop.f32.mrb[0].mxu0
        %4084 = vdwg.mxu0
        %v4085 = vrot.slane %v3959, 4
        %v4086 = vmax.f32 %v3959, %v4085
        %v4087 = vrot.slane %v4086, 2
        %v4088 = vmax.f32 %v4086, %v4087
        %v4089 = vrot.slane %v4088, 1
        %v4090 = vmax.f32 %v4088, %v4089
        %v4091 = vrot.slane %v3962, 4
        %v4092 = vmax.f32 %v3962, %v4091
        %v4093 = vrot.slane %v4092, 2
        %v4094 = vmax.f32 %v4092, %v4093
        %v4095 = vrot.slane %v4094, 1
        %v4096 = vmax.f32 %v4094, %v4095
        %v4097 = vrot.slane %v3967, 4
        %v4098 = vmax.f32 %v3967, %v4097
        %v4099 = vrot.slane %v4098, 2
        %v4100 = vmax.f32 %v4098, %v4099
        %v4101 = vrot.slane %v4100, 1
        %v4102 = vmax.f32 %v4100, %v4101
        %v4103 = vrot.slane %v3970, 4
        %v4104 = vmax.f32 %v3970, %v4103
        %v4105 = vrot.slane %v4104, 2
        %v4106 = vmax.f32 %v4104, %v4105
        %v4107 = vrot.slane %v4106, 1
        %v4108 = vmax.f32 %v4106, %v4107
        %v4109 = vrot.slane %v3975, 4
        %v4110 = vmax.f32 %v3975, %v4109
        %v4111 = vrot.slane %v4110, 2
        %v4112 = vmax.f32 %v4110, %v4111
        %v4113 = vrot.slane %v4112, 1
        %v4114 = vmax.f32 %v4112, %v4113
        %v4115 = vrot.slane %v3978, 4
        %v4116 = vmax.f32 %v3978, %v4115
        %v4117 = vrot.slane %v4116, 2
        %v4118 = vmax.f32 %v4116, %v4117
        %v4119 = vrot.slane %v4118, 1
        %v4120 = vmax.f32 %v4118, %v4119
        %v4121 = vrot.slane %v3983, 4
        %v4122 = vmax.f32 %v3983, %v4121
        %v4123 = vrot.slane %v4122, 2
        %v4124 = vmax.f32 %v4122, %v4123
        %v4125 = vrot.slane %v4124, 1
        %v4126 = vmax.f32 %v4124, %v4125
        %v4127 = vrot.slane %v3986, 4
        %v4128 = vmax.f32 %v3986, %v4127
        %v4129 = vrot.slane %v4128, 2
        %v4130 = vmax.f32 %v4128, %v4129
        %v4131 = vrot.slane %v4130, 1
        %v4132 = vmax.f32 %v4130, %v4131
        %v4133 = vrot.slane %v3991, 4
        %v4134 = vmax.f32 %v3991, %v4133
        %v4135 = vrot.slane %v4134, 2
        %v4136 = vmax.f32 %v4134, %v4135
        %v4137 = vrot.slane %v4136, 1
        %v4138 = vmax.f32 %v4136, %v4137
        %v4139 = vrot.slane %v3994, 4
        %v4140 = vmax.f32 %v3994, %v4139
        %v4141 = vrot.slane %v4140, 2
        %v4142 = vmax.f32 %v4140, %v4141
        %v4143 = vrot.slane %v4142, 1
        %v4144 = vmax.f32 %v4142, %v4143
        %v4145 = vrot.slane %v3999, 4
        %v4146 = vmax.f32 %v3999, %v4145
        %v4147 = vrot.slane %v4146, 2
        %v4148 = vmax.f32 %v4146, %v4147
        %v4149 = vrot.slane %v4148, 1
        %v4150 = vmax.f32 %v4148, %v4149
        %v4151 = vrot.slane %v4002, 4
        %v4152 = vmax.f32 %v4002, %v4151
        %v4153 = vrot.slane %v4152, 2
        %v4154 = vmax.f32 %v4152, %v4153
        %v4155 = vrot.slane %v4154, 1
        %v4156 = vmax.f32 %v4154, %v4155
        %v4157 = vrot.slane %v4007, 4
        %v4158 = vmax.f32 %v4007, %v4157
        %v4159 = vrot.slane %v4158, 2
        %v4160 = vmax.f32 %v4158, %v4159
        %v4161 = vrot.slane %v4160, 1
        %v4162 = vmax.f32 %v4160, %v4161
        %v4163 = vrot.slane %v4010, 4
        %v4164 = vmax.f32 %v4010, %v4163
        %v4165 = vrot.slane %v4164, 2
        %v4166 = vmax.f32 %v4164, %v4165
        %v4167 = vrot.slane %v4166, 1
        %v4168 = vmax.f32 %v4166, %v4167
        %v4169 = vrot.slane %v4015, 4
        %v4170 = vmax.f32 %v4015, %v4169
        %v4171 = vrot.slane %v4170, 2
        %v4172 = vmax.f32 %v4170, %v4171
        %v4173 = vrot.slane %v4172, 1
        %v4174 = vmax.f32 %v4172, %v4173
        %v4175 = vrot.slane %v4018, 4
        %v4176 = vmax.f32 %v4018, %v4175
        %v4177 = vrot.slane %v4176, 2
        %v4178 = vmax.f32 %v4176, %v4177
        %v4179 = vrot.slane %v4178, 1
        %v4180 = vmax.f32 %v4178, %v4179
        %v4181 = vrot.slane %v4023, 4
        %v4182 = vmax.f32 %v4023, %v4181
        %v4183 = vrot.slane %v4182, 2
        %v4184 = vmax.f32 %v4182, %v4183
        %v4185 = vrot.slane %v4184, 1
        %v4186 = vmax.f32 %v4184, %v4185
        %v4187 = vrot.slane %v4026, 4
        %v4188 = vmax.f32 %v4026, %v4187
        %v4189 = vrot.slane %v4188, 2
        %v4190 = vmax.f32 %v4188, %v4189
        %v4191 = vrot.slane %v4190, 1
        %v4192 = vmax.f32 %v4190, %v4191
        %v4193 = vrot.slane %v4031, 4
        %v4194 = vmax.f32 %v4031, %v4193
        %v4195 = vrot.slane %v4194, 2
        %v4196 = vmax.f32 %v4194, %v4195
        %v4197 = vrot.slane %v4196, 1
        %v4198 = vmax.f32 %v4196, %v4197
        %v4199 = vrot.slane %v4034, 4
        %v4200 = vmax.f32 %v4034, %v4199
        %v4201 = vrot.slane %v4200, 2
        %v4202 = vmax.f32 %v4200, %v4201
        %v4203 = vrot.slane %v4202, 1
        %v4204 = vmax.f32 %v4202, %v4203
        %v4205 = vrot.slane %v4039, 4
        %v4206 = vmax.f32 %v4039, %v4205
        %v4207 = vrot.slane %v4206, 2
        %v4208 = vmax.f32 %v4206, %v4207
        %v4209 = vrot.slane %v4208, 1
        %v4210 = vmax.f32 %v4208, %v4209
        %v4211 = vrot.slane %v4042, 4
        %v4212 = vmax.f32 %v4042, %v4211
        %v4213 = vrot.slane %v4212, 2
        %v4214 = vmax.f32 %v4212, %v4213
        %v4215 = vrot.slane %v4214, 1
        %v4216 = vmax.f32 %v4214, %v4215
        %v4217 = vrot.slane %v4047, 4
        %v4218 = vmax.f32 %v4047, %v4217
        %v4219 = vrot.slane %v4218, 2
        %v4220 = vmax.f32 %v4218, %v4219
        %v4221 = vrot.slane %v4220, 1
        %v4222 = vmax.f32 %v4220, %v4221
        %v4223 = vrot.slane %v4050, 4
        %v4224 = vmax.f32 %v4050, %v4223
        %v4225 = vrot.slane %v4224, 2
        %v4226 = vmax.f32 %v4224, %v4225
        %v4227 = vrot.slane %v4226, 1
        %v4228 = vmax.f32 %v4226, %v4227
        %v4229 = vrot.slane %v4055, 4
        %v4230 = vmax.f32 %v4055, %v4229
        %v4231 = vrot.slane %v4230, 2
        %v4232 = vmax.f32 %v4230, %v4231
        %v4233 = vrot.slane %v4232, 1
        %v4234 = vmax.f32 %v4232, %v4233
        %v4235 = vrot.slane %v4058, 4
        %v4236 = vmax.f32 %v4058, %v4235
        %v4237 = vrot.slane %v4236, 2
        %v4238 = vmax.f32 %v4236, %v4237
        %v4239 = vrot.slane %v4238, 1
        %v4240 = vmax.f32 %v4238, %v4239
        %v4241 = vrot.slane %v4063, 4
        %v4242 = vmax.f32 %v4063, %v4241
        %v4243 = vrot.slane %v4242, 2
        %v4244 = vmax.f32 %v4242, %v4243
        %v4245 = vrot.slane %v4244, 1
        %v4246 = vmax.f32 %v4244, %v4245
        %v4247 = vrot.slane %v4066, 4
        %v4248 = vmax.f32 %v4066, %v4247
        %v4249 = vrot.slane %v4248, 2
        %v4250 = vmax.f32 %v4248, %v4249
        %v4251 = vrot.slane %v4250, 1
        %v4252 = vmax.f32 %v4250, %v4251
        %v4253 = vrot.slane %v4071, 4
        %v4254 = vmax.f32 %v4071, %v4253
        %v4255 = vrot.slane %v4254, 2
        %v4256 = vmax.f32 %v4254, %v4255
        %v4257 = vrot.slane %v4256, 1
        %v4258 = vmax.f32 %v4256, %v4257
        %v4259 = vrot.slane %v4074, 4
        %v4260 = vmax.f32 %v4074, %v4259
        %v4261 = vrot.slane %v4260, 2
        %v4262 = vmax.f32 %v4260, %v4261
        %v4263 = vrot.slane %v4262, 1
        %v4264 = vmax.f32 %v4262, %v4263
        %v4265 = vrot.slane %v4079, 4
        %v4266 = vmax.f32 %v4079, %v4265
        %v4267 = vrot.slane %v4266, 2
        %v4268 = vmax.f32 %v4266, %v4267
        %v4269 = vrot.slane %v4268, 1
        %v4270 = vmax.f32 %v4268, %v4269
        %v4271 = vrot.slane %v4082, 4
        %v4272 = vmax.f32 %v4082, %v4271
        %v4273 = vrot.slane %v4272, 2
        %v4274 = vmax.f32 %v4272, %v4273
        %v4275 = vrot.slane %v4274, 1
        %v4276 = vmax.f32 %v4274, %v4275
        %v4277 = vsub.f32 %v3959, %v4090
        %v4278 = vsub.f32 %v3962, %v4096
        %v4279 = vsub.f32 %v3967, %v4102
        %v4280 = vsub.f32 %v3970, %v4108
        %v4281 = vsub.f32 %v3975, %v4114
        %v4282 = vsub.f32 %v3978, %v4120
        %v4283 = vsub.f32 %v3983, %v4126
        %v4284 = vsub.f32 %v3986, %v4132
        %v4285 = vsub.f32 %v3991, %v4138
        %v4286 = vsub.f32 %v3994, %v4144
        %v4287 = vsub.f32 %v3999, %v4150
        %v4288 = vsub.f32 %v4002, %v4156
        %v4289 = vsub.f32 %v4007, %v4162
        %v4290 = vsub.f32 %v4010, %v4168
        %v4291 = vsub.f32 %v4015, %v4174
        %v4292 = vsub.f32 %v4018, %v4180
        %v4293 = vsub.f32 %v4023, %v4186
        %v4294 = vsub.f32 %v4026, %v4192
        %v4295 = vsub.f32 %v4031, %v4198
        %v4296 = vsub.f32 %v4034, %v4204
        %v4297 = vsub.f32 %v4039, %v4210
        %v4298 = vsub.f32 %v4042, %v4216
        %v4299 = vsub.f32 %v4047, %v4222
        %v4300 = vsub.f32 %v4050, %v4228
        %v4301 = vsub.f32 %v4055, %v4234
        %v4302 = vsub.f32 %v4058, %v4240
        %v4303 = vsub.f32 %v4063, %v4246
        %v4304 = vsub.f32 %v4066, %v4252
        %v4305 = vsub.f32 %v4071, %v4258
        %v4306 = vsub.f32 %v4074, %v4264
        %v4307 = vsub.f32 %v4079, %v4270
        %v4308 = vsub.f32 %v4082, %v4276
        %v4309 = vmul.f32 %v4277, 1.442695
        %v4310 = vpow.pop %v4309
        %v4311 = vmul.f32 %v4278, 1.442695
        %v4312 = vpow.pop %v4311
        %v4313 = vmul.f32 %v4279, 1.442695
        %v4314 = vpow.pop %v4313
        %v4315 = vmul.f32 %v4280, 1.442695
        %v4316 = vpow.pop %v4315
        %v4317 = vmul.f32 %v4281, 1.442695
        %v4318 = vpow.pop %v4317
        %v4319 = vmul.f32 %v4282, 1.442695
        %v4320 = vpow.pop %v4319
        %v4321 = vmul.f32 %v4283, 1.442695
        %v4322 = vpow.pop %v4321
        %v4323 = vmul.f32 %v4284, 1.442695
        %v4324 = vpow.pop %v4323
        %v4325 = vmul.f32 %v4285, 1.442695
        %v4326 = vpow.pop %v4325
        %v4327 = vmul.f32 %v4286, 1.442695
        %v4328 = vpow.pop %v4327
        %v4329 = vmul.f32 %v4287, 1.442695
        %v4330 = vpow.pop %v4329
        %v4331 = vmul.f32 %v4288, 1.442695
        %v4332 = vpow.pop %v4331
        %v4333 = vmul.f32 %v4289, 1.442695
        %v4334 = vpow.pop %v4333
        %v4335 = vmul.f32 %v4290, 1.442695
        %v4336 = vpow.pop %v4335
        %v4337 = vmul.f32 %v4291, 1.442695
        %v4338 = vpow.pop %v4337
        %v4339 = vmul.f32 %v4292, 1.442695
        %v4340 = vpow.pop %v4339
        %v4341 = vmul.f32 %v4293, 1.442695
        %v4342 = vpow.pop %v4341
        %v4343 = vmul.f32 %v4294, 1.442695
        %v4344 = vpow.pop %v4343
        %v4345 = vmul.f32 %v4295, 1.442695
        %v4346 = vpow.pop %v4345
        %v4347 = vmul.f32 %v4296, 1.442695
        %v4348 = vpow.pop %v4347
        %v4349 = vmul.f32 %v4297, 1.442695
        %v4350 = vpow.pop %v4349
        %v4351 = vmul.f32 %v4298, 1.442695
        %v4352 = vpow.pop %v4351
        %v4353 = vmul.f32 %v4299, 1.442695
        %v4354 = vpow.pop %v4353
        %v4355 = vmul.f32 %v4300, 1.442695
        %v4356 = vpow.pop %v4355
        %v4357 = vmul.f32 %v4301, 1.442695
        %v4358 = vpow.pop %v4357
        %v4359 = vmul.f32 %v4302, 1.442695
        %v4360 = vpow.pop %v4359
        %v4361 = vmul.f32 %v4303, 1.442695
        %v4362 = vpow.pop %v4361
        %v4363 = vmul.f32 %v4304, 1.442695
        %v4364 = vpow.pop %v4363
        %v4365 = vmul.f32 %v4305, 1.442695
        %v4366 = vpow.pop %v4365
        %v4367 = vmul.f32 %v4306, 1.442695
        %v4368 = vpow.pop %v4367
        %v4369 = vmul.f32 %v4307, 1.442695
        %v4370 = vpow.pop %v4369
        %v4371 = vmul.f32 %v4308, 1.442695
        %v4372 = vpow.pop %v4371
        %v4373 = vrot.slane %v4310, 4
        %v4374 = vadd.f32 %v4310, %v4373
        %v4375 = vrot.slane %v4374, 2
        %v4376 = vadd.f32 %v4374, %v4375
        %v4377 = vrot.slane %v4376, 1
        %v4378 = vadd.f32 %v4376, %v4377
        %v4379 = vrot.slane %v4312, 4
        %v4380 = vadd.f32 %v4312, %v4379
        %v4381 = vrot.slane %v4380, 2
        %v4382 = vadd.f32 %v4380, %v4381
        %v4383 = vrot.slane %v4382, 1
        %v4384 = vadd.f32 %v4382, %v4383
        %v4385 = vrot.slane %v4314, 4
        %v4386 = vadd.f32 %v4314, %v4385
        %v4387 = vrot.slane %v4386, 2
        %v4388 = vadd.f32 %v4386, %v4387
        %v4389 = vrot.slane %v4388, 1
        %v4390 = vadd.f32 %v4388, %v4389
        %v4391 = vrot.slane %v4316, 4
        %v4392 = vadd.f32 %v4316, %v4391
        %v4393 = vrot.slane %v4392, 2
        %v4394 = vadd.f32 %v4392, %v4393
        %v4395 = vrot.slane %v4394, 1
        %v4396 = vadd.f32 %v4394, %v4395
        %v4397 = vrot.slane %v4318, 4
        %v4398 = vadd.f32 %v4318, %v4397
        %v4399 = vrot.slane %v4398, 2
        %v4400 = vadd.f32 %v4398, %v4399
        %v4401 = vrot.slane %v4400, 1
        %v4402 = vadd.f32 %v4400, %v4401
        %v4403 = vrot.slane %v4320, 4
        %v4404 = vadd.f32 %v4320, %v4403
        %v4405 = vrot.slane %v4404, 2
        %v4406 = vadd.f32 %v4404, %v4405
        %v4407 = vrot.slane %v4406, 1
        %v4408 = vadd.f32 %v4406, %v4407
        %v4409 = vrot.slane %v4322, 4
        %v4410 = vadd.f32 %v4322, %v4409
        %v4411 = vrot.slane %v4410, 2
        %v4412 = vadd.f32 %v4410, %v4411
        %v4413 = vrot.slane %v4412, 1
        %v4414 = vadd.f32 %v4412, %v4413
        %v4415 = vrot.slane %v4324, 4
        %v4416 = vadd.f32 %v4324, %v4415
        %v4417 = vrot.slane %v4416, 2
        %v4418 = vadd.f32 %v4416, %v4417
        %v4419 = vrot.slane %v4418, 1
        %v4420 = vadd.f32 %v4418, %v4419
        %v4421 = vrot.slane %v4326, 4
        %v4422 = vadd.f32 %v4326, %v4421
        %v4423 = vrot.slane %v4422, 2
        %v4424 = vadd.f32 %v4422, %v4423
        %v4425 = vrot.slane %v4424, 1
        %v4426 = vadd.f32 %v4424, %v4425
        %v4427 = vrot.slane %v4328, 4
        %v4428 = vadd.f32 %v4328, %v4427
        %v4429 = vrot.slane %v4428, 2
        %v4430 = vadd.f32 %v4428, %v4429
        %v4431 = vrot.slane %v4430, 1
        %v4432 = vadd.f32 %v4430, %v4431
        %v4433 = vrot.slane %v4330, 4
        %v4434 = vadd.f32 %v4330, %v4433
        %v4435 = vrot.slane %v4434, 2
        %v4436 = vadd.f32 %v4434, %v4435
        %v4437 = vrot.slane %v4436, 1
        %v4438 = vadd.f32 %v4436, %v4437
        %v4439 = vrot.slane %v4332, 4
        %v4440 = vadd.f32 %v4332, %v4439
        %v4441 = vrot.slane %v4440, 2
        %v4442 = vadd.f32 %v4440, %v4441
        %v4443 = vrot.slane %v4442, 1
        %v4444 = vadd.f32 %v4442, %v4443
        %v4445 = vrot.slane %v4334, 4
        %v4446 = vadd.f32 %v4334, %v4445
        %v4447 = vrot.slane %v4446, 2
        %v4448 = vadd.f32 %v4446, %v4447
        %v4449 = vrot.slane %v4448, 1
        %v4450 = vadd.f32 %v4448, %v4449
        %v4451 = vrot.slane %v4336, 4
        %v4452 = vadd.f32 %v4336, %v4451
        %v4453 = vrot.slane %v4452, 2
        %v4454 = vadd.f32 %v4452, %v4453
        %v4455 = vrot.slane %v4454, 1
        %v4456 = vadd.f32 %v4454, %v4455
        %v4457 = vrot.slane %v4338, 4
        %v4458 = vadd.f32 %v4338, %v4457
        %v4459 = vrot.slane %v4458, 2
        %v4460 = vadd.f32 %v4458, %v4459
        %v4461 = vrot.slane %v4460, 1
        %v4462 = vadd.f32 %v4460, %v4461
        %v4463 = vrot.slane %v4340, 4
        %v4464 = vadd.f32 %v4340, %v4463
        %v4465 = vrot.slane %v4464, 2
        %v4466 = vadd.f32 %v4464, %v4465
        %v4467 = vrot.slane %v4466, 1
        %v4468 = vadd.f32 %v4466, %v4467
        %v4469 = vrot.slane %v4342, 4
        %v4470 = vadd.f32 %v4342, %v4469
        %v4471 = vrot.slane %v4470, 2
        %v4472 = vadd.f32 %v4470, %v4471
        %v4473 = vrot.slane %v4472, 1
        %v4474 = vadd.f32 %v4472, %v4473
        %v4475 = vrot.slane %v4344, 4
        %v4476 = vadd.f32 %v4344, %v4475
        %v4477 = vrot.slane %v4476, 2
        %v4478 = vadd.f32 %v4476, %v4477
        %v4479 = vrot.slane %v4478, 1
        %v4480 = vadd.f32 %v4478, %v4479
        %v4481 = vrot.slane %v4346, 4
        %v4482 = vadd.f32 %v4346, %v4481
        %v4483 = vrot.slane %v4482, 2
        %v4484 = vadd.f32 %v4482, %v4483
        %v4485 = vrot.slane %v4484, 1
        %v4486 = vadd.f32 %v4484, %v4485
        %v4487 = vrot.slane %v4348, 4
        %v4488 = vadd.f32 %v4348, %v4487
        %v4489 = vrot.slane %v4488, 2
        %v4490 = vadd.f32 %v4488, %v4489
        %v4491 = vrot.slane %v4490, 1
        %v4492 = vadd.f32 %v4490, %v4491
        %v4493 = vrot.slane %v4350, 4
        %v4494 = vadd.f32 %v4350, %v4493
        %v4495 = vrot.slane %v4494, 2
        %v4496 = vadd.f32 %v4494, %v4495
        %v4497 = vrot.slane %v4496, 1
        %v4498 = vadd.f32 %v4496, %v4497
        %v4499 = vrot.slane %v4352, 4
        %v4500 = vadd.f32 %v4352, %v4499
        %v4501 = vrot.slane %v4500, 2
        %v4502 = vadd.f32 %v4500, %v4501
        %v4503 = vrot.slane %v4502, 1
        %v4504 = vadd.f32 %v4502, %v4503
        %v4505 = vrot.slane %v4354, 4
        %v4506 = vadd.f32 %v4354, %v4505
        %v4507 = vrot.slane %v4506, 2
        %v4508 = vadd.f32 %v4506, %v4507
        %v4509 = vrot.slane %v4508, 1
        %v4510 = vadd.f32 %v4508, %v4509
        %v4511 = vrot.slane %v4356, 4
        %v4512 = vadd.f32 %v4356, %v4511
        %v4513 = vrot.slane %v4512, 2
        %v4514 = vadd.f32 %v4512, %v4513
        %v4515 = vrot.slane %v4514, 1
        %v4516 = vadd.f32 %v4514, %v4515
        %v4517 = vrot.slane %v4358, 4
        %v4518 = vadd.f32 %v4358, %v4517
        %v4519 = vrot.slane %v4518, 2
        %v4520 = vadd.f32 %v4518, %v4519
        %v4521 = vrot.slane %v4520, 1
        %v4522 = vadd.f32 %v4520, %v4521
        %v4523 = vrot.slane %v4360, 4
        %v4524 = vadd.f32 %v4360, %v4523
        %v4525 = vrot.slane %v4524, 2
        %v4526 = vadd.f32 %v4524, %v4525
        %v4527 = vrot.slane %v4526, 1
        %v4528 = vadd.f32 %v4526, %v4527
        %v4529 = vrot.slane %v4362, 4
        %v4530 = vadd.f32 %v4362, %v4529
        %v4531 = vrot.slane %v4530, 2
        %v4532 = vadd.f32 %v4530, %v4531
        %v4533 = vrot.slane %v4532, 1
        %v4534 = vadd.f32 %v4532, %v4533
        %v4535 = vrot.slane %v4364, 4
        %v4536 = vadd.f32 %v4364, %v4535
        %v4537 = vrot.slane %v4536, 2
        %v4538 = vadd.f32 %v4536, %v4537
        %v4539 = vrot.slane %v4538, 1
        %v4540 = vadd.f32 %v4538, %v4539
        %v4541 = vrot.slane %v4366, 4
        %v4542 = vadd.f32 %v4366, %v4541
        %v4543 = vrot.slane %v4542, 2
        %v4544 = vadd.f32 %v4542, %v4543
        %v4545 = vrot.slane %v4544, 1
        %v4546 = vadd.f32 %v4544, %v4545
        %v4547 = vrot.slane %v4368, 4
        %v4548 = vadd.f32 %v4368, %v4547
        %v4549 = vrot.slane %v4548, 2
        %v4550 = vadd.f32 %v4548, %v4549
        %v4551 = vrot.slane %v4550, 1
        %v4552 = vadd.f32 %v4550, %v4551
        %v4553 = vrot.slane %v4370, 4
        %v4554 = vadd.f32 %v4370, %v4553
        %v4555 = vrot.slane %v4554, 2
        %v4556 = vadd.f32 %v4554, %v4555
        %v4557 = vrot.slane %v4556, 1
        %v4558 = vadd.f32 %v4556, %v4557
        %v4559 = vrot.slane %v4372, 4
        %v4560 = vadd.f32 %v4372, %v4559
        %v4561 = vrot.slane %v4560, 2
        %v4562 = vadd.f32 %v4560, %v4561
        %v4563 = vrot.slane %v4562, 1
        %v4564 = vadd.f32 %v4562, %v4563
        %v4565 = vrcp.pop %v4378
        %v4566 = vrcp.pop %v4384
        %v4567 = vrcp.pop %v4390
        %v4568 = vrcp.pop %v4396
        %v4569 = vrcp.pop %v4402
        %v4570 = vrcp.pop %v4408
        %v4571 = vrcp.pop %v4414
        %v4572 = vrcp.pop %v4420
        %v4573 = vrcp.pop %v4426
        %v4574 = vrcp.pop %v4432
        %v4575 = vrcp.pop %v4438
        %v4576 = vrcp.pop %v4444
        %v4577 = vrcp.pop %v4450
        %v4578 = vrcp.pop %v4456
        %v4579 = vrcp.pop %v4462
        %v4580 = vrcp.pop %v4468
        %v4581 = vrcp.pop %v4474
        %v4582 = vrcp.pop %v4480
        %v4583 = vrcp.pop %v4486
        %v4584 = vrcp.pop %v4492
        %v4585 = vrcp.pop %v4498
        %v4586 = vrcp.pop %v4504
        %v4587 = vrcp.pop %v4510
        %v4588 = vrcp.pop %v4516
        %v4589 = vrcp.pop %v4522
        %v4590 = vrcp.pop %v4528
        %v4591 = vrcp.pop %v4534
        %v4592 = vrcp.pop %v4540
        %v4593 = vrcp.pop %v4546
        %v4594 = vrcp.pop %v4552
        %v4595 = vrcp.pop %v4558
        %v4596 = vrcp.pop %v4564
        %v4597 = vmul.f32 %v4310, %v4565
        %v4598 = vmul.f32 %v4312, %v4566
        %v4599 = vmul.f32 %v4314, %v4567
        %v4600 = vmul.f32 %v4316, %v4568
        %v4601 = vmul.f32 %v4318, %v4569
        %v4602 = vmul.f32 %v4320, %v4570
        %v4603 = vmul.f32 %v4322, %v4571
        %v4604 = vmul.f32 %v4324, %v4572
        %v4605 = vmul.f32 %v4326, %v4573
        %v4606 = vmul.f32 %v4328, %v4574
        %v4607 = vmul.f32 %v4330, %v4575
        %v4608 = vmul.f32 %v4332, %v4576
        %v4609 = vmul.f32 %v4334, %v4577
        %v4610 = vmul.f32 %v4336, %v4578
        %v4611 = vmul.f32 %v4338, %v4579
        %v4612 = vmul.f32 %v4340, %v4580
        %v4613 = vmul.f32 %v4342, %v4581
        %v4614 = vmul.f32 %v4344, %v4582
        %v4615 = vmul.f32 %v4346, %v4583
        %v4616 = vmul.f32 %v4348, %v4584
        %v4617 = vmul.f32 %v4350, %v4585
        %v4618 = vmul.f32 %v4352, %v4586
        %v4619 = vmul.f32 %v4354, %v4587
        %v4620 = vmul.f32 %v4356, %v4588
        %v4621 = vmul.f32 %v4358, %v4589
        %v4622 = vmul.f32 %v4360, %v4590
        %v4623 = vmul.f32 %v4362, %v4591
        %v4624 = vmul.f32 %v4364, %v4592
        %v4625 = vmul.f32 %v4366, %v4593
        %v4626 = vmul.f32 %v4368, %v4594
        %v4627 = vmul.f32 %v4370, %v4595
        %v4628 = vmul.f32 %v4372, %v4596
        %v4629 = vadd.f32 %v1278, %v2225
        %v4630 = vadd.f32 %v1281, %v2229
        %v4631 = vadd.f32 %v1286, %v2233
        %v4632 = vadd.f32 %v1289, %v2237
        %v4633 = vadd.f32 %v1294, %v2241
        %v4634 = vadd.f32 %v1297, %v2245
        %v4635 = vadd.f32 %v1302, %v2249
        %v4636 = vadd.f32 %v1305, %v2253
        %v4637 = vadd.f32 %v1310, %v2257
        %v4638 = vadd.f32 %v1313, %v2261
        %v4639 = vadd.f32 %v1318, %v2265
        %v4640 = vadd.f32 %v1321, %v2269
        %v4641 = vadd.f32 %v1326, %v2273
        %v4642 = vadd.f32 %v1329, %v2277
        %v4643 = vadd.f32 %v1334, %v2281
        %v4644 = vadd.f32 %v1337, %v2285
        %v4645 = vadd.f32 %v1342, %v2289
        %v4646 = vadd.f32 %v1345, %v2293
        %v4647 = vadd.f32 %v1350, %v2297
        %v4648 = vadd.f32 %v1353, %v2301
        %v4649 = vadd.f32 %v1358, %v2305
        %v4650 = vadd.f32 %v1361, %v2309
        %v4651 = vadd.f32 %v1366, %v2313
        %v4652 = vadd.f32 %v1369, %v2317
        %v4653 = vadd.f32 %v1374, %v2321
        %v4654 = vadd.f32 %v1377, %v2325
        %v4655 = vadd.f32 %v1382, %v2329
        %v4656 = vadd.f32 %v1385, %v2333
        %v4657 = vadd.f32 %v1390, %v2337
        %v4658 = vadd.f32 %v1393, %v2341
        %v4659 = vadd.f32 %v1398, %v2345
        %v4660 = vadd.f32 %v1401, %v2349
        %v4661 = vmul.f32 %v4597, %v4629
        %v4662 = vmul.f32 %v4598, %v4630
        %v4663 = vmul.f32 %v4599, %v4631
        %v4664 = vmul.f32 %v4600, %v4632
        %v4665 = vmul.f32 %v4601, %v4633
        %v4666 = vmul.f32 %v4602, %v4634
        %v4667 = vmul.f32 %v4603, %v4635
        %v4668 = vmul.f32 %v4604, %v4636
        %v4669 = vmul.f32 %v4605, %v4637
        %v4670 = vmul.f32 %v4606, %v4638
        %v4671 = vmul.f32 %v4607, %v4639
        %v4672 = vmul.f32 %v4608, %v4640
        %v4673 = vmul.f32 %v4609, %v4641
        %v4674 = vmul.f32 %v4610, %v4642
        %v4675 = vmul.f32 %v4611, %v4643
        %v4676 = vmul.f32 %v4612, %v4644
        %v4677 = vmul.f32 %v4613, %v4645
        %v4678 = vmul.f32 %v4614, %v4646
        %v4679 = vmul.f32 %v4615, %v4647
        %v4680 = vmul.f32 %v4616, %v4648
        %v4681 = vmul.f32 %v4617, %v4649
        %v4682 = vmul.f32 %v4618, %v4650
        %v4683 = vmul.f32 %v4619, %v4651
        %v4684 = vmul.f32 %v4620, %v4652
        %v4685 = vmul.f32 %v4621, %v4653
        %v4686 = vmul.f32 %v4622, %v4654
        %v4687 = vmul.f32 %v4623, %v4655
        %v4688 = vmul.f32 %v4624, %v4656
        %v4689 = vmul.f32 %v4625, %v4657
        %v4690 = vmul.f32 %v4626, %v4658
        %v4691 = vmul.f32 %v4627, %v4659
        %v4692 = vmul.f32 %v4628, %v4660
        %v4693 = vrot.slane %v4661, 4
        %v4694 = vadd.f32 %v4661, %v4693
        %v4695 = vrot.slane %v4694, 2
        %v4696 = vadd.f32 %v4694, %v4695
        %v4697 = vrot.slane %v4696, 1
        %v4698 = vadd.f32 %v4696, %v4697
        %v4699 = vrot.slane %v4662, 4
        %v4700 = vadd.f32 %v4662, %v4699
        %v4701 = vrot.slane %v4700, 2
        %v4702 = vadd.f32 %v4700, %v4701
        %v4703 = vrot.slane %v4702, 1
        %v4704 = vadd.f32 %v4702, %v4703
        %v4705 = vrot.slane %v4663, 4
        %v4706 = vadd.f32 %v4663, %v4705
        %v4707 = vrot.slane %v4706, 2
        %v4708 = vadd.f32 %v4706, %v4707
        %v4709 = vrot.slane %v4708, 1
        %v4710 = vadd.f32 %v4708, %v4709
        %v4711 = vrot.slane %v4664, 4
        %v4712 = vadd.f32 %v4664, %v4711
        %v4713 = vrot.slane %v4712, 2
        %v4714 = vadd.f32 %v4712, %v4713
        %v4715 = vrot.slane %v4714, 1
        %v4716 = vadd.f32 %v4714, %v4715
        %v4717 = vrot.slane %v4665, 4
        %v4718 = vadd.f32 %v4665, %v4717
        %v4719 = vrot.slane %v4718, 2
        %v4720 = vadd.f32 %v4718, %v4719
        %v4721 = vrot.slane %v4720, 1
        %v4722 = vadd.f32 %v4720, %v4721
        %v4723 = vrot.slane %v4666, 4
        %v4724 = vadd.f32 %v4666, %v4723
        %v4725 = vrot.slane %v4724, 2
        %v4726 = vadd.f32 %v4724, %v4725
        %v4727 = vrot.slane %v4726, 1
        %v4728 = vadd.f32 %v4726, %v4727
        %v4729 = vrot.slane %v4667, 4
        %v4730 = vadd.f32 %v4667, %v4729
        %v4731 = vrot.slane %v4730, 2
        %v4732 = vadd.f32 %v4730, %v4731
        %v4733 = vrot.slane %v4732, 1
        %v4734 = vadd.f32 %v4732, %v4733
        %v4735 = vrot.slane %v4668, 4
        %v4736 = vadd.f32 %v4668, %v4735
        %v4737 = vrot.slane %v4736, 2
        %v4738 = vadd.f32 %v4736, %v4737
        %v4739 = vrot.slane %v4738, 1
        %v4740 = vadd.f32 %v4738, %v4739
        %v4741 = vrot.slane %v4669, 4
        %v4742 = vadd.f32 %v4669, %v4741
        %v4743 = vrot.slane %v4742, 2
        %v4744 = vadd.f32 %v4742, %v4743
        %v4745 = vrot.slane %v4744, 1
        %v4746 = vadd.f32 %v4744, %v4745
        %v4747 = vrot.slane %v4670, 4
        %v4748 = vadd.f32 %v4670, %v4747
        %v4749 = vrot.slane %v4748, 2
        %v4750 = vadd.f32 %v4748, %v4749
        %v4751 = vrot.slane %v4750, 1
        %v4752 = vadd.f32 %v4750, %v4751
        %v4753 = vrot.slane %v4671, 4
        %v4754 = vadd.f32 %v4671, %v4753
        %v4755 = vrot.slane %v4754, 2
        %v4756 = vadd.f32 %v4754, %v4755
        %v4757 = vrot.slane %v4756, 1
        %v4758 = vadd.f32 %v4756, %v4757
        %v4759 = vrot.slane %v4672, 4
        %v4760 = vadd.f32 %v4672, %v4759
        %v4761 = vrot.slane %v4760, 2
        %v4762 = vadd.f32 %v4760, %v4761
        %v4763 = vrot.slane %v4762, 1
        %v4764 = vadd.f32 %v4762, %v4763
        %v4765 = vrot.slane %v4673, 4
        %v4766 = vadd.f32 %v4673, %v4765
        %v4767 = vrot.slane %v4766, 2
        %v4768 = vadd.f32 %v4766, %v4767
        %v4769 = vrot.slane %v4768, 1
        %v4770 = vadd.f32 %v4768, %v4769
        %v4771 = vrot.slane %v4674, 4
        %v4772 = vadd.f32 %v4674, %v4771
        %v4773 = vrot.slane %v4772, 2
        %v4774 = vadd.f32 %v4772, %v4773
        %v4775 = vrot.slane %v4774, 1
        %v4776 = vadd.f32 %v4774, %v4775
        %v4777 = vrot.slane %v4675, 4
        %v4778 = vadd.f32 %v4675, %v4777
        %v4779 = vrot.slane %v4778, 2
        %v4780 = vadd.f32 %v4778, %v4779
        %v4781 = vrot.slane %v4780, 1
        %v4782 = vadd.f32 %v4780, %v4781
        %v4783 = vrot.slane %v4676, 4
        %v4784 = vadd.f32 %v4676, %v4783
        %v4785 = vrot.slane %v4784, 2
        %v4786 = vadd.f32 %v4784, %v4785
        %v4787 = vrot.slane %v4786, 1
        %v4788 = vadd.f32 %v4786, %v4787
        %v4789 = vrot.slane %v4677, 4
        %v4790 = vadd.f32 %v4677, %v4789
        %v4791 = vrot.slane %v4790, 2
        %v4792 = vadd.f32 %v4790, %v4791
        %v4793 = vrot.slane %v4792, 1
        %v4794 = vadd.f32 %v4792, %v4793
        %v4795 = vrot.slane %v4678, 4
        %v4796 = vadd.f32 %v4678, %v4795
        %v4797 = vrot.slane %v4796, 2
        %v4798 = vadd.f32 %v4796, %v4797
        %v4799 = vrot.slane %v4798, 1
        %v4800 = vadd.f32 %v4798, %v4799
        %v4801 = vrot.slane %v4679, 4
        %v4802 = vadd.f32 %v4679, %v4801
        %v4803 = vrot.slane %v4802, 2
        %v4804 = vadd.f32 %v4802, %v4803
        %v4805 = vrot.slane %v4804, 1
        %v4806 = vadd.f32 %v4804, %v4805
        %v4807 = vrot.slane %v4680, 4
        %v4808 = vadd.f32 %v4680, %v4807
        %v4809 = vrot.slane %v4808, 2
        %v4810 = vadd.f32 %v4808, %v4809
        %v4811 = vrot.slane %v4810, 1
        %v4812 = vadd.f32 %v4810, %v4811
        %v4813 = vrot.slane %v4681, 4
        %v4814 = vadd.f32 %v4681, %v4813
        %v4815 = vrot.slane %v4814, 2
        %v4816 = vadd.f32 %v4814, %v4815
        %v4817 = vrot.slane %v4816, 1
        %v4818 = vadd.f32 %v4816, %v4817
        %v4819 = vrot.slane %v4682, 4
        %v4820 = vadd.f32 %v4682, %v4819
        %v4821 = vrot.slane %v4820, 2
        %v4822 = vadd.f32 %v4820, %v4821
        %v4823 = vrot.slane %v4822, 1
        %v4824 = vadd.f32 %v4822, %v4823
        %v4825 = vrot.slane %v4683, 4
        %v4826 = vadd.f32 %v4683, %v4825
        %v4827 = vrot.slane %v4826, 2
        %v4828 = vadd.f32 %v4826, %v4827
        %v4829 = vrot.slane %v4828, 1
        %v4830 = vadd.f32 %v4828, %v4829
        %v4831 = vrot.slane %v4684, 4
        %v4832 = vadd.f32 %v4684, %v4831
        %v4833 = vrot.slane %v4832, 2
        %v4834 = vadd.f32 %v4832, %v4833
        %v4835 = vrot.slane %v4834, 1
        %v4836 = vadd.f32 %v4834, %v4835
        %v4837 = vrot.slane %v4685, 4
        %v4838 = vadd.f32 %v4685, %v4837
        %v4839 = vrot.slane %v4838, 2
        %v4840 = vadd.f32 %v4838, %v4839
        %v4841 = vrot.slane %v4840, 1
        %v4842 = vadd.f32 %v4840, %v4841
        %v4843 = vrot.slane %v4686, 4
        %v4844 = vadd.f32 %v4686, %v4843
        %v4845 = vrot.slane %v4844, 2
        %v4846 = vadd.f32 %v4844, %v4845
        %v4847 = vrot.slane %v4846, 1
        %v4848 = vadd.f32 %v4846, %v4847
        %v4849 = vrot.slane %v4687, 4
        %v4850 = vadd.f32 %v4687, %v4849
        %v4851 = vrot.slane %v4850, 2
        %v4852 = vadd.f32 %v4850, %v4851
        %v4853 = vrot.slane %v4852, 1
        %v4854 = vadd.f32 %v4852, %v4853
        %v4855 = vrot.slane %v4688, 4
        %v4856 = vadd.f32 %v4688, %v4855
        %v4857 = vrot.slane %v4856, 2
        %v4858 = vadd.f32 %v4856, %v4857
        %v4859 = vrot.slane %v4858, 1
        %v4860 = vadd.f32 %v4858, %v4859
        %v4861 = vrot.slane %v4689, 4
        %v4862 = vadd.f32 %v4689, %v4861
        %v4863 = vrot.slane %v4862, 2
        %v4864 = vadd.f32 %v4862, %v4863
        %v4865 = vrot.slane %v4864, 1
        %v4866 = vadd.f32 %v4864, %v4865
        %v4867 = vrot.slane %v4690, 4
        %v4868 = vadd.f32 %v4690, %v4867
        %v4869 = vrot.slane %v4868, 2
        %v4870 = vadd.f32 %v4868, %v4869
        %v4871 = vrot.slane %v4870, 1
        %v4872 = vadd.f32 %v4870, %v4871
        %v4873 = vrot.slane %v4691, 4
        %v4874 = vadd.f32 %v4691, %v4873
        %v4875 = vrot.slane %v4874, 2
        %v4876 = vadd.f32 %v4874, %v4875
        %v4877 = vrot.slane %v4876, 1
        %v4878 = vadd.f32 %v4876, %v4877
        %v4879 = vrot.slane %v4692, 4
        %v4880 = vadd.f32 %v4692, %v4879
        %v4881 = vrot.slane %v4880, 2
        %v4882 = vadd.f32 %v4880, %v4881
        %v4883 = vrot.slane %v4882, 1
        %v4884 = vadd.f32 %v4882, %v4883
        %v4885 = vpack.c.bf16 %v4698, %v4698
        %v4886 = vpack.c.bf16 %v4704, %v4704
        %v4887 = vpack.c.bf16 %v4710, %v4710
        %v4888 = vpack.c.bf16 %v4716, %v4716
        %v4889 = vpack.c.bf16 %v4722, %v4722
        %v4890 = vpack.c.bf16 %v4728, %v4728
        %v4891 = vpack.c.bf16 %v4734, %v4734
        %v4892 = vpack.c.bf16 %v4740, %v4740
        %v4893 = vpack.c.bf16 %v4746, %v4746
        %v4894 = vpack.c.bf16 %v4752, %v4752
        %v4895 = vpack.c.bf16 %v4758, %v4758
        %v4896 = vpack.c.bf16 %v4764, %v4764
        %v4897 = vpack.c.bf16 %v4770, %v4770
        %v4898 = vpack.c.bf16 %v4776, %v4776
        %v4899 = vpack.c.bf16 %v4782, %v4782
        %v4900 = vpack.c.bf16 %v4788, %v4788
        %v4901 = vpack.c.bf16 %v4794, %v4794
        %v4902 = vpack.c.bf16 %v4800, %v4800
        %v4903 = vpack.c.bf16 %v4806, %v4806
        %v4904 = vpack.c.bf16 %v4812, %v4812
        %v4905 = vpack.c.bf16 %v4818, %v4818
        %v4906 = vpack.c.bf16 %v4824, %v4824
        %v4907 = vpack.c.bf16 %v4830, %v4830
        %v4908 = vpack.c.bf16 %v4836, %v4836
        %v4909 = vpack.c.bf16 %v4842, %v4842
        %v4910 = vpack.c.bf16 %v4848, %v4848
        %v4911 = vpack.c.bf16 %v4854, %v4854
        %v4912 = vpack.c.bf16 %v4860, %v4860
        %v4913 = vpack.c.bf16 %v4866, %v4866
        %v4914 = vpack.c.bf16 %v4872, %v4872
        %v4915 = vpack.c.bf16 %v4878, %v4878
        %v4916 = vpack.c.bf16 %v4884, %v4884
        %v4917 = vld [vmem:[%s19] sm:$0xf]
        %v4918 = vld [vmem:[%s19 + $0x4] sm:$0xf]
        %v4919 = vld [vmem:[%s19 + $0x8] sm:$0xf]
        %v4920 = vld [vmem:[%s19 + $0xc] sm:$0xf]
        %v4921 = vld [vmem:[%s19 + $0x10] sm:$0xf]
        %v4922 = vld [vmem:[%s19 + $0x14] sm:$0xf]
        %v4923 = vld [vmem:[%s19 + $0x18] sm:$0xf]
        %v4924 = vld [vmem:[%s19 + $0x1c] sm:$0xf]
        %v4925 = vld [vmem:[%s19 + $0x20] sm:$0xf]
        %v4926 = vld [vmem:[%s19 + $0x24] sm:$0xf]
        %v4927 = vld [vmem:[%s19 + $0x28] sm:$0xf]
        %v4928 = vld [vmem:[%s19 + $0x2c] sm:$0xf]
        %v4929 = vld [vmem:[%s19 + $0x30] sm:$0xf]
        %v4930 = vld [vmem:[%s19 + $0x34] sm:$0xf]
        %v4931 = vld [vmem:[%s19 + $0x38] sm:$0xf]
        %v4932 = vld [vmem:[%s19 + $0x3c] sm:$0xf]
        %v4933 = vld [vmem:[%s20] sm:$0x1]
        %v4935 = vlaneseq
        %v4936 = vshrl.u32 %v4935, 7
        %v4937 = vsub.s32 0, %v4936
        %v4938 = vrot.slane %v4933, %v4937
        %v4972 = vunpack.c.l.b16 %v4885
        %v4973 = vunpack.c.l.b16 %v4886
        %v4974 = vunpack.c.l.b16 %v4887
        %v4975 = vunpack.c.l.b16 %v4888
        %v4976 = vunpack.c.l.b16 %v4889
        %v4977 = vunpack.c.l.b16 %v4890
        %v4978 = vunpack.c.l.b16 %v4891
        %v4979 = vunpack.c.l.b16 %v4892
        %v4980 = vunpack.c.l.b16 %v4893
        %v4981 = vunpack.c.l.b16 %v4894
        %v4982 = vunpack.c.l.b16 %v4895
        %v4983 = vunpack.c.l.b16 %v4896
        %v4984 = vunpack.c.l.b16 %v4897
        %v4985 = vunpack.c.l.b16 %v4898
        %v4986 = vunpack.c.l.b16 %v4899
        %v4987 = vunpack.c.l.b16 %v4900
        %v4988 = vunpack.c.l.b16 %v4901
        %v4989 = vunpack.c.l.b16 %v4902
        %v4990 = vunpack.c.l.b16 %v4903
        %v4991 = vunpack.c.l.b16 %v4904
        %v4992 = vunpack.c.l.b16 %v4905
        %v4993 = vunpack.c.l.b16 %v4906
        %v4994 = vunpack.c.l.b16 %v4907
        %v4995 = vunpack.c.l.b16 %v4908
        %v4996 = vunpack.c.l.b16 %v4909
        %v4997 = vunpack.c.l.b16 %v4910
        %v4998 = vunpack.c.l.b16 %v4911
        %v4999 = vunpack.c.l.b16 %v4912
        %v5000 = vunpack.c.l.b16 %v4913
        %v5001 = vunpack.c.l.b16 %v4914
        %v5002 = vunpack.c.l.b16 %v4915
        %v5003 = vunpack.c.l.b16 %v4916
        %vm5004 = vcmask 1041409
        %v5005 = vsel %vm5004, %v4973, %v4972
        %vm5006 = vcmask 1042434
        %v5007 = vsel %vm5006, %v4974, %v5005
        %vm5008 = vcmask 1043459
        %v5009 = vsel %vm5008, %v4975, %v5007
        %vm5010 = vcmask 1044484
        %v5011 = vsel %vm5010, %v4976, %v5009
        %vm5012 = vcmask 1045509
        %v5013 = vsel %vm5012, %v4977, %v5011
        %vm5014 = vcmask 1046534
        %v5015 = vsel %vm5014, %v4978, %v5013
        %vm5016 = vcmask 1047559
        %v5017 = vsel %vm5016, %v4979, %v5015
        %v5018 = vsel %vm5004, %v4981, %v4980
        %v5019 = vsel %vm5006, %v4982, %v5018
        %v5020 = vsel %vm5008, %v4983, %v5019
        %v5021 = vsel %vm5010, %v4984, %v5020
        %v5022 = vsel %vm5012, %v4985, %v5021
        %v5023 = vsel %vm5014, %v4986, %v5022
        %v5024 = vsel %vm5016, %v4987, %v5023
        %v5025 = vsel %vm5004, %v4989, %v4988
        %v5026 = vsel %vm5006, %v4990, %v5025
        %v5027 = vsel %vm5008, %v4991, %v5026
        %v5028 = vsel %vm5010, %v4992, %v5027
        %v5029 = vsel %vm5012, %v4993, %v5028
        %v5030 = vsel %vm5014, %v4994, %v5029
        %v5031 = vsel %vm5016, %v4995, %v5030
        %v5032 = vsel %vm5004, %v4997, %v4996
        %v5033 = vsel %vm5006, %v4998, %v5032
        %v5034 = vsel %vm5008, %v4999, %v5033
        %v5035 = vsel %vm5010, %v5000, %v5034
        %v5036 = vsel %vm5012, %v5001, %v5035
        %v5037 = vsel %vm5014, %v5002, %v5036
        %v5038 = vsel %vm5016, %v5003, %v5037
        %v5039 = vpack.c.b16 %v5024, %v5017
        %v5040 = vpack.c.b16 %v5038, %v5031
        %v5059 = vunpack.c.l.b16 %v4917
        %v5060 = vunpack.c.l.b16 %v4918
        %v5061 = vunpack.c.l.b16 %v4919
        %v5062 = vunpack.c.l.b16 %v4920
        %v5063 = vunpack.c.l.b16 %v4921
        %v5064 = vunpack.c.l.b16 %v4922
        %v5065 = vunpack.c.l.b16 %v4923
        %v5066 = vunpack.c.l.b16 %v4924
        %v5067 = vunpack.c.l.b16 %v4925
        %v5068 = vunpack.c.l.b16 %v4926
        %v5069 = vunpack.c.l.b16 %v4927
        %v5070 = vunpack.c.l.b16 %v4928
        %v5071 = vunpack.c.l.b16 %v4929
        %v5072 = vunpack.c.l.b16 %v4930
        %v5073 = vunpack.c.l.b16 %v4931
        %v5074 = vunpack.c.l.b16 %v4932
        %v5075 = vpack.c.b16 %v5060, %v5059
        %v5076 = vpack.c.b16 %v5062, %v5061
        %v5077 = vpack.c.b16 %v5064, %v5063
        %v5078 = vpack.c.b16 %v5066, %v5065
        %v5079 = vpack.c.b16 %v5068, %v5067
        %v5080 = vpack.c.b16 %v5070, %v5069
        %v5081 = vpack.c.b16 %v5072, %v5071
        %v5082 = vpack.c.b16 %v5074, %v5073
        %5091 = vmatprep.subr.bf16.mxu0 0
        %5092 = vmatpush1.bf16.msra.mxu0 %v5075
        %5093 = vmatprep.subr.bf16.mxu0 0
        %5094 = vmatpush1.bf16.msra.mxu0 %v5076
        %5095 = vmatprep.subr.bf16.mxu0 0
        %5096 = vmatpush1.bf16.msra.mxu0 %v5077
        %5097 = vmatprep.subr.bf16.mxu0 0
        %5098 = vmatpush1.bf16.msra.mxu0 %v5078
        %5099 = vmatprep.subr.bf16.mxu0 0
        %5100 = vmatpush1.bf16.msra.mxu0 %v5079
        %5101 = vmatprep.subr.bf16.mxu0 0
        %5102 = vmatpush1.bf16.msra.mxu0 %v5080
        %5103 = vmatprep.subr.bf16.mxu0 0
        %5104 = vmatpush1.bf16.msra.mxu0 %v5081
        %5105 = vmatprep.subr.bf16.mxu0 0
        %5106 = vmatpush1.bf16.msra.mxu0 %v5082
        %5107 = vmatprep.subr.bf16.mxu0 0
        %5108 = vmatpush1.bf16.msra.mxu0 0
        %5109 = vmatprep.subr.bf16.mxu0 0
        %5110 = vmatpush1.bf16.msra.mxu0 0
        %5111 = vmatprep.subr.bf16.mxu0 0
        %5112 = vmatpush1.bf16.msra.mxu0 0
        %5113 = vmatprep.subr.bf16.mxu0 0
        %5114 = vmatpush1.bf16.msra.mxu0 0
        %5115 = vmatprep.subr.bf16.mxu0 0
        %5116 = vmatpush1.bf16.msra.mxu0 0
        %5117 = vmatprep.subr.bf16.mxu0 0
        %5118 = vmatpush1.bf16.msra.mxu0 0
        %5119 = vmatprep.subr.bf16.mxu0 0
        %5120 = vmatpush1.bf16.msra.mxu0 0
        %5121 = vmatprep.subr.bf16.mxu0 0
        %5122 = vmatpush1.bf16.msra.mxu0 0
        %5123 = vmatprep.mubr.bf16.mxu0 0
        %5124 = vmatmul.mubr.bf16.gmra.mrb[0].mxu0 %v5039
        %v5125 = vpop.f32.mrb[0].mxu0
        %v5126 = vadd.f32 %v4938, %v5125
        %v5127 = vpop.f32.mrb[0].mxu0
        %v5128 = vpop.f32.mrb[0].mxu0
        %v5129 = vadd.f32 %v4938, %v5128
        %v5130 = vpop.f32.mrb[0].mxu0
        %5131 = vmatprep.mubr.bf16.mxu0 0
        %5132 = vmatmul.mubr.bf16.gmra.mrb[0].mxu0 %v5040
        %v5133 = vpop.f32.mrb[0].mxu0
        %v5134 = vadd.f32 %v4938, %v5133
        %v5135 = vpop.f32.mrb[0].mxu0
        %v5136 = vpop.f32.mrb[0].mxu0
        %v5137 = vadd.f32 %v4938, %v5136
        %v5138 = vpop.f32.mrb[0].mxu0
        %5139 = vdwg.mxu0
        %5140 = vst [vmem:[%s726] sm:$0xff] %v5126
        %5141 = vst [vmem:[%s726 + $0x8] sm:$0xff] %v5129
        %5142 = vst [vmem:[%s726 + $0x10] sm:$0xff] %v5134
        %5143 = vst [vmem:[%s726 + $0x18] sm:$0xff] %v5137
        %s5144 = sand.u32 %s519, 1
        %s5145 = scalar_lea.sflag [#allocation3], %s5144
        %s5146 = sand.u32 %s519, 1
        %s5147 = smul.addr %s5146, 32
        %s5148 = scalar_lea.vmem [#allocation2], %s5147
        // Predicated region
        $region105: #{tpu_custom_call.1} parent=103 // pred_check
          %p5149 = pneg %p529
        $region106: #{tpu_custom_call.1} parent=103 // pred_check_branch
          %5151 = sbr.rel (%p5149) target = $region108
        $region107: #{tpu_custom_call.1} parent=103 // pred_region
          %s5152 = smul.u32 4, %s40
          %s5154 = ssub.s32 512, 512
          %5155 = vsyncadd %s5145, %s5154
          %s5156 = smul.addr %s39, 16
          %s5157 = sadd.s32 %s5152, %s5156
          %s5158 = smul.addr %s5157, 128
          %s5159 = scalar_lea.hbm %s21, %s5158
          %s5160 = sshll.u32 %s5148, 4
          %s5161 = int_to_ptr.vmem [resolvable:$true] %s5160
          %5166 = dma.vmem_to_hbm [thread:$0]  %s5161, 512, %s5159, %s5145, 128, 128, 8
        $region108: #{tpu_custom_call.1} parent=103 // pred_fallthru
          _
      $region104: #{tpu_custom_call.1} parent=5 // pred_fallthru
        _
      %p5167 = scmp.le.s32.totalorder 2, %s30
      // Predicated region
      $region109: #{tpu_custom_call.1} parent=5 // pred_check
        %p5168 = pneg %p5167
      $region110: #{tpu_custom_call.1} parent=5 // pred_check_branch
        %5170 = sbr.rel (%p5168) target = $region112
      $region111: #{tpu_custom_call.1} parent=5 // pred_region
        %s5171 = ssub.s32 %s30, 2
        // Predicated region
        $region113: #{tpu_custom_call.1} parent=111 // pred_check
          %p5172 = pneg %p535
        $region114: #{tpu_custom_call.1} parent=111 // pred_check_branch
          %5174 = sbr.rel (%p5172) target = $region116
        $region115: #{tpu_custom_call.1} parent=111 // pred_region
          %s5175 = sand.u32 %s520, 1
          %s5176 = scalar_lea.sflag [#allocation3], %s5175
          %s5177 = sand.u32 %s520, 1
          %s5178 = smul.addr %s5177, 32
          %s5179 = scalar_lea.vmem [#allocation2], %s5178
          %5180 = dma.done %s5176, 512
        $region116: #{tpu_custom_call.1} parent=111 // pred_fallthru
          _
      $region112: #{tpu_custom_call.1} parent=5 // pred_fallthru
        _
    $region6: #{tpu_custom_call.1} parent=1 // loop_footer
      %s34 = sadd.s32 1, %s30
    $region7: #{tpu_custom_call.1} parent=1 // loop_footer_branch
      %29 = sbr.rel target = $region3
    $region8: #{tpu_custom_call.1} parent=1 // loop_exit
      _
    %5181 = vsyncpa [#allocation3], 1
    %s5182 = scalar_lea.sflag [#allocation3], 1
    %5183 = vsyncpa %s5182, 1

</llo_original>
